<compile_context>
chip_gen: v6e
topology: v6e:2x2x1
jax: 0.10.0
libtpu: 0.0.40
codegen_flags: <defaults>
</compile_context>

<pallas_src>
import functools

import jax
import jax.numpy as jnp
import numpy as np
from jax.experimental import pallas as pl
from jax.experimental.pallas import tpu as pltpu


def _cross_attn_kernel(clip_ref, dino_ref,
                       wq_ref, bq_ref,
                       wkv_ref, bkv_ref,
                       wo_ref, bo_ref,
                       ln_w_ref, ln_b_ref,
                       out_ref, attn_ref,
                       *, num_heads, head_dim, batch_block, q_len, kv_len,
                       resnet, eps):
    f32 = jnp.float32
    bf16 = jnp.bfloat16
    E = num_heads * head_dim

    clip_x = clip_ref[...]                     # (Bb*Lq, Cc) f32
    dino_x = dino_ref[...]                     # (Bb*Lk, E)  f32

    # Fused projections over the whole batch block (softmax scale already folded
    # into wq/bq).  bf16 operands, f32 accumulation; cast the results to bf16 ONCE
    # so every per-head slice below is already an MXU-ready bf16 view.
    q = (jnp.dot(clip_x.astype(bf16), wq_ref[...],
                 preferred_element_type=f32) + bq_ref[...]).astype(bf16)   # (Bb*Lq, E)
    kv = (jnp.dot(dino_x.astype(bf16), wkv_ref[...],
                  preferred_element_type=f32) + bkv_ref[...]).astype(bf16)  # (Bb*Lk, 2E)

    # Per-(batch element, head) attention.  Each head output goes straight into the
    # bf16 VMEM scratch: bounded live ranges, and the output projection below stays a
    # single fused K=E matmul.
    for b in range(batch_block):
        r0 = b * q_len
        c0 = b * kv_len
        q_b = q[r0:r0 + q_len, :]              # (Lq, E)   bf16
        kv_b = kv[c0:c0 + kv_len, :]           # (Lk, 2E)  bf16
        for h in range(num_heads):
            lo = h * head_dim
            qh = q_b[:, lo:lo + head_dim]                      # (Lq, hd)
            kh = kv_b[:, lo:lo + head_dim]                     # (Lk, hd)
            vh = kv_b[:, E + lo:E + lo + head_dim]             # (Lk, hd)

            # scores = q @ k^T, contracting the last axis of both (no k.T / vxpose).
            s = jax.lax.dot_general(qh, kh, (((1,), (1,)), ((), ())),
                                    preferred_element_type=f32)            # (Lq, Lk)
            m = jnp.max(s, axis=-1, keepdims=True)
            p = jnp.exp(s - m)                                             # f32 on EUP
            denom = jnp.sum(p, axis=-1, keepdims=True)

            # Deferred normalization: scale the (Lq, hd) head output instead of the
            # (Lq, Lk) probabilities; reciprocal rides the EUP slot.
            oh = jnp.dot(p.astype(bf16), vh, preferred_element_type=f32)   # (Lq, hd)
            oh = oh * pl.reciprocal(denom, approx=True)
            # TODO(synk): attention dropout (p=0.1) omitted (eval-mode semantics).
            attn_ref[r0:r0 + q_len, lo:lo + head_dim] = oh.astype(bf16)

    # Fused out_proj + dino_to_clip_proj over the whole block (K = E).
    proj = jnp.dot(attn_ref[...], wo_ref[...],
                   preferred_element_type=f32) + bo_ref[...]               # (Bb*Lq, Cc)

    x = clip_x + proj if resnet else proj

    # LayerNorm (f32, affine).
    mean = jnp.mean(x, axis=-1, keepdims=True)
    xc = x - mean
    var = jnp.mean(xc * xc, axis=-1, keepdims=True)
    y = xc * jax.lax.rsqrt(var + eps)
    out_ref[...] = (y * ln_w_ref[...] + ln_b_ref[...]).astype(out_ref.dtype)


def fuse_cross_attention_params(params, *, num_heads):
    """Host-side algebraic fusion of the weight chains (do this ONCE, not per call).

    w_q  = (W_c2d @ Wq) * (1/sqrt(head_dim)),  b_q = (b_c2d @ Wq + bq) * scale
    w_kv = [Wk | Wv],                          b_kv = [bk | bv]
    w_o  = Wo @ W_d2c,                         b_o  = bo @ W_d2c + b_d2c
    """
    E = params["wq"].shape[0]
    Cc = params["w_c2d"].shape[0]
    head_dim = E // num_heads
    scale = 1.0 / float(np.sqrt(head_dim))

    w_q = (params["w_c2d"] @ params["wq"]) * scale                      # (Cc, E)
    b_q = (params["b_c2d"] @ params["wq"] + params["bq"]) * scale       # (E,)
    w_kv = jnp.concatenate([params["wk"], params["wv"]], axis=1)        # (E, 2E)
    b_kv = jnp.concatenate([params["bk"], params["bv"]], axis=0)        # (2E,)
    w_o = params["wo"] @ params["w_d2c"]                                # (E, Cc)
    b_o = params["bo"] @ params["w_d2c"] + params["b_d2c"]              # (Cc,)

    f32, bf16 = jnp.float32, jnp.bfloat16
    return {
        "w_q": w_q.astype(bf16),
        "b_q": b_q.reshape(1, E).astype(f32),
        "w_kv": w_kv.astype(bf16),
        "b_kv": b_kv.reshape(1, 2 * E).astype(f32),
        "w_o": w_o.astype(bf16),
        "b_o": b_o.reshape(1, Cc).astype(f32),
        "ln_w": params["ln_w"].reshape(1, Cc).astype(f32),
        "ln_b": params["ln_b"].reshape(1, Cc).astype(f32),
    }


def _pick_batch_block(bs, q_len, kv_len, target_rows=512):
    """Largest batch block with B_block*Lq <= target rows, sublane-clean blocks,
    preferring an even grid length so v7x megacore can shard the batch axis."""
    def ok(d):
        q_ok = (d * q_len) % 8 == 0 or d == bs
        k_ok = (d * kv_len) % 8 == 0 or d == bs
        return bs % d == 0 and q_ok and k_ok

    cands = [d for d in range(1, bs + 1) if ok(d) and d * q_len <= target_rows]
    if not cands:
        cands = [d for d in range(1, bs + 1) if ok(d)] or [bs]
    best = max(cands)
    even = [d for d in cands if (bs // d) % 2 == 0]
    if even and (bs // best) % 2 != 0:
        best = max(even)
    return best


def cross_attention_v2(clip_feats, dino_feats, fused, *, num_heads,
                       resnet=False, eps=1e-5, batch_block=None,
                       single_buffer_weights=True):
    bs, Lq, Cc = clip_feats.shape
    _, Lk, E = dino_feats.shape
    assert E % num_heads == 0
    head_dim = E // num_heads

    if batch_block is None:
        batch_block = _pick_batch_block(bs, Lq, Lk)
    assert bs % batch_block == 0
    grid_len = bs // batch_block
    q_rows = batch_block * Lq
    kv_rows = batch_block * Lk

    # Flatten batch*seq host-side: each grid step sees tall lane-dense 2-D tiles.
    clip_2d = clip_feats.reshape(bs * Lq, Cc)
    dino_2d = dino_feats.reshape(bs * Lk, E)

    # Grid-invariant weights: single-buffer them (saves ~half the weight VMEM on
    # v7x's 32 MiB default scoped budget).
    pipeline_kw = dict(pipeline_mode=pl.Buffered(1)) if single_buffer_weights else {}

    def weight_spec(shape):
        return pl.BlockSpec(shape, lambda b, _n=len(shape): (0,) * _n, **pipeline_kw)

    grid_spec = pltpu.PrefetchScalarGridSpec(
        num_scalar_prefetch=0,
        grid=(grid_len,),
        in_specs=[
            pl.BlockSpec((q_rows, Cc), lambda b: (b, 0)),    # clip block (flattened)
            pl.BlockSpec((kv_rows, E), lambda b: (b, 0)),    # dino block (flattened)
            weight_spec((Cc, E)),        # fused Q weight (scale folded)
            weight_spec((1, E)),         # fused Q bias
            weight_spec((E, 2 * E)),     # fused KV weight
            weight_spec((1, 2 * E)),     # fused KV bias
            weight_spec((E, Cc)),        # fused out weight
            weight_spec((1, Cc)),        # fused out bias
            weight_spec((1, Cc)),        # layer_norm weight
            weight_spec((1, Cc)),        # layer_norm bias
        ],
        out_specs=pl.BlockSpec((q_rows, Cc), lambda b: (b, 0)),
        scratch_shapes=[pltpu.VMEM((q_rows, E), jnp.bfloat16)],   # per-block attn out
    )

    kernel = functools.partial(
        _cross_attn_kernel, num_heads=num_heads, head_dim=head_dim,
        batch_block=batch_block, q_len=Lq, kv_len=Lk, resnet=resnet, eps=eps)

    out_2d = pl.pallas_call(
        kernel,
        out_shape=jax.ShapeDtypeStruct((bs * Lq, Cc), clip_feats.dtype),
        grid_spec=grid_spec,
        compiler_params=pltpu.CompilerParams(
            dimension_semantics=("parallel",)),
    )(clip_2d, dino_2d,
      fused["w_q"], fused["b_q"], fused["w_kv"], fused["b_kv"],
      fused["w_o"], fused["b_o"], fused["ln_w"], fused["ln_b"])
    return out_2d.reshape(bs, Lq, Cc)


def _reference(clip_feats, dino_feats, p, *, num_heads, resnet=False, eps=1e-5):
    """Pure-JAX f32 reference mirroring the PyTorch forward (eval mode), unfused."""
    E = p["wq"].shape[0]
    hd = E // num_heads
    scale = 1.0 / np.sqrt(hd)
    bs, Lq, _ = clip_feats.shape
    Lk = dino_feats.shape[1]

    q_in = clip_feats @ p["w_c2d"] + p["b_c2d"]
    q = q_in @ p["wq"] + p["bq"]
    k = dino_feats @ p["wk"] + p["bk"]
    v = dino_feats @ p["wv"] + p["bv"]

    qh = q.reshape(bs, Lq, num_heads, hd).transpose(0, 2, 1, 3)
    kh = k.reshape(bs, Lk, num_heads, hd).transpose(0, 2, 1, 3)
    vh = v.reshape(bs, Lk, num_heads, hd).transpose(0, 2, 1, 3)

    s = jnp.einsum("bhqd,bhkd->bhqk", qh * scale, kh)
    pw = jax.nn.softmax(s, axis=-1)
    o = jnp.einsum("bhqk,bhkd->bhqd", pw, vh)
    o = o.transpose(0, 2, 1, 3).reshape(bs, Lq, E)

    attn = o @ p["wo"] + p["bo"]
    proj = attn @ p["w_d2c"] + p["b_d2c"]
    x = clip_feats + proj if resnet else proj

    mean = jnp.mean(x, axis=-1, keepdims=True)
    var = jnp.mean((x - mean) ** 2, axis=-1, keepdims=True)
    y = (x - mean) * jax.lax.rsqrt(var + eps)
    return y * p["ln_w"] + p["ln_b"]


if __name__ == "__main__":
    # Small shapes consistent with the module (full model: clip=512, dino=1024,
    # heads=8 -> head_dim=128).  Here head_dim stays 128 for lane alignment, and
    # bs=4 exercises the batch-blocked grid (B_block=2, grid length 2).
    bs, Lq, Lk = 4, 16, 24
    clip_dim, dino_dim, num_heads = 128, 256, 2

    key = jax.random.PRNGKey(0)
    ks = jax.random.split(key, 16)

    def w(k, shape, std=0.02):
        return std * jax.random.normal(k, shape, dtype=jnp.float32)

    params = {
        "w_c2d": w(ks[0], (clip_dim, dino_dim)),
        "b_c2d": w(ks[1], (dino_dim,)),
        "wq": w(ks[2], (dino_dim, dino_dim)),
        "wk": w(ks[3], (dino_dim, dino_dim)),
        "wv": w(ks[4], (dino_dim, dino_dim)),
        "bq": w(ks[5], (dino_dim,)),
        "bk": w(ks[6], (dino_dim,)),
        "bv": w(ks[7], (dino_dim,)),
        "wo": w(ks[8], (dino_dim, dino_dim)),
        "bo": w(ks[9], (dino_dim,)),
        "w_d2c": w(ks[10], (dino_dim, clip_dim)),
        "b_d2c": w(ks[11], (clip_dim,)),
        "ln_w": 1.0 + w(ks[12], (clip_dim,)),
        "ln_b": w(ks[13], (clip_dim,)),
    }

    clip_feats = jax.random.normal(ks[14], (bs, Lq, clip_dim), dtype=jnp.float32)
    dino_feats = jax.random.normal(ks[15], (bs, Lk, dino_dim), dtype=jnp.float32)

    # Weight fusion happens once, outside the per-call path.
    fused = fuse_cross_attention_params(params, num_heads=num_heads)
    fused = {k: jax.block_until_ready(v) for k, v in fused.items()}

    def run_all(single_buffer):
        return {r: cross_attention_v2(clip_feats, dino_feats, fused,
                                      num_heads=num_heads, resnet=r,
                                      single_buffer_weights=single_buffer)
                for r in (False, True)}

    try:
        outs = run_all(True)
    except Exception:
        # Some builds may reject pl.Buffered(1); fall back to default buffering.
        outs = run_all(False)

    for resnet_flag, out in outs.items():
        out = jax.block_until_ready(out)
        ref = jax.block_until_ready(
            _reference(clip_feats, dino_feats, params,
                       num_heads=num_heads, resnet=resnet_flag))
        np.testing.assert_allclose(np.asarray(out), np.asarray(ref),
                                   rtol=5e-2, atol=5e-2)
    print("KERNEL_OK")
</pallas_src>

<mosaic_0001>
module attributes {stable_mosaic.version = 11 : i64} {
  func.func @_cross_attn_kernel(%arg0: i32, %arg1: memref<32x128xf32, #tpu.memory_space<vmem>>, %arg2: memref<48x256xf32, #tpu.memory_space<vmem>>, %arg3: memref<128x256xbf16, #tpu.memory_space<vmem>>, %arg4: memref<1x256xf32, #tpu.memory_space<vmem>>, %arg5: memref<256x512xbf16, #tpu.memory_space<vmem>>, %arg6: memref<1x512xf32, #tpu.memory_space<vmem>>, %arg7: memref<256x128xbf16, #tpu.memory_space<vmem>>, %arg8: memref<1x128xf32, #tpu.memory_space<vmem>>, %arg9: memref<1x128xf32, #tpu.memory_space<vmem>>, %arg10: memref<1x128xf32, #tpu.memory_space<vmem>>, %arg11: memref<32x128xf32, #tpu.memory_space<vmem>>, %arg12: memref<32x256xbf16, #tpu.memory_space<vmem>>) attributes {dimension_semantics = [#tpu.dimension_semantics<parallel>], iteration_bounds = array<i64: 2>, scalar_prefetch = 0 : i64, scratch_operands = 1 : i64, tpu.core_type = #tpu.core_type<tc>, window_params = [{transform_indices = @transform_0, window_bounds = array<i64: 32, 128>}, {transform_indices = @transform_1, window_bounds = array<i64: 48, 256>}, {pipeline_mode = #tpu.pipeline_mode<synchronous>, transform_indices = @transform_2, window_bounds = array<i64: 128, 256>}, {pipeline_mode = #tpu.pipeline_mode<synchronous>, transform_indices = @transform_3, window_bounds = array<i64: 1, 256>}, {pipeline_mode = #tpu.pipeline_mode<synchronous>, transform_indices = @transform_4, window_bounds = array<i64: 256, 512>}, {pipeline_mode = #tpu.pipeline_mode<synchronous>, transform_indices = @transform_5, window_bounds = array<i64: 1, 512>}, {pipeline_mode = #tpu.pipeline_mode<synchronous>, transform_indices = @transform_6, window_bounds = array<i64: 256, 128>}, {pipeline_mode = #tpu.pipeline_mode<synchronous>, transform_indices = @transform_7, window_bounds = array<i64: 1, 128>}, {pipeline_mode = #tpu.pipeline_mode<synchronous>, transform_indices = @transform_8, window_bounds = array<i64: 1, 128>}, {pipeline_mode = #tpu.pipeline_mode<synchronous>, transform_indices = @transform_9, window_bounds = array<i64: 1, 128>}, {transform_indices = @transform_10, window_bounds = array<i64: 32, 128>}]} {
    %c0 = arith.constant 0 : index
    %c0_0 = arith.constant 0 : index
    %0 = vector.load %arg1[%c0, %c0_0] : memref<32x128xf32, #tpu.memory_space<vmem>>, vector<32x128xf32>
    %c0_1 = arith.constant 0 : index
    %c0_2 = arith.constant 0 : index
    %1 = vector.load %arg2[%c0_1, %c0_2] : memref<48x256xf32, #tpu.memory_space<vmem>>, vector<48x256xf32>
    %2 = arith.truncf %0 : vector<32x128xf32> to vector<32x128xbf16>
    %c0_3 = arith.constant 0 : index
    %c0_4 = arith.constant 0 : index
    %3 = vector.load %arg3[%c0_3, %c0_4] : memref<128x256xbf16, #tpu.memory_space<vmem>>, vector<128x256xbf16>
    %cst = arith.constant dense<0.000000e+00> : vector<32x256xf32>
    %4 = tpu.matmul %2, %3, %cst {dimension_numbers = #tpu.dot_dimension_numbers<[1], [0], [0], [1], [0, 0, 1, 1], [], []>} : vector<32x128xbf16>, vector<128x256xbf16>, vector<32x256xf32> -> vector<32x256xf32>
    %c0_5 = arith.constant 0 : index
    %c0_6 = arith.constant 0 : index
    %5 = vector.load %arg4[%c0_5, %c0_6] : memref<1x256xf32, #tpu.memory_space<vmem>>, vector<1x256xf32>
    %6 = vector.broadcast %5 : vector<1x256xf32> to vector<32x256xf32>
    %7 = arith.addf %4, %6 : vector<32x256xf32>
    %8 = arith.truncf %7 : vector<32x256xf32> to vector<32x256xbf16>
    %9 = arith.truncf %1 : vector<48x256xf32> to vector<48x256xbf16>
    %c0_7 = arith.constant 0 : index
    %c0_8 = arith.constant 0 : index
    %10 = vector.load %arg5[%c0_7, %c0_8] : memref<256x512xbf16, #tpu.memory_space<vmem>>, vector<256x512xbf16>
    %cst_9 = arith.constant dense<0.000000e+00> : vector<48x512xf32>
    %11 = tpu.matmul %9, %10, %cst_9 {dimension_numbers = #tpu.dot_dimension_numbers<[1], [0], [0], [1], [0, 0, 1, 1], [], []>} : vector<48x256xbf16>, vector<256x512xbf16>, vector<48x512xf32> -> vector<48x512xf32>
    %c0_10 = arith.constant 0 : index
    %c0_11 = arith.constant 0 : index
    %12 = vector.load %arg6[%c0_10, %c0_11] : memref<1x512xf32, #tpu.memory_space<vmem>>, vector<1x512xf32>
    %13 = vector.broadcast %12 : vector<1x512xf32> to vector<48x512xf32>
    %14 = arith.addf %11, %13 : vector<48x512xf32>
    %15 = arith.truncf %14 : vector<48x512xf32> to vector<48x512xbf16>
    %16 = vector.extract_strided_slice %8 {offsets = [0, 0], sizes = [16, 256], strides = [1, 1]} : vector<32x256xbf16> to vector<16x256xbf16>
    %17 = vector.extract_strided_slice %15 {offsets = [0, 0], sizes = [24, 512], strides = [1, 1]} : vector<48x512xbf16> to vector<24x512xbf16>
    %18 = vector.extract_strided_slice %16 {offsets = [0, 0], sizes = [16, 128], strides = [1, 1]} : vector<16x256xbf16> to vector<16x128xbf16>
    %19 = vector.extract_strided_slice %17 {offsets = [0, 0], sizes = [24, 128], strides = [1, 1]} : vector<24x512xbf16> to vector<24x128xbf16>
    %20 = vector.extract_strided_slice %17 {offsets = [0, 256], sizes = [24, 128], strides = [1, 1]} : vector<24x512xbf16> to vector<24x128xbf16>
    %cst_12 = arith.constant dense<0.000000e+00> : vector<16x24xf32>
    %21 = tpu.matmul %18, %19, %cst_12 {dimension_numbers = #tpu.dot_dimension_numbers<[1], [1], [0], [0], [0, 0, 1, 0], [], []>} : vector<16x128xbf16>, vector<24x128xbf16>, vector<16x24xf32> -> vector<16x24xf32>
    %cst_13 = arith.constant dense<0xFF800000> : vector<16xf32>
    %22 = vector.multi_reduction <maximumf>, %21, %cst_13 [1] : vector<16x24xf32> to vector<16xf32>
    %23 = vector.shape_cast %22 : vector<16xf32> to vector<16x1xf32>
    %24 = vector.broadcast %23 : vector<16x1xf32> to vector<16x24xf32>
    %25 = arith.subf %21, %24 : vector<16x24xf32>
    %26 = math.exp %25 : vector<16x24xf32>
    %cst_14 = arith.constant dense<0.000000e+00> : vector<16xf32>
    %27 = vector.multi_reduction <add>, %26, %cst_14 [1] : vector<16x24xf32> to vector<16xf32>
    %28 = vector.shape_cast %27 : vector<16xf32> to vector<16x1xf32>
    %29 = arith.truncf %26 : vector<16x24xf32> to vector<16x24xbf16>
    %cst_15 = arith.constant dense<0.000000e+00> : vector<16x128xf32>
    %30 = tpu.matmul %29, %20, %cst_15 {dimension_numbers = #tpu.dot_dimension_numbers<[1], [0], [0], [1], [0, 0, 1, 1], [], []>} : vector<16x24xbf16>, vector<24x128xbf16>, vector<16x128xf32> -> vector<16x128xf32>
    %31 = tpu.reciprocal %28 {approx = true} : vector<16x1xf32> -> vector<16x1xf32>
    %32 = vector.broadcast %31 : vector<16x1xf32> to vector<16x128xf32>
    %33 = arith.mulf %30, %32 : vector<16x128xf32>
    %34 = arith.truncf %33 : vector<16x128xf32> to vector<16x128xbf16>
    %c0_16 = arith.constant 0 : index
    %c0_17 = arith.constant 0 : index
    %35 = vector.load %arg12[%c0_16, %c0_17] : memref<32x256xbf16, #tpu.memory_space<vmem>>, vector<16x128xbf16>
    tpu.vector_store %arg12[%c0_16, %c0_17], %34 {strides = array<i32>} : memref<32x256xbf16, #tpu.memory_space<vmem>>, vector<16x128xbf16>,
    %36 = vector.extract_strided_slice %16 {offsets = [0, 128], sizes = [16, 128], strides = [1, 1]} : vector<16x256xbf16> to vector<16x128xbf16>
    %37 = vector.extract_strided_slice %17 {offsets = [0, 128], sizes = [24, 128], strides = [1, 1]} : vector<24x512xbf16> to vector<24x128xbf16>
    %38 = vector.extract_strided_slice %17 {offsets = [0, 384], sizes = [24, 128], strides = [1, 1]} : vector<24x512xbf16> to vector<24x128xbf16>
    %cst_18 = arith.constant dense<0.000000e+00> : vector<16x24xf32>
    %39 = tpu.matmul %36, %37, %cst_18 {dimension_numbers = #tpu.dot_dimension_numbers<[1], [1], [0], [0], [0, 0, 1, 0], [], []>} : vector<16x128xbf16>, vector<24x128xbf16>, vector<16x24xf32> -> vector<16x24xf32>
    %cst_19 = arith.constant dense<0xFF800000> : vector<16xf32>
    %40 = vector.multi_reduction <maximumf>, %39, %cst_19 [1] : vector<16x24xf32> to vector<16xf32>
    %41 = vector.shape_cast %40 : vector<16xf32> to vector<16x1xf32>
    %42 = vector.broadcast %41 : vector<16x1xf32> to vector<16x24xf32>
    %43 = arith.subf %39, %42 : vector<16x24xf32>
    %44 = math.exp %43 : vector<16x24xf32>
    %cst_20 = arith.constant dense<0.000000e+00> : vector<16xf32>
    %45 = vector.multi_reduction <add>, %44, %cst_20 [1] : vector<16x24xf32> to vector<16xf32>
    %46 = vector.shape_cast %45 : vector<16xf32> to vector<16x1xf32>
    %47 = arith.truncf %44 : vector<16x24xf32> to vector<16x24xbf16>
    %cst_21 = arith.constant dense<0.000000e+00> : vector<16x128xf32>
    %48 = tpu.matmul %47, %38, %cst_21 {dimension_numbers = #tpu.dot_dimension_numbers<[1], [0], [0], [1], [0, 0, 1, 1], [], []>} : vector<16x24xbf16>, vector<24x128xbf16>, vector<16x128xf32> -> vector<16x128xf32>
    %49 = tpu.reciprocal %46 {approx = true} : vector<16x1xf32> -> vector<16x1xf32>
    %50 = vector.broadcast %49 : vector<16x1xf32> to vector<16x128xf32>
    %51 = arith.mulf %48, %50 : vector<16x128xf32>
    %52 = arith.truncf %51 : vector<16x128xf32> to vector<16x128xbf16>
    %c0_22 = arith.constant 0 : index
    %c128 = arith.constant 128 : index
    %53 = vector.load %arg12[%c0_22, %c128] : memref<32x256xbf16, #tpu.memory_space<vmem>>, vector<16x128xbf16>
    tpu.vector_store %arg12[%c0_22, %c128], %52 {strides = array<i32>} : memref<32x256xbf16, #tpu.memory_space<vmem>>, vector<16x128xbf16>,
    %54 = vector.extract_strided_slice %8 {offsets = [16, 0], sizes = [16, 256], strides = [1, 1]} : vector<32x256xbf16> to vector<16x256xbf16>
    %55 = vector.extract_strided_slice %15 {offsets = [24, 0], sizes = [24, 512], strides = [1, 1]} : vector<48x512xbf16> to vector<24x512xbf16>
    %56 = vector.extract_strided_slice %54 {offsets = [0, 0], sizes = [16, 128], strides = [1, 1]} : vector<16x256xbf16> to vector<16x128xbf16>
    %57 = vector.extract_strided_slice %55 {offsets = [0, 0], sizes = [24, 128], strides = [1, 1]} : vector<24x512xbf16> to vector<24x128xbf16>
    %58 = vector.extract_strided_slice %55 {offsets = [0, 256], sizes = [24, 128], strides = [1, 1]} : vector<24x512xbf16> to vector<24x128xbf16>
    %cst_23 = arith.constant dense<0.000000e+00> : vector<16x24xf32>
    %59 = tpu.matmul %56, %57, %cst_23 {dimension_numbers = #tpu.dot_dimension_numbers<[1], [1], [0], [0], [0, 0, 1, 0], [], []>} : vector<16x128xbf16>, vector<24x128xbf16>, vector<16x24xf32> -> vector<16x24xf32>
    %cst_24 = arith.constant dense<0xFF800000> : vector<16xf32>
    %60 = vector.multi_reduction <maximumf>, %59, %cst_24 [1] : vector<16x24xf32> to vector<16xf32>
    %61 = vector.shape_cast %60 : vector<16xf32> to vector<16x1xf32>
    %62 = vector.broadcast %61 : vector<16x1xf32> to vector<16x24xf32>
    %63 = arith.subf %59, %62 : vector<16x24xf32>
    %64 = math.exp %63 : vector<16x24xf32>
    %cst_25 = arith.constant dense<0.000000e+00> : vector<16xf32>
    %65 = vector.multi_reduction <add>, %64, %cst_25 [1] : vector<16x24xf32> to vector<16xf32>
    %66 = vector.shape_cast %65 : vector<16xf32> to vector<16x1xf32>
    %67 = arith.truncf %64 : vector<16x24xf32> to vector<16x24xbf16>
    %cst_26 = arith.constant dense<0.000000e+00> : vector<16x128xf32>
    %68 = tpu.matmul %67, %58, %cst_26 {dimension_numbers = #tpu.dot_dimension_numbers<[1], [0], [0], [1], [0, 0, 1, 1], [], []>} : vector<16x24xbf16>, vector<24x128xbf16>, vector<16x128xf32> -> vector<16x128xf32>
    %69 = tpu.reciprocal %66 {approx = true} : vector<16x1xf32> -> vector<16x1xf32>
    %70 = vector.broadcast %69 : vector<16x1xf32> to vector<16x128xf32>
    %71 = arith.mulf %68, %70 : vector<16x128xf32>
    %72 = arith.truncf %71 : vector<16x128xf32> to vector<16x128xbf16>
    %c16 = arith.constant 16 : index
    %c0_27 = arith.constant 0 : index
    %73 = vector.load %arg12[%c16, %c0_27] : memref<32x256xbf16, #tpu.memory_space<vmem>>, vector<16x128xbf16>
    tpu.vector_store %arg12[%c16, %c0_27], %72 {strides = array<i32>} : memref<32x256xbf16, #tpu.memory_space<vmem>>, vector<16x128xbf16>,
    %74 = vector.extract_strided_slice %54 {offsets = [0, 128], sizes = [16, 128], strides = [1, 1]} : vector<16x256xbf16> to vector<16x128xbf16>
    %75 = vector.extract_strided_slice %55 {offsets = [0, 128], sizes = [24, 128], strides = [1, 1]} : vector<24x512xbf16> to vector<24x128xbf16>
    %76 = vector.extract_strided_slice %55 {offsets = [0, 384], sizes = [24, 128], strides = [1, 1]} : vector<24x512xbf16> to vector<24x128xbf16>
    %cst_28 = arith.constant dense<0.000000e+00> : vector<16x24xf32>
    %77 = tpu.matmul %74, %75, %cst_28 {dimension_numbers = #tpu.dot_dimension_numbers<[1], [1], [0], [0], [0, 0, 1, 0], [], []>} : vector<16x128xbf16>, vector<24x128xbf16>, vector<16x24xf32> -> vector<16x24xf32>
    %cst_29 = arith.constant dense<0xFF800000> : vector<16xf32>
    %78 = vector.multi_reduction <maximumf>, %77, %cst_29 [1] : vector<16x24xf32> to vector<16xf32>
    %79 = vector.shape_cast %78 : vector<16xf32> to vector<16x1xf32>
    %80 = vector.broadcast %79 : vector<16x1xf32> to vector<16x24xf32>
    %81 = arith.subf %77, %80 : vector<16x24xf32>
    %82 = math.exp %81 : vector<16x24xf32>
    %cst_30 = arith.constant dense<0.000000e+00> : vector<16xf32>
    %83 = vector.multi_reduction <add>, %82, %cst_30 [1] : vector<16x24xf32> to vector<16xf32>
    %84 = vector.shape_cast %83 : vector<16xf32> to vector<16x1xf32>
    %85 = arith.truncf %82 : vector<16x24xf32> to vector<16x24xbf16>
    %cst_31 = arith.constant dense<0.000000e+00> : vector<16x128xf32>
    %86 = tpu.matmul %85, %76, %cst_31 {dimension_numbers = #tpu.dot_dimension_numbers<[1], [0], [0], [1], [0, 0, 1, 1], [], []>} : vector<16x24xbf16>, vector<24x128xbf16>, vector<16x128xf32> -> vector<16x128xf32>
    %87 = tpu.reciprocal %84 {approx = true} : vector<16x1xf32> -> vector<16x1xf32>
    %88 = vector.broadcast %87 : vector<16x1xf32> to vector<16x128xf32>
    %89 = arith.mulf %86, %88 : vector<16x128xf32>
    %90 = arith.truncf %89 : vector<16x128xf32> to vector<16x128xbf16>
    %c16_32 = arith.constant 16 : index
    %c128_33 = arith.constant 128 : index
    %91 = vector.load %arg12[%c16_32, %c128_33] : memref<32x256xbf16, #tpu.memory_space<vmem>>, vector<16x128xbf16>
    tpu.vector_store %arg12[%c16_32, %c128_33], %90 {strides = array<i32>} : memref<32x256xbf16, #tpu.memory_space<vmem>>, vector<16x128xbf16>,
    %c0_34 = arith.constant 0 : index
    %c0_35 = arith.constant 0 : index
    %92 = vector.load %arg12[%c0_34, %c0_35] : memref<32x256xbf16, #tpu.memory_space<vmem>>, vector<32x256xbf16>
    %c0_36 = arith.constant 0 : index
    %c0_37 = arith.constant 0 : index
    %93 = vector.load %arg7[%c0_36, %c0_37] : memref<256x128xbf16, #tpu.memory_space<vmem>>, vector<256x128xbf16>
    %cst_38 = arith.constant dense<0.000000e+00> : vector<32x128xf32>
    %94 = tpu.matmul %92, %93, %cst_38 {dimension_numbers = #tpu.dot_dimension_numbers<[1], [0], [0], [1], [0, 0, 1, 1], [], []>} : vector<32x256xbf16>, vector<256x128xbf16>, vector<32x128xf32> -> vector<32x128xf32>
    %c0_39 = arith.constant 0 : index
    %c0_40 = arith.constant 0 : index
    %95 = vector.load %arg8[%c0_39, %c0_40] : memref<1x128xf32, #tpu.memory_space<vmem>>, vector<1x128xf32>
    %96 = vector.broadcast %95 : vector<1x128xf32> to vector<32x128xf32>
    %97 = arith.addf %94, %96 : vector<32x128xf32>
    %cst_41 = arith.constant dense<0.000000e+00> : vector<32xf32>
    %98 = vector.multi_reduction <add>, %97, %cst_41 [1] : vector<32x128xf32> to vector<32xf32>
    %99 = vector.shape_cast %98 : vector<32xf32> to vector<32x1xf32>
    %cst_42 = arith.constant 1.280000e+02 : f32
    %100 = vector.broadcast %cst_42 : f32 to vector<32x1xf32>
    %101 = arith.divf %99, %100 : vector<32x1xf32>
    %102 = vector.broadcast %101 : vector<32x1xf32> to vector<32x128xf32>
    %103 = arith.subf %97, %102 : vector<32x128xf32>
    %104 = arith.mulf %103, %103 : vector<32x128xf32>
    %cst_43 = arith.constant dense<0.000000e+00> : vector<32xf32>
    %105 = vector.multi_reduction <add>, %104, %cst_43 [1] : vector<32x128xf32> to vector<32xf32>
    %106 = vector.shape_cast %105 : vector<32xf32> to vector<32x1xf32>
    %cst_44 = arith.constant 1.280000e+02 : f32
    %107 = vector.broadcast %cst_44 : f32 to vector<32x1xf32>
    %108 = arith.divf %106, %107 : vector<32x1xf32>
    %cst_45 = arith.constant 9.99999974E-6 : f32
    %109 = vector.broadcast %cst_45 : f32 to vector<32x1xf32>
    %110 = arith.addf %108, %109 : vector<32x1xf32>
    %111 = math.rsqrt %110 : vector<32x1xf32>
    %112 = vector.broadcast %111 : vector<32x1xf32> to vector<32x128xf32>
    %113 = arith.mulf %103, %112 : vector<32x128xf32>
    %c0_46 = arith.constant 0 : index
    %c0_47 = arith.constant 0 : index
    %114 = vector.load %arg9[%c0_46, %c0_47] : memref<1x128xf32, #tpu.memory_space<vmem>>, vector<1x128xf32>
    %115 = vector.broadcast %114 : vector<1x128xf32> to vector<32x128xf32>
    %116 = arith.mulf %113, %115 : vector<32x128xf32>
    %c0_48 = arith.constant 0 : index
    %c0_49 = arith.constant 0 : index
    %117 = vector.load %arg10[%c0_48, %c0_49] : memref<1x128xf32, #tpu.memory_space<vmem>>, vector<1x128xf32>
    %118 = vector.broadcast %117 : vector<1x128xf32> to vector<32x128xf32>
    %119 = arith.addf %116, %118 : vector<32x128xf32>
    %c0_50 = arith.constant 0 : index
    %c0_51 = arith.constant 0 : index
    %120 = vector.load %arg11[%c0_50, %c0_51] : memref<32x128xf32, #tpu.memory_space<vmem>>, vector<32x128xf32>
    tpu.vector_store %arg11[%c0_50, %c0_51], %119 {strides = array<i32>} : memref<32x128xf32, #tpu.memory_space<vmem>>, vector<32x128xf32>,
    return
  }
  func.func @transform_0(%arg0: i32) -> (i32, i32) {
    %c0_i32 = arith.constant 0 : i32
    %c0_i32_0 = arith.constant 0 : i32
    return %arg0, %c0_i32 : i32, i32
  }
  func.func @transform_1(%arg0: i32) -> (i32, i32) {
    %c0_i32 = arith.constant 0 : i32
    %c0_i32_0 = arith.constant 0 : i32
    return %arg0, %c0_i32 : i32, i32
  }
  func.func @transform_2(%arg0: i32) -> (i32, i32) {
    %c0_i32 = arith.constant 0 : i32
    %c0_i32_0 = arith.constant 0 : i32
    %c0_i32_1 = arith.constant 0 : i32
    return %c0_i32, %c0_i32_0 : i32, i32
  }
  func.func @transform_3(%arg0: i32) -> (i32, i32) {
    %c0_i32 = arith.constant 0 : i32
    %c0_i32_0 = arith.constant 0 : i32
    %c0_i32_1 = arith.constant 0 : i32
    return %c0_i32, %c0_i32_0 : i32, i32
  }
  func.func @transform_4(%arg0: i32) -> (i32, i32) {
    %c0_i32 = arith.constant 0 : i32
    %c0_i32_0 = arith.constant 0 : i32
    %c0_i32_1 = arith.constant 0 : i32
    return %c0_i32, %c0_i32_0 : i32, i32
  }
  func.func @transform_5(%arg0: i32) -> (i32, i32) {
    %c0_i32 = arith.constant 0 : i32
    %c0_i32_0 = arith.constant 0 : i32
    %c0_i32_1 = arith.constant 0 : i32
    return %c0_i32, %c0_i32_0 : i32, i32
  }
  func.func @transform_6(%arg0: i32) -> (i32, i32) {
    %c0_i32 = arith.constant 0 : i32
    %c0_i32_0 = arith.constant 0 : i32
    %c0_i32_1 = arith.constant 0 : i32
    return %c0_i32, %c0_i32_0 : i32, i32
  }
  func.func @transform_7(%arg0: i32) -> (i32, i32) {
    %c0_i32 = arith.constant 0 : i32
    %c0_i32_0 = arith.constant 0 : i32
    %c0_i32_1 = arith.constant 0 : i32
    return %c0_i32, %c0_i32_0 : i32, i32
  }
  func.func @transform_8(%arg0: i32) -> (i32, i32) {
    %c0_i32 = arith.constant 0 : i32
    %c0_i32_0 = arith.constant 0 : i32
    %c0_i32_1 = arith.constant 0 : i32
    return %c0_i32, %c0_i32_0 : i32, i32
  }
  func.func @transform_9(%arg0: i32) -> (i32, i32) {
    %c0_i32 = arith.constant 0 : i32
    %c0_i32_0 = arith.constant 0 : i32
    %c0_i32_1 = arith.constant 0 : i32
    return %c0_i32, %c0_i32_0 : i32, i32
  }
  func.func @transform_10(%arg0: i32) -> (i32, i32) {
    %c0_i32 = arith.constant 0 : i32
    %c0_i32_0 = arith.constant 0 : i32
    return %arg0, %c0_i32 : i32, i32
  }
}

module attributes {stable_mosaic.version = 11 : i64} {
  func.func @_cross_attn_kernel(%arg0: i32, %arg1: memref<32x128xf32, #tpu.memory_space<vmem>>, %arg2: memref<48x256xf32, #tpu.memory_space<vmem>>, %arg3: memref<128x256xbf16, #tpu.memory_space<vmem>>, %arg4: memref<1x256xf32, #tpu.memory_space<vmem>>, %arg5: memref<256x512xbf16, #tpu.memory_space<vmem>>, %arg6: memref<1x512xf32, #tpu.memory_space<vmem>>, %arg7: memref<256x128xbf16, #tpu.memory_space<vmem>>, %arg8: memref<1x128xf32, #tpu.memory_space<vmem>>, %arg9: memref<1x128xf32, #tpu.memory_space<vmem>>, %arg10: memref<1x128xf32, #tpu.memory_space<vmem>>, %arg11: memref<32x128xf32, #tpu.memory_space<vmem>>, %arg12: memref<32x256xbf16, #tpu.memory_space<vmem>>) attributes {dimension_semantics = [#tpu.dimension_semantics<parallel>], iteration_bounds = array<i64: 2>, scalar_prefetch = 0 : i64, scratch_operands = 1 : i64, tpu.core_type = #tpu.core_type<tc>, window_params = [{transform_indices = @transform_0, window_bounds = array<i64: 32, 128>}, {transform_indices = @transform_1, window_bounds = array<i64: 48, 256>}, {pipeline_mode = #tpu.pipeline_mode<synchronous>, transform_indices = @transform_2, window_bounds = array<i64: 128, 256>}, {pipeline_mode = #tpu.pipeline_mode<synchronous>, transform_indices = @transform_3, window_bounds = array<i64: 1, 256>}, {pipeline_mode = #tpu.pipeline_mode<synchronous>, transform_indices = @transform_4, window_bounds = array<i64: 256, 512>}, {pipeline_mode = #tpu.pipeline_mode<synchronous>, transform_indices = @transform_5, window_bounds = array<i64: 1, 512>}, {pipeline_mode = #tpu.pipeline_mode<synchronous>, transform_indices = @transform_6, window_bounds = array<i64: 256, 128>}, {pipeline_mode = #tpu.pipeline_mode<synchronous>, transform_indices = @transform_7, window_bounds = array<i64: 1, 128>}, {pipeline_mode = #tpu.pipeline_mode<synchronous>, transform_indices = @transform_8, window_bounds = array<i64: 1, 128>}, {pipeline_mode = #tpu.pipeline_mode<synchronous>, transform_indices = @transform_9, window_bounds = array<i64: 1, 128>}, {transform_indices = @transform_10, window_bounds = array<i64: 32, 128>}]} {
    %c0 = arith.constant 0 : index
    %c0_0 = arith.constant 0 : index
    %0 = vector.load %arg1[%c0, %c0_0] : memref<32x128xf32, #tpu.memory_space<vmem>>, vector<32x128xf32>
    %c0_1 = arith.constant 0 : index
    %c0_2 = arith.constant 0 : index
    %1 = vector.load %arg2[%c0_1, %c0_2] : memref<48x256xf32, #tpu.memory_space<vmem>>, vector<48x256xf32>
    %2 = arith.truncf %0 : vector<32x128xf32> to vector<32x128xbf16>
    %c0_3 = arith.constant 0 : index
    %c0_4 = arith.constant 0 : index
    %3 = vector.load %arg3[%c0_3, %c0_4] : memref<128x256xbf16, #tpu.memory_space<vmem>>, vector<128x256xbf16>
    %cst = arith.constant dense<0.000000e+00> : vector<32x256xf32>
    %4 = tpu.matmul %2, %3, %cst {dimension_numbers = #tpu.dot_dimension_numbers<[1], [0], [0], [1], [0, 0, 1, 1], [], []>} : vector<32x128xbf16>, vector<128x256xbf16>, vector<32x256xf32> -> vector<32x256xf32>
    %c0_5 = arith.constant 0 : index
    %c0_6 = arith.constant 0 : index
    %5 = vector.load %arg4[%c0_5, %c0_6] : memref<1x256xf32, #tpu.memory_space<vmem>>, vector<1x256xf32>
    %6 = vector.broadcast %5 : vector<1x256xf32> to vector<32x256xf32>
    %7 = arith.addf %4, %6 : vector<32x256xf32>
    %8 = arith.truncf %7 : vector<32x256xf32> to vector<32x256xbf16>
    %9 = arith.truncf %1 : vector<48x256xf32> to vector<48x256xbf16>
    %c0_7 = arith.constant 0 : index
    %c0_8 = arith.constant 0 : index
    %10 = vector.load %arg5[%c0_7, %c0_8] : memref<256x512xbf16, #tpu.memory_space<vmem>>, vector<256x512xbf16>
    %cst_9 = arith.constant dense<0.000000e+00> : vector<48x512xf32>
    %11 = tpu.matmul %9, %10, %cst_9 {dimension_numbers = #tpu.dot_dimension_numbers<[1], [0], [0], [1], [0, 0, 1, 1], [], []>} : vector<48x256xbf16>, vector<256x512xbf16>, vector<48x512xf32> -> vector<48x512xf32>
    %c0_10 = arith.constant 0 : index
    %c0_11 = arith.constant 0 : index
    %12 = vector.load %arg6[%c0_10, %c0_11] : memref<1x512xf32, #tpu.memory_space<vmem>>, vector<1x512xf32>
    %13 = vector.broadcast %12 : vector<1x512xf32> to vector<48x512xf32>
    %14 = arith.addf %11, %13 : vector<48x512xf32>
    %15 = arith.truncf %14 : vector<48x512xf32> to vector<48x512xbf16>
    %16 = vector.extract_strided_slice %8 {offsets = [0, 0], sizes = [16, 256], strides = [1, 1]} : vector<32x256xbf16> to vector<16x256xbf16>
    %17 = vector.extract_strided_slice %15 {offsets = [0, 0], sizes = [24, 512], strides = [1, 1]} : vector<48x512xbf16> to vector<24x512xbf16>
    %18 = vector.extract_strided_slice %16 {offsets = [0, 0], sizes = [16, 128], strides = [1, 1]} : vector<16x256xbf16> to vector<16x128xbf16>
    %19 = vector.extract_strided_slice %17 {offsets = [0, 0], sizes = [24, 128], strides = [1, 1]} : vector<24x512xbf16> to vector<24x128xbf16>
    %20 = vector.extract_strided_slice %17 {offsets = [0, 256], sizes = [24, 128], strides = [1, 1]} : vector<24x512xbf16> to vector<24x128xbf16>
    %cst_12 = arith.constant dense<0.000000e+00> : vector<16x24xf32>
    %21 = tpu.matmul %18, %19, %cst_12 {dimension_numbers = #tpu.dot_dimension_numbers<[1], [1], [0], [0], [0, 0, 1, 0], [], []>} : vector<16x128xbf16>, vector<24x128xbf16>, vector<16x24xf32> -> vector<16x24xf32>
    %cst_13 = arith.constant dense<0xFF800000> : vector<16xf32>
    %22 = vector.multi_reduction <maximumf>, %21, %cst_13 [1] : vector<16x24xf32> to vector<16xf32>
    %23 = vector.shape_cast %22 : vector<16xf32> to vector<16x1xf32>
    %24 = vector.broadcast %23 : vector<16x1xf32> to vector<16x24xf32>
    %25 = arith.subf %21, %24 : vector<16x24xf32>
    %26 = math.exp %25 : vector<16x24xf32>
    %cst_14 = arith.constant dense<0.000000e+00> : vector<16xf32>
    %27 = vector.multi_reduction <add>, %26, %cst_14 [1] : vector<16x24xf32> to vector<16xf32>
    %28 = vector.shape_cast %27 : vector<16xf32> to vector<16x1xf32>
    %29 = arith.truncf %26 : vector<16x24xf32> to vector<16x24xbf16>
    %cst_15 = arith.constant dense<0.000000e+00> : vector<16x128xf32>
    %30 = tpu.matmul %29, %20, %cst_15 {dimension_numbers = #tpu.dot_dimension_numbers<[1], [0], [0], [1], [0, 0, 1, 1], [], []>} : vector<16x24xbf16>, vector<24x128xbf16>, vector<16x128xf32> -> vector<16x128xf32>
    %31 = tpu.reciprocal %28 {approx = true} : vector<16x1xf32> -> vector<16x1xf32>
    %32 = vector.broadcast %31 : vector<16x1xf32> to vector<16x128xf32>
    %33 = arith.mulf %30, %32 : vector<16x128xf32>
    %34 = arith.truncf %33 : vector<16x128xf32> to vector<16x128xbf16>
    %c0_16 = arith.constant 0 : index
    %c0_17 = arith.constant 0 : index
    %35 = vector.load %arg12[%c0_16, %c0_17] : memref<32x256xbf16, #tpu.memory_space<vmem>>, vector<16x128xbf16>
    tpu.vector_store %arg12[%c0_16, %c0_17], %34 {strides = array<i32>} : memref<32x256xbf16, #tpu.memory_space<vmem>>, vector<16x128xbf16>,
    %36 = vector.extract_strided_slice %16 {offsets = [0, 128], sizes = [16, 128], strides = [1, 1]} : vector<16x256xbf16> to vector<16x128xbf16>
    %37 = vector.extract_strided_slice %17 {offsets = [0, 128], sizes = [24, 128], strides = [1, 1]} : vector<24x512xbf16> to vector<24x128xbf16>
    %38 = vector.extract_strided_slice %17 {offsets = [0, 384], sizes = [24, 128], strides = [1, 1]} : vector<24x512xbf16> to vector<24x128xbf16>
    %cst_18 = arith.constant dense<0.000000e+00> : vector<16x24xf32>
    %39 = tpu.matmul %36, %37, %cst_18 {dimension_numbers = #tpu.dot_dimension_numbers<[1], [1], [0], [0], [0, 0, 1, 0], [], []>} : vector<16x128xbf16>, vector<24x128xbf16>, vector<16x24xf32> -> vector<16x24xf32>
    %cst_19 = arith.constant dense<0xFF800000> : vector<16xf32>
    %40 = vector.multi_reduction <maximumf>, %39, %cst_19 [1] : vector<16x24xf32> to vector<16xf32>
    %41 = vector.shape_cast %40 : vector<16xf32> to vector<16x1xf32>
    %42 = vector.broadcast %41 : vector<16x1xf32> to vector<16x24xf32>
    %43 = arith.subf %39, %42 : vector<16x24xf32>
    %44 = math.exp %43 : vector<16x24xf32>
    %cst_20 = arith.constant dense<0.000000e+00> : vector<16xf32>
    %45 = vector.multi_reduction <add>, %44, %cst_20 [1] : vector<16x24xf32> to vector<16xf32>
    %46 = vector.shape_cast %45 : vector<16xf32> to vector<16x1xf32>
    %47 = arith.truncf %44 : vector<16x24xf32> to vector<16x24xbf16>
    %cst_21 = arith.constant dense<0.000000e+00> : vector<16x128xf32>
    %48 = tpu.matmul %47, %38, %cst_21 {dimension_numbers = #tpu.dot_dimension_numbers<[1], [0], [0], [1], [0, 0, 1, 1], [], []>} : vector<16x24xbf16>, vector<24x128xbf16>, vector<16x128xf32> -> vector<16x128xf32>
    %49 = tpu.reciprocal %46 {approx = true} : vector<16x1xf32> -> vector<16x1xf32>
    %50 = vector.broadcast %49 : vector<16x1xf32> to vector<16x128xf32>
    %51 = arith.mulf %48, %50 : vector<16x128xf32>
    %52 = arith.truncf %51 : vector<16x128xf32> to vector<16x128xbf16>
    %c0_22 = arith.constant 0 : index
    %c128 = arith.constant 128 : index
    %53 = vector.load %arg12[%c0_22, %c128] : memref<32x256xbf16, #tpu.memory_space<vmem>>, vector<16x128xbf16>
    tpu.vector_store %arg12[%c0_22, %c128], %52 {strides = array<i32>} : memref<32x256xbf16, #tpu.memory_space<vmem>>, vector<16x128xbf16>,
    %54 = vector.extract_strided_slice %8 {offsets = [16, 0], sizes = [16, 256], strides = [1, 1]} : vector<32x256xbf16> to vector<16x256xbf16>
    %55 = vector.extract_strided_slice %15 {offsets = [24, 0], sizes = [24, 512], strides = [1, 1]} : vector<48x512xbf16> to vector<24x512xbf16>
    %56 = vector.extract_strided_slice %54 {offsets = [0, 0], sizes = [16, 128], strides = [1, 1]} : vector<16x256xbf16> to vector<16x128xbf16>
    %57 = vector.extract_strided_slice %55 {offsets = [0, 0], sizes = [24, 128], strides = [1, 1]} : vector<24x512xbf16> to vector<24x128xbf16>
    %58 = vector.extract_strided_slice %55 {offsets = [0, 256], sizes = [24, 128], strides = [1, 1]} : vector<24x512xbf16> to vector<24x128xbf16>
    %cst_23 = arith.constant dense<0.000000e+00> : vector<16x24xf32>
    %59 = tpu.matmul %56, %57, %cst_23 {dimension_numbers = #tpu.dot_dimension_numbers<[1], [1], [0], [0], [0, 0, 1, 0], [], []>} : vector<16x128xbf16>, vector<24x128xbf16>, vector<16x24xf32> -> vector<16x24xf32>
    %cst_24 = arith.constant dense<0xFF800000> : vector<16xf32>
    %60 = vector.multi_reduction <maximumf>, %59, %cst_24 [1] : vector<16x24xf32> to vector<16xf32>
    %61 = vector.shape_cast %60 : vector<16xf32> to vector<16x1xf32>
    %62 = vector.broadcast %61 : vector<16x1xf32> to vector<16x24xf32>
    %63 = arith.subf %59, %62 : vector<16x24xf32>
    %64 = math.exp %63 : vector<16x24xf32>
    %cst_25 = arith.constant dense<0.000000e+00> : vector<16xf32>
    %65 = vector.multi_reduction <add>, %64, %cst_25 [1] : vector<16x24xf32> to vector<16xf32>
    %66 = vector.shape_cast %65 : vector<16xf32> to vector<16x1xf32>
    %67 = arith.truncf %64 : vector<16x24xf32> to vector<16x24xbf16>
    %cst_26 = arith.constant dense<0.000000e+00> : vector<16x128xf32>
    %68 = tpu.matmul %67, %58, %cst_26 {dimension_numbers = #tpu.dot_dimension_numbers<[1], [0], [0], [1], [0, 0, 1, 1], [], []>} : vector<16x24xbf16>, vector<24x128xbf16>, vector<16x128xf32> -> vector<16x128xf32>
    %69 = tpu.reciprocal %66 {approx = true} : vector<16x1xf32> -> vector<16x1xf32>
    %70 = vector.broadcast %69 : vector<16x1xf32> to vector<16x128xf32>
    %71 = arith.mulf %68, %70 : vector<16x128xf32>
    %72 = arith.truncf %71 : vector<16x128xf32> to vector<16x128xbf16>
    %c16 = arith.constant 16 : index
    %c0_27 = arith.constant 0 : index
    %73 = vector.load %arg12[%c16, %c0_27] : memref<32x256xbf16, #tpu.memory_space<vmem>>, vector<16x128xbf16>
    tpu.vector_store %arg12[%c16, %c0_27], %72 {strides = array<i32>} : memref<32x256xbf16, #tpu.memory_space<vmem>>, vector<16x128xbf16>,
    %74 = vector.extract_strided_slice %54 {offsets = [0, 128], sizes = [16, 128], strides = [1, 1]} : vector<16x256xbf16> to vector<16x128xbf16>
    %75 = vector.extract_strided_slice %55 {offsets = [0, 128], sizes = [24, 128], strides = [1, 1]} : vector<24x512xbf16> to vector<24x128xbf16>
    %76 = vector.extract_strided_slice %55 {offsets = [0, 384], sizes = [24, 128], strides = [1, 1]} : vector<24x512xbf16> to vector<24x128xbf16>
    %cst_28 = arith.constant dense<0.000000e+00> : vector<16x24xf32>
    %77 = tpu.matmul %74, %75, %cst_28 {dimension_numbers = #tpu.dot_dimension_numbers<[1], [1], [0], [0], [0, 0, 1, 0], [], []>} : vector<16x128xbf16>, vector<24x128xbf16>, vector<16x24xf32> -> vector<16x24xf32>
    %cst_29 = arith.constant dense<0xFF800000> : vector<16xf32>
    %78 = vector.multi_reduction <maximumf>, %77, %cst_29 [1] : vector<16x24xf32> to vector<16xf32>
    %79 = vector.shape_cast %78 : vector<16xf32> to vector<16x1xf32>
    %80 = vector.broadcast %79 : vector<16x1xf32> to vector<16x24xf32>
    %81 = arith.subf %77, %80 : vector<16x24xf32>
    %82 = math.exp %81 : vector<16x24xf32>
    %cst_30 = arith.constant dense<0.000000e+00> : vector<16xf32>
    %83 = vector.multi_reduction <add>, %82, %cst_30 [1] : vector<16x24xf32> to vector<16xf32>
    %84 = vector.shape_cast %83 : vector<16xf32> to vector<16x1xf32>
    %85 = arith.truncf %82 : vector<16x24xf32> to vector<16x24xbf16>
    %cst_31 = arith.constant dense<0.000000e+00> : vector<16x128xf32>
    %86 = tpu.matmul %85, %76, %cst_31 {dimension_numbers = #tpu.dot_dimension_numbers<[1], [0], [0], [1], [0, 0, 1, 1], [], []>} : vector<16x24xbf16>, vector<24x128xbf16>, vector<16x128xf32> -> vector<16x128xf32>
    %87 = tpu.reciprocal %84 {approx = true} : vector<16x1xf32> -> vector<16x1xf32>
    %88 = vector.broadcast %87 : vector<16x1xf32> to vector<16x128xf32>
    %89 = arith.mulf %86, %88 : vector<16x128xf32>
    %90 = arith.truncf %89 : vector<16x128xf32> to vector<16x128xbf16>
    %c16_32 = arith.constant 16 : index
    %c128_33 = arith.constant 128 : index
    %91 = vector.load %arg12[%c16_32, %c128_33] : memref<32x256xbf16, #tpu.memory_space<vmem>>, vector<16x128xbf16>
    tpu.vector_store %arg12[%c16_32, %c128_33], %90 {strides = array<i32>} : memref<32x256xbf16, #tpu.memory_space<vmem>>, vector<16x128xbf16>,
    %c0_34 = arith.constant 0 : index
    %c0_35 = arith.constant 0 : index
    %92 = vector.load %arg12[%c0_34, %c0_35] : memref<32x256xbf16, #tpu.memory_space<vmem>>, vector<32x256xbf16>
    %c0_36 = arith.constant 0 : index
    %c0_37 = arith.constant 0 : index
    %93 = vector.load %arg7[%c0_36, %c0_37] : memref<256x128xbf16, #tpu.memory_space<vmem>>, vector<256x128xbf16>
    %cst_38 = arith.constant dense<0.000000e+00> : vector<32x128xf32>
    %94 = tpu.matmul %92, %93, %cst_38 {dimension_numbers = #tpu.dot_dimension_numbers<[1], [0], [0], [1], [0, 0, 1, 1], [], []>} : vector<32x256xbf16>, vector<256x128xbf16>, vector<32x128xf32> -> vector<32x128xf32>
    %c0_39 = arith.constant 0 : index
    %c0_40 = arith.constant 0 : index
    %95 = vector.load %arg8[%c0_39, %c0_40] : memref<1x128xf32, #tpu.memory_space<vmem>>, vector<1x128xf32>
    %96 = vector.broadcast %95 : vector<1x128xf32> to vector<32x128xf32>
    %97 = arith.addf %94, %96 : vector<32x128xf32>
    %cst_41 = arith.constant dense<0.000000e+00> : vector<32xf32>
    %98 = vector.multi_reduction <add>, %97, %cst_41 [1] : vector<32x128xf32> to vector<32xf32>
    %99 = vector.shape_cast %98 : vector<32xf32> to vector<32x1xf32>
    %cst_42 = arith.constant 1.280000e+02 : f32
    %100 = vector.broadcast %cst_42 : f32 to vector<32x1xf32>
    %101 = arith.divf %99, %100 : vector<32x1xf32>
    %102 = vector.broadcast %101 : vector<32x1xf32> to vector<32x128xf32>
    %103 = arith.subf %97, %102 : vector<32x128xf32>
    %104 = arith.mulf %103, %103 : vector<32x128xf32>
    %cst_43 = arith.constant dense<0.000000e+00> : vector<32xf32>
    %105 = vector.multi_reduction <add>, %104, %cst_43 [1] : vector<32x128xf32> to vector<32xf32>
    %106 = vector.shape_cast %105 : vector<32xf32> to vector<32x1xf32>
    %cst_44 = arith.constant 1.280000e+02 : f32
    %107 = vector.broadcast %cst_44 : f32 to vector<32x1xf32>
    %108 = arith.divf %106, %107 : vector<32x1xf32>
    %cst_45 = arith.constant 9.99999974E-6 : f32
    %109 = vector.broadcast %cst_45 : f32 to vector<32x1xf32>
    %110 = arith.addf %108, %109 : vector<32x1xf32>
    %111 = math.rsqrt %110 : vector<32x1xf32>
    %112 = vector.broadcast %111 : vector<32x1xf32> to vector<32x128xf32>
    %113 = arith.mulf %103, %112 : vector<32x128xf32>
    %c0_46 = arith.constant 0 : index
    %c0_47 = arith.constant 0 : index
    %114 = vector.load %arg9[%c0_46, %c0_47] : memref<1x128xf32, #tpu.memory_space<vmem>>, vector<1x128xf32>
    %115 = vector.broadcast %114 : vector<1x128xf32> to vector<32x128xf32>
    %116 = arith.mulf %113, %115 : vector<32x128xf32>
    %c0_48 = arith.constant 0 : index
    %c0_49 = arith.constant 0 : index
    %117 = vector.load %arg10[%c0_48, %c0_49] : memref<1x128xf32, #tpu.memory_space<vmem>>, vector<1x128xf32>
    %118 = vector.broadcast %117 : vector<1x128xf32> to vector<32x128xf32>
    %119 = arith.addf %116, %118 : vector<32x128xf32>
    %c0_50 = arith.constant 0 : index
    %c0_51 = arith.constant 0 : index
    %120 = vector.load %arg11[%c0_50, %c0_51] : memref<32x128xf32, #tpu.memory_space<vmem>>, vector<32x128xf32>
    tpu.vector_store %arg11[%c0_50, %c0_51], %119 {strides = array<i32>} : memref<32x128xf32, #tpu.memory_space<vmem>>, vector<32x128xf32>,
    return
  }
  func.func @transform_0(%arg0: i32) -> (i32, i32) {
    %c0_i32 = arith.constant 0 : i32
    %c0_i32_0 = arith.constant 0 : i32
    return %arg0, %c0_i32 : i32, i32
  }
  func.func @transform_1(%arg0: i32) -> (i32, i32) {
    %c0_i32 = arith.constant 0 : i32
    %c0_i32_0 = arith.constant 0 : i32
    return %arg0, %c0_i32 : i32, i32
  }
  func.func @transform_2(%arg0: i32) -> (i32, i32) {
    %c0_i32 = arith.constant 0 : i32
    %c0_i32_0 = arith.constant 0 : i32
    %c0_i32_1 = arith.constant 0 : i32
    return %c0_i32, %c0_i32_0 : i32, i32
  }
  func.func @transform_3(%arg0: i32) -> (i32, i32) {
    %c0_i32 = arith.constant 0 : i32
    %c0_i32_0 = arith.constant 0 : i32
    %c0_i32_1 = arith.constant 0 : i32
    return %c0_i32, %c0_i32_0 : i32, i32
  }
  func.func @transform_4(%arg0: i32) -> (i32, i32) {
    %c0_i32 = arith.constant 0 : i32
    %c0_i32_0 = arith.constant 0 : i32
    %c0_i32_1 = arith.constant 0 : i32
    return %c0_i32, %c0_i32_0 : i32, i32
  }
  func.func @transform_5(%arg0: i32) -> (i32, i32) {
    %c0_i32 = arith.constant 0 : i32
    %c0_i32_0 = arith.constant 0 : i32
    %c0_i32_1 = arith.constant 0 : i32
    return %c0_i32, %c0_i32_0 : i32, i32
  }
  func.func @transform_6(%arg0: i32) -> (i32, i32) {
    %c0_i32 = arith.constant 0 : i32
    %c0_i32_0 = arith.constant 0 : i32
    %c0_i32_1 = arith.constant 0 : i32
    return %c0_i32, %c0_i32_0 : i32, i32
  }
  func.func @transform_7(%arg0: i32) -> (i32, i32) {
    %c0_i32 = arith.constant 0 : i32
    %c0_i32_0 = arith.constant 0 : i32
    %c0_i32_1 = arith.constant 0 : i32
    return %c0_i32, %c0_i32_0 : i32, i32
  }
  func.func @transform_8(%arg0: i32) -> (i32, i32) {
    %c0_i32 = arith.constant 0 : i32
    %c0_i32_0 = arith.constant 0 : i32
    %c0_i32_1 = arith.constant 0 : i32
    return %c0_i32, %c0_i32_0 : i32, i32
  }
  func.func @transform_9(%arg0: i32) -> (i32, i32) {
    %c0_i32 = arith.constant 0 : i32
    %c0_i32_0 = arith.constant 0 : i32
    %c0_i32_1 = arith.constant 0 : i32
    return %c0_i32, %c0_i32_0 : i32, i32
  }
  func.func @transform_10(%arg0: i32) -> (i32, i32) {
    %c0_i32 = arith.constant 0 : i32
    %c0_i32_0 = arith.constant 0 : i32
    return %arg0, %c0_i32 : i32, i32
  }
}

</mosaic_0001>

<llo_original>
// kernel: tpu_custom_call.1
$region0: #{tpu_custom_call.1}
  #allocation0 [shape = 'u32[]', space=smem, size = 0x4, offset = 0x4, fixed_abs, tag = 'smem constant byte address 0x4 - core index']
  #allocation1 [shape = 'u32[144,128]{1,0:T(1,128)}', space=vmem, size = 0x12000, scoped, tag = 'internal scratch']
  #allocation2 [shape = 'bf16[32,256]{1,0:T(8,128)(2,1)}', space=vmem, size = 0x4000, scoped, tag = 'scratch operand']
  %s0 = inlined_call_operand.hbm [shape: f32[64,128], index: 0, kind: input, shape index: {}]
  %s1 = inlined_call_operand.hbm [shape: f32[96,256], index: 1, kind: input, shape index: {}]
  %s2 = inlined_call_operand.hbm [shape: bf16[128,256], index: 2, kind: input, shape index: {}]
  %s3 = inlined_call_operand.vmem [shape: f32[1,256], index: 3, kind: input, shape index: {}]
  %s4 = inlined_call_operand.hbm [shape: bf16[256,512], index: 4, kind: input, shape index: {}]
  %s5 = inlined_call_operand.vmem [shape: f32[1,512], index: 5, kind: input, shape index: {}]
  %s6 = inlined_call_operand.hbm [shape: bf16[256,128], index: 6, kind: input, shape index: {}]
  %s7 = inlined_call_operand.vmem [shape: f32[1,128], index: 7, kind: input, shape index: {}]
  %s8 = inlined_call_operand.vmem [shape: f32[1,128], index: 8, kind: input, shape index: {}]
  %s9 = inlined_call_operand.vmem [shape: f32[1,128], index: 9, kind: input, shape index: {}]
  %s10 = inlined_call_operand.hbm [shape: f32[64,128], index: 10, kind: output, shape index: {}]
  %s11 = sld [smem:[#allocation0]]
  $region93: #{tpu_custom_call.1} parent=0
    _
  %s13 = ssub.s32 1, %s11
  %s14 = scalar_select 0, %s13, %s11
  $region1: #{tpu_custom_call.1} parent=0
    #allocation3 [shape = 'u8[32768]{0}', space=vmem, size = 0x8000, scoped, tag = 'input window, operand 0']
    #allocation4 [shape = 's32[2]{0}', space=sflag, size = 0x8, scoped, tag = 'scoped memory for tpu_custom_call.1']
    #allocation5 [shape = 's32[2]{0}', space=sflag, size = 0x8, scoped, tag = 'scoped memory for tpu_custom_call.1']
    #allocation6 [shape = 'u8[98304]{0}', space=vmem, size = 0x18000, scoped, tag = 'input window, operand 1']
    #allocation7 [shape = 's32[2]{0}', space=sflag, size = 0x8, scoped, tag = 'scoped memory for tpu_custom_call.1']
    #allocation8 [shape = 'u8[65536]{0}', space=vmem, size = 0x10000, scoped, tag = 'input window, operand 2, single buffered']
    #allocation9 [shape = 'u8[262144]{0}', space=vmem, size = 0x40000, scoped, tag = 'input window, operand 4, single buffered']
    #allocation10 [shape = 's32[1]{0}', space=sflag, size = 0x4, scoped, tag = 'scoped memory for tpu_custom_call.1']
    #allocation11 [shape = 'u8[65536]{0}', space=vmem, size = 0x10000, scoped, tag = 'input window, operand 6, single buffered']
    #allocation12 [shape = 'u8[32768]{0}', space=vmem, size = 0x8000, scoped, tag = 'output window, operand 0']
    %15 = vsyncpa [#allocation4], 0
    %s16 = scalar_lea.sflag [#allocation4], 1
    %17 = vsyncpa %s16, 0
    %18 = vsyncpa [#allocation7], 0
    %s19 = scalar_lea.sflag [#allocation7], 1
    %20 = vsyncpa %s19, 0
    %21 = vsyncpa [#allocation10], 0
    %22 = vsyncpa [#allocation5], 0
    %s23 = scalar_lea.sflag [#allocation5], 1
    %24 = vsyncpa %s23, 0
    loop: start=0, step=1, limit=4
    $region2: #{tpu_custom_call.1} parent=1 // loop_pre_header
      _
    $region3: #{tpu_custom_call.1} parent=1 // loop_header
      %s26 = sphi 0, %s30
      %p27 = scmp.ge.s32.totalorder %s26, 4
      %s36 = sphi 0, %s38
      %s39 = sphi 0, %s36
      %s40 = sphi 0, %s39
      %s56 = sphi 0, %s40
      %s62 = sphi 0, %s64
      %s65 = sphi 0, %s62
      %s66 = sphi 0, %s65
      %s82 = sphi 0, %s66
      %s86 = sphi 0, %s86
      %s88 = sphi 0, %s86
      %s89 = sphi 0, %s88
      %s103 = sphi 0, %s89
      %s107 = sphi 0, %s107
      %s109 = sphi 0, %s107
      %s110 = sphi 0, %s109
      %s124 = sphi 0, %s110
      %s128 = sphi 0, %s128
      %s130 = sphi 0, %s128
      %s131 = sphi 0, %s130
      %s145 = sphi 0, %s131
      %s149 = sphi 0, %s149
      %s151 = sphi 0, %s149
      %s152 = sphi 0, %s151
      %s166 = sphi 0, %s152
      %s170 = sphi 0, %s170
      %s172 = sphi 0, %s170
      %s173 = sphi 0, %s172
      %s187 = sphi 0, %s173
      %s191 = sphi 0, %s191
      %s193 = sphi 0, %s191
      %s194 = sphi 0, %s193
      %s208 = sphi 0, %s194
      %s212 = sphi 0, %s212
      %s214 = sphi 0, %s212
      %s215 = sphi 0, %s214
      %s229 = sphi 0, %s215
      %s233 = sphi 0, %s233
      %s235 = sphi 0, %s233
      %s236 = sphi 0, %s235
      %s250 = sphi 0, %s236
      %s256 = sphi 0, %s258
      %s259 = sphi 0, %s256
      %s260 = sphi 0, %s259
      %s276 = sphi 0, %s260
    $region4: #{tpu_custom_call.1} parent=1 // loop_header_branch
      %29 = sbr.rel (%p27) target = $region8
    $region5: #{tpu_custom_call.1} parent=1 // loop_body
      %s31 = ssub.s32 %s26, 1
      %s32 = ssub.s32 %s26, 2
      %s33 = sadd.s32 %s26, 1
      %s34 = ssub.s32 %s26, %s33
      %p35 = scmp.eq.s32.totalorder %s34, 0
      %s37 = sadd.s32 %s36, 1
      %s38 = scalar_select %p35, %s36, %s37
      %p41 = pneg %p35
      %p42 = scmp.eq.s32.totalorder %s26, 1
      %p43 = por %p41, %p42
      %p44 = scmp.ne.s32.totalorder %s36, %s39
      %p45 = scmp.eq.s32.totalorder %s26, 0
      %p46 = por %p44, %p45
      %p47 = scmp.ne.s32.totalorder %s36, %s39
      %p48 = scmp.eq.s32.totalorder %s31, 1
      %p49 = por %p47, %p48
      %p50 = scmp.ne.s32.totalorder %s39, %s40
      %p51 = scmp.eq.s32.totalorder %s31, 0
      %p52 = por %p50, %p51
      %p53 = scmp.ne.s32.totalorder %s39, %s40
      %p54 = scmp.eq.s32.totalorder %s32, 1
      %p55 = por %p53, %p54
      %p57 = scmp.ne.s32.totalorder %s40, %s56
      %p58 = scmp.eq.s32.totalorder %s32, 0
      %p59 = por %p57, %p58
      %s60 = ssub.s32 %s26, %s33
      %p61 = scmp.eq.s32.totalorder %s60, 0
      %s63 = sadd.s32 %s62, 1
      %s64 = scalar_select %p61, %s62, %s63
      %p67 = pneg %p61
      %p68 = scmp.eq.s32.totalorder %s26, 1
      %p69 = por %p67, %p68
      %p70 = scmp.ne.s32.totalorder %s62, %s65
      %p71 = scmp.eq.s32.totalorder %s26, 0
      %p72 = por %p70, %p71
      %p73 = scmp.ne.s32.totalorder %s62, %s65
      %p74 = scmp.eq.s32.totalorder %s31, 1
      %p75 = por %p73, %p74
      %p76 = scmp.ne.s32.totalorder %s65, %s66
      %p77 = scmp.eq.s32.totalorder %s31, 0
      %p78 = por %p76, %p77
      %p79 = scmp.ne.s32.totalorder %s65, %s66
      %p80 = scmp.eq.s32.totalorder %s32, 1
      %p81 = por %p79, %p80
      %p83 = scmp.ne.s32.totalorder %s66, %s82
      %p84 = scmp.eq.s32.totalorder %s32, 0
      %p85 = por %p83, %p84
      %s87 = sadd.s32 %s86, 1
      %p90 = scmp.eq.s32.totalorder %s26, 1
      %p91 = scmp.ne.s32.totalorder %s86, %s88
      %p92 = scmp.eq.s32.totalorder %s26, 0
      %p93 = por %p91, %p92
      %p94 = scmp.ne.s32.totalorder %s86, %s88
      %p95 = scmp.eq.s32.totalorder %s31, 1
      %p96 = por %p94, %p95
      %p97 = scmp.ne.s32.totalorder %s88, %s89
      %p98 = scmp.eq.s32.totalorder %s31, 0
      %p99 = por %p97, %p98
      %p100 = scmp.ne.s32.totalorder %s88, %s89
      %p101 = scmp.eq.s32.totalorder %s32, 1
      %p102 = por %p100, %p101
      %p104 = scmp.ne.s32.totalorder %s89, %s103
      %p105 = scmp.eq.s32.totalorder %s32, 0
      %p106 = por %p104, %p105
      %s108 = sadd.s32 %s107, 1
      %p111 = scmp.eq.s32.totalorder %s26, 1
      %p112 = scmp.ne.s32.totalorder %s107, %s109
      %p113 = scmp.eq.s32.totalorder %s26, 0
      %p114 = por %p112, %p113
      %p115 = scmp.ne.s32.totalorder %s107, %s109
      %p116 = scmp.eq.s32.totalorder %s31, 1
      %p117 = por %p115, %p116
      %p118 = scmp.ne.s32.totalorder %s109, %s110
      %p119 = scmp.eq.s32.totalorder %s31, 0
      %p120 = por %p118, %p119
      %p121 = scmp.ne.s32.totalorder %s109, %s110
      %p122 = scmp.eq.s32.totalorder %s32, 1
      %p123 = por %p121, %p122
      %p125 = scmp.ne.s32.totalorder %s110, %s124
      %p126 = scmp.eq.s32.totalorder %s32, 0
      %p127 = por %p125, %p126
      %s129 = sadd.s32 %s128, 1
      %p132 = scmp.eq.s32.totalorder %s26, 1
      %p133 = scmp.ne.s32.totalorder %s128, %s130
      %p134 = scmp.eq.s32.totalorder %s26, 0
      %p135 = por %p133, %p134
      %p136 = scmp.ne.s32.totalorder %s128, %s130
      %p137 = scmp.eq.s32.totalorder %s31, 1
      %p138 = por %p136, %p137
      %p139 = scmp.ne.s32.totalorder %s130, %s131
      %p140 = scmp.eq.s32.totalorder %s31, 0
      %p141 = por %p139, %p140
      %p142 = scmp.ne.s32.totalorder %s130, %s131
      %p143 = scmp.eq.s32.totalorder %s32, 1
      %p144 = por %p142, %p143
      %p146 = scmp.ne.s32.totalorder %s131, %s145
      %p147 = scmp.eq.s32.totalorder %s32, 0
      %p148 = por %p146, %p147
      %s150 = sadd.s32 %s149, 1
      %p153 = scmp.eq.s32.totalorder %s26, 1
      %p154 = scmp.ne.s32.totalorder %s149, %s151
      %p155 = scmp.eq.s32.totalorder %s26, 0
      %p156 = por %p154, %p155
      %p157 = scmp.ne.s32.totalorder %s149, %s151
      %p158 = scmp.eq.s32.totalorder %s31, 1
      %p159 = por %p157, %p158
      %p160 = scmp.ne.s32.totalorder %s151, %s152
      %p161 = scmp.eq.s32.totalorder %s31, 0
      %p162 = por %p160, %p161
      %p163 = scmp.ne.s32.totalorder %s151, %s152
      %p164 = scmp.eq.s32.totalorder %s32, 1
      %p165 = por %p163, %p164
      %p167 = scmp.ne.s32.totalorder %s152, %s166
      %p168 = scmp.eq.s32.totalorder %s32, 0
      %p169 = por %p167, %p168
      %s171 = sadd.s32 %s170, 1
      %p174 = scmp.eq.s32.totalorder %s26, 1
      %p175 = scmp.ne.s32.totalorder %s170, %s172
      %p176 = scmp.eq.s32.totalorder %s26, 0
      %p177 = por %p175, %p176
      %p178 = scmp.ne.s32.totalorder %s170, %s172
      %p179 = scmp.eq.s32.totalorder %s31, 1
      %p180 = por %p178, %p179
      %p181 = scmp.ne.s32.totalorder %s172, %s173
      %p182 = scmp.eq.s32.totalorder %s31, 0
      %p183 = por %p181, %p182
      %p184 = scmp.ne.s32.totalorder %s172, %s173
      %p185 = scmp.eq.s32.totalorder %s32, 1
      %p186 = por %p184, %p185
      %p188 = scmp.ne.s32.totalorder %s173, %s187
      %p189 = scmp.eq.s32.totalorder %s32, 0
      %p190 = por %p188, %p189
      %s192 = sadd.s32 %s191, 1
      %p195 = scmp.eq.s32.totalorder %s26, 1
      %p196 = scmp.ne.s32.totalorder %s191, %s193
      %p197 = scmp.eq.s32.totalorder %s26, 0
      %p198 = por %p196, %p197
      %p199 = scmp.ne.s32.totalorder %s191, %s193
      %p200 = scmp.eq.s32.totalorder %s31, 1
      %p201 = por %p199, %p200
      %p202 = scmp.ne.s32.totalorder %s193, %s194
      %p203 = scmp.eq.s32.totalorder %s31, 0
      %p204 = por %p202, %p203
      %p205 = scmp.ne.s32.totalorder %s193, %s194
      %p206 = scmp.eq.s32.totalorder %s32, 1
      %p207 = por %p205, %p206
      %p209 = scmp.ne.s32.totalorder %s194, %s208
      %p210 = scmp.eq.s32.totalorder %s32, 0
      %p211 = por %p209, %p210
      %s213 = sadd.s32 %s212, 1
      %p216 = scmp.eq.s32.totalorder %s26, 1
      %p217 = scmp.ne.s32.totalorder %s212, %s214
      %p218 = scmp.eq.s32.totalorder %s26, 0
      %p219 = por %p217, %p218
      %p220 = scmp.ne.s32.totalorder %s212, %s214
      %p221 = scmp.eq.s32.totalorder %s31, 1
      %p222 = por %p220, %p221
      %p223 = scmp.ne.s32.totalorder %s214, %s215
      %p224 = scmp.eq.s32.totalorder %s31, 0
      %p225 = por %p223, %p224
      %p226 = scmp.ne.s32.totalorder %s214, %s215
      %p227 = scmp.eq.s32.totalorder %s32, 1
      %p228 = por %p226, %p227
      %p230 = scmp.ne.s32.totalorder %s215, %s229
      %p231 = scmp.eq.s32.totalorder %s32, 0
      %p232 = por %p230, %p231
      %s234 = sadd.s32 %s233, 1
      %p237 = scmp.eq.s32.totalorder %s26, 1
      %p238 = scmp.ne.s32.totalorder %s233, %s235
      %p239 = scmp.eq.s32.totalorder %s26, 0
      %p240 = por %p238, %p239
      %p241 = scmp.ne.s32.totalorder %s233, %s235
      %p242 = scmp.eq.s32.totalorder %s31, 1
      %p243 = por %p241, %p242
      %p244 = scmp.ne.s32.totalorder %s235, %s236
      %p245 = scmp.eq.s32.totalorder %s31, 0
      %p246 = por %p244, %p245
      %p247 = scmp.ne.s32.totalorder %s235, %s236
      %p248 = scmp.eq.s32.totalorder %s32, 1
      %p249 = por %p247, %p248
      %p251 = scmp.ne.s32.totalorder %s236, %s250
      %p252 = scmp.eq.s32.totalorder %s32, 0
      %p253 = por %p251, %p252
      %s254 = ssub.s32 %s26, %s33
      %p255 = scmp.eq.s32.totalorder %s254, 0
      %s257 = sadd.s32 %s256, 1
      %s258 = scalar_select %p255, %s256, %s257
      %p261 = pneg %p255
      %p262 = scmp.eq.s32.totalorder %s26, 1
      %p263 = por %p261, %p262
      %p264 = scmp.ne.s32.totalorder %s256, %s259
      %p265 = scmp.eq.s32.totalorder %s26, 0
      %p266 = por %p264, %p265
      %p267 = scmp.ne.s32.totalorder %s256, %s259
      %p268 = scmp.eq.s32.totalorder %s31, 1
      %p269 = por %p267, %p268
      %p270 = scmp.ne.s32.totalorder %s259, %s260
      %p271 = scmp.eq.s32.totalorder %s31, 0
      %p272 = por %p270, %p271
      %p273 = scmp.ne.s32.totalorder %s259, %s260
      %p274 = scmp.eq.s32.totalorder %s32, 1
      %p275 = por %p273, %p274
      %p277 = scmp.ne.s32.totalorder %s260, %s276
      %p278 = scmp.eq.s32.totalorder %s32, 0
      %p279 = por %p277, %p278
      %p280 = scmp.le.s32.totalorder 1, %s26
      %p281 = scmp.lt.s32.totalorder %s26, 3
      %p282 = pnand %p280, %p281
      %p283 = pneg %p282
      // Predicated region
      $region9: #{tpu_custom_call.1} parent=5 // pred_check
        _
      $region10: #{tpu_custom_call.1} parent=5 // pred_check_branch
        %285 = sbr.rel (%p282) target = $region12
      $region11: #{tpu_custom_call.1} parent=5 // pred_region
        %s286 = ssub.s32 %s26, 1
        // Predicated region
        $region13: #{tpu_custom_call.1} parent=11 // pred_check
          %p287 = pneg %p99
        $region14: #{tpu_custom_call.1} parent=11 // pred_check_branch
          %289 = sbr.rel (%p287) target = $region16
        $region15: #{tpu_custom_call.1} parent=11 // pred_region
          %s291 = ssub.s32 2048, 2048
          %292 = vsyncadd [#allocation7], %s291
          %s293 = sshll.u32 [#allocation8], 4
          %s294 = int_to_ptr.vmem [resolvable:$true] %s293
          %299 = dma.hbm_to_vmem [thread:$0]  %s2, 2048, %s294, [#allocation7], 128, 128, 8
        $region16: #{tpu_custom_call.1} parent=11 // pred_fallthru
          _
        // Predicated region
        $region17: #{tpu_custom_call.1} parent=11 // pred_check
          %p300 = pneg %p120
        $region18: #{tpu_custom_call.1} parent=11 // pred_check_branch
          %302 = sbr.rel (%p300) target = $region20
        $region19: #{tpu_custom_call.1} parent=11 // pred_region
          _
        $region20: #{tpu_custom_call.1} parent=11 // pred_fallthru
          _
        // Predicated region
        $region21: #{tpu_custom_call.1} parent=11 // pred_check
          %p303 = pneg %p141
        $region22: #{tpu_custom_call.1} parent=11 // pred_check_branch
          %305 = sbr.rel (%p303) target = $region24
        $region23: #{tpu_custom_call.1} parent=11 // pred_region
          %s307 = ssub.s32 8192, 8192
          %308 = vsyncadd [#allocation10], %s307
          %s309 = sshll.u32 [#allocation9], 4
          %s310 = int_to_ptr.vmem [resolvable:$true] %s309
          %315 = dma.hbm_to_vmem [thread:$0]  %s4, 8192, %s310, [#allocation10], 256, 256, 16
        $region24: #{tpu_custom_call.1} parent=11 // pred_fallthru
          _
        // Predicated region
        $region25: #{tpu_custom_call.1} parent=11 // pred_check
          %p316 = pneg %p162
        $region26: #{tpu_custom_call.1} parent=11 // pred_check_branch
          %318 = sbr.rel (%p316) target = $region28
        $region27: #{tpu_custom_call.1} parent=11 // pred_region
          _
        $region28: #{tpu_custom_call.1} parent=11 // pred_fallthru
          _
        // Predicated region
        $region29: #{tpu_custom_call.1} parent=11 // pred_check
          %p319 = pneg %p183
        $region30: #{tpu_custom_call.1} parent=11 // pred_check_branch
          %321 = sbr.rel (%p319) target = $region32
        $region31: #{tpu_custom_call.1} parent=11 // pred_region
          %s323 = ssub.s32 2048, 2048
          %324 = vsyncadd [#allocation10], %s323
          %s325 = sshll.u32 [#allocation11], 4
          %s326 = int_to_ptr.vmem [resolvable:$true] %s325
          %331 = dma.hbm_to_vmem [thread:$0]  %s6, 2048, %s326, [#allocation10], 64, 64, 4
        $region32: #{tpu_custom_call.1} parent=11 // pred_fallthru
          _
        // Predicated region
        $region33: #{tpu_custom_call.1} parent=11 // pred_check
          %p332 = pneg %p204
        $region34: #{tpu_custom_call.1} parent=11 // pred_check_branch
          %334 = sbr.rel (%p332) target = $region36
        $region35: #{tpu_custom_call.1} parent=11 // pred_region
          _
        $region36: #{tpu_custom_call.1} parent=11 // pred_fallthru
          _
        // Predicated region
        $region37: #{tpu_custom_call.1} parent=11 // pred_check
          %p335 = pneg %p225
        $region38: #{tpu_custom_call.1} parent=11 // pred_check_branch
          %337 = sbr.rel (%p335) target = $region40
        $region39: #{tpu_custom_call.1} parent=11 // pred_region
          _
        $region40: #{tpu_custom_call.1} parent=11 // pred_fallthru
          _
        // Predicated region
        $region41: #{tpu_custom_call.1} parent=11 // pred_check
          %p338 = pneg %p246
        $region42: #{tpu_custom_call.1} parent=11 // pred_check_branch
          %340 = sbr.rel (%p338) target = $region44
        $region43: #{tpu_custom_call.1} parent=11 // pred_region
          _
        $region44: #{tpu_custom_call.1} parent=11 // pred_fallthru
          _
      $region12: #{tpu_custom_call.1} parent=5 // pred_fallthru
        _
      %p341 = scmp.lt.s32.totalorder %s26, 2
      // Predicated region
      $region45: #{tpu_custom_call.1} parent=5 // pred_check
        %p342 = pneg %p341
      $region46: #{tpu_custom_call.1} parent=5 // pred_check_branch
        %344 = sbr.rel (%p342) target = $region48
      $region47: #{tpu_custom_call.1} parent=5 // pred_region
        // Predicated region
        $region49: #{tpu_custom_call.1} parent=47 // pred_check
          %p345 = pneg %p46
        $region50: #{tpu_custom_call.1} parent=47 // pred_check_branch
          %347 = sbr.rel (%p345) target = $region52
        $region51: #{tpu_custom_call.1} parent=47 // pred_region
          %s348 = sand.u32 %s36, 1
          %s349 = scalar_lea.sflag [#allocation4], %s348
          %s350 = sand.u32 %s36, 1
          %s351 = smul.addr %s350, 32
          %s352 = scalar_lea.vmem [#allocation3], %s351
          %s353 = smul.u32 4, %s26
          %s355 = ssub.s32 512, 512
          %356 = vsyncadd %s349, %s355
          %s357 = smul.addr %s353, 128
          %s358 = scalar_lea.hbm %s0, %s357
          %s359 = sshll.u32 %s352, 4
          %s360 = int_to_ptr.vmem [resolvable:$true] %s359
          %365 = dma.hbm_to_vmem [thread:$0]  %s358, 512, %s360, %s349, 128, 128, 8
        $region52: #{tpu_custom_call.1} parent=47 // pred_fallthru
          _
        // Predicated region
        $region53: #{tpu_custom_call.1} parent=47 // pred_check
          %p366 = pneg %p72
        $region54: #{tpu_custom_call.1} parent=47 // pred_check_branch
          %368 = sbr.rel (%p366) target = $region56
        $region55: #{tpu_custom_call.1} parent=47 // pred_region
          %s369 = sand.u32 %s26, 1
          %s370 = scalar_lea.sflag [#allocation7], %s369
          %s371 = sand.u32 %s62, 1
          %s372 = smul.addr %s371, 96
          %s373 = scalar_lea.vmem [#allocation6], %s372
          %s374 = smul.u32 6, %s26
          %s376 = ssub.s32 1536, 1536
          %377 = vsyncadd %s370, %s376
          %s378 = smul.addr %s374, 2
          %s379 = smul.addr %s378, 128
          %s380 = scalar_lea.hbm %s1, %s379
          %s381 = sshll.u32 %s373, 4
          %s382 = int_to_ptr.vmem [resolvable:$true] %s381
          %387 = dma.hbm_to_vmem [thread:$0]  %s380, 1536, %s382, %s370, 256, 256, 16
        $region56: #{tpu_custom_call.1} parent=47 // pred_fallthru
          _
      $region48: #{tpu_custom_call.1} parent=5 // pred_fallthru
        _
      %p388 = scmp.le.s32.totalorder 1, %s26
      %p389 = scmp.lt.s32.totalorder %s26, 3
      %p390 = pnand %p388, %p389
      %p391 = pneg %p390
      // Predicated region
      $region57: #{tpu_custom_call.1} parent=5 // pred_check
        _
      $region58: #{tpu_custom_call.1} parent=5 // pred_check_branch
        %393 = sbr.rel (%p390) target = $region60
      $region59: #{tpu_custom_call.1} parent=5 // pred_region
        %s394 = ssub.s32 %s26, 1
        %s395 = sand.u32 %s39, 1
        %s396 = scalar_lea.sflag [#allocation4], %s395
        %s397 = sand.u32 %s39, 1
        %s398 = smul.addr %s397, 32
        %s399 = scalar_lea.vmem [#allocation3], %s398
        // Predicated region
        $region61: #{tpu_custom_call.1} parent=59 // pred_check
          %p400 = pneg %p52
        $region62: #{tpu_custom_call.1} parent=59 // pred_check_branch
          %402 = sbr.rel (%p400) target = $region64
        $region63: #{tpu_custom_call.1} parent=59 // pred_region
          %403 = dma.done %s396, 512
        $region64: #{tpu_custom_call.1} parent=59 // pred_fallthru
          _
        %s404 = sand.u32 %s31, 1
        %s405 = scalar_lea.sflag [#allocation7], %s404
        %s406 = sand.u32 %s65, 1
        %s407 = smul.addr %s406, 96
        %s408 = scalar_lea.vmem [#allocation6], %s407
        // Predicated region
        $region65: #{tpu_custom_call.1} parent=59 // pred_check
          %p409 = pneg %p78
        $region66: #{tpu_custom_call.1} parent=59 // pred_check_branch
          %411 = sbr.rel (%p409) target = $region68
        $region67: #{tpu_custom_call.1} parent=59 // pred_region
          %412 = dma.done %s405, 1536
        $region68: #{tpu_custom_call.1} parent=59 // pred_fallthru
          _
        // Predicated region
        $region69: #{tpu_custom_call.1} parent=59 // pred_check
          %p413 = pneg %p99
        $region70: #{tpu_custom_call.1} parent=59 // pred_check_branch
          %415 = sbr.rel (%p413) target = $region72
        $region71: #{tpu_custom_call.1} parent=59 // pred_region
          %416 = dma.done [#allocation7], 2048
        $region72: #{tpu_custom_call.1} parent=59 // pred_fallthru
          _
        // Predicated region
        $region73: #{tpu_custom_call.1} parent=59 // pred_check
          %p417 = pneg %p141
        $region74: #{tpu_custom_call.1} parent=59 // pred_check_branch
          %419 = sbr.rel (%p417) target = $region76
        $region75: #{tpu_custom_call.1} parent=59 // pred_region
          %420 = dma.done [#allocation10], 8192
        $region76: #{tpu_custom_call.1} parent=59 // pred_fallthru
          _
        // Predicated region
        $region77: #{tpu_custom_call.1} parent=59 // pred_check
          %p421 = pneg %p183
        $region78: #{tpu_custom_call.1} parent=59 // pred_check_branch
          %423 = sbr.rel (%p421) target = $region80
        $region79: #{tpu_custom_call.1} parent=59 // pred_region
          %424 = dma.done [#allocation10], 2048
        $region80: #{tpu_custom_call.1} parent=59 // pred_fallthru
          _
        %s425 = sand.u32 %s39, 1
        %s426 = scalar_lea.sflag [#allocation4], %s425
        %s427 = sand.u32 %s39, 1
        %s428 = smul.addr %s427, 32
        %s429 = scalar_lea.vmem [#allocation3], %s428
        %p430 = pneg %p52
        %p431 = pneg %p49
        %s432 = sand.u32 %s31, 1
        %s433 = scalar_lea.sflag [#allocation7], %s432
        %s434 = sand.u32 %s65, 1
        %s435 = smul.addr %s434, 96
        %s436 = scalar_lea.vmem [#allocation6], %s435
        %p437 = pneg %p78
        %p438 = pneg %p75
        %p439 = pneg %p99
        %p440 = pneg %p96
        %p441 = pneg %p120
        %p442 = pneg %p117
        %p443 = pneg %p141
        %p444 = pneg %p138
        %p445 = pneg %p162
        %p446 = pneg %p159
        %p447 = pneg %p183
        %p448 = pneg %p180
        %p449 = pneg %p204
        %p450 = pneg %p201
        %p451 = pneg %p225
        %p452 = pneg %p222
        %p453 = pneg %p246
        %p454 = pneg %p243
        %p455 = pneg %p272
        %p456 = pneg %p269
        %s457 = sand.u32 %s259, 1
        %s458 = scalar_lea.sflag [#allocation5], %s457
        %s459 = sand.u32 %s259, 1
        %s460 = smul.addr %s459, 32
        %s461 = scalar_lea.vmem [#allocation12], %s460
        %s462 = smul.u32 4, %s31
        %s463 = smul.u32 6, %s31
        %s464 = smul.u32 4, %s31
        %v466 = vld [vmem:[%s399] sm:$0xff]
        %v467 = vld [vmem:[%s399 + $0x8] sm:$0xff]
        %v468 = vld [vmem:[%s399 + $0x10] sm:$0xff]
        %v469 = vld [vmem:[%s399 + $0x18] sm:$0xff]
        %v470 = vld [vmem:[%s408] sm:$0xff]
        %v471 = vld [vmem:[%s408 + $0x8] sm:$0xff]
        %v472 = vld [vmem:[%s408 + $0x10] sm:$0xff]
        %v473 = vld [vmem:[%s408 + $0x18] sm:$0xff]
        %v474 = vld [vmem:[%s408 + $0x20] sm:$0xff]
        %v475 = vld [vmem:[%s408 + $0x28] sm:$0xff]
        %v476 = vld [vmem:[%s408 + $0x30] sm:$0xff]
        %v477 = vld [vmem:[%s408 + $0x38] sm:$0xff]
        %v478 = vld [vmem:[%s408 + $0x40] sm:$0xff]
        %v479 = vld [vmem:[%s408 + $0x48] sm:$0xff]
        %v480 = vld [vmem:[%s408 + $0x50] sm:$0xff]
        %v481 = vld [vmem:[%s408 + $0x58] sm:$0xff]
        %v482 = vpack.c.bf16 %v467, %v466
        %v483 = vpack.c.bf16 %v469, %v468
        %v484 = vld [vmem:[#allocation8] sm:$0xff]
        %v485 = vld [vmem:[#allocation8 + $0x8] sm:$0xff]
        %v486 = vld [vmem:[#allocation8 + $0x10] sm:$0xff]
        %v487 = vld [vmem:[#allocation8 + $0x18] sm:$0xff]
        %v488 = vld [vmem:[#allocation8 + $0x20] sm:$0xff]
        %v489 = vld [vmem:[#allocation8 + $0x28] sm:$0xff]
        %v490 = vld [vmem:[#allocation8 + $0x30] sm:$0xff]
        %v491 = vld [vmem:[#allocation8 + $0x38] sm:$0xff]
        %v492 = vld [vmem:[#allocation8 + $0x40] sm:$0xff]
        %v493 = vld [vmem:[#allocation8 + $0x48] sm:$0xff]
        %v494 = vld [vmem:[#allocation8 + $0x50] sm:$0xff]
        %v495 = vld [vmem:[#allocation8 + $0x58] sm:$0xff]
        %v496 = vld [vmem:[#allocation8 + $0x60] sm:$0xff]
        %v497 = vld [vmem:[#allocation8 + $0x68] sm:$0xff]
        %v498 = vld [vmem:[#allocation8 + $0x70] sm:$0xff]
        %v499 = vld [vmem:[#allocation8 + $0x78] sm:$0xff]
        %v500 = vld [vmem:[%s3] sm:$0x3]
        %v502 = vlaneseq
        %v503 = vshrl.u32 %v502, 7
        %v504 = vsub.s32 0, %v503
        %v505 = vrot.slane %v500, %v504
        %v506 = vlaneseq
        %v507 = vshrl.u32 %v506, 7
        %v508 = vsub.s32 1, %v507
        %v509 = vrot.slane %v500, %v508
        %v528 = vunpack.c.l.b16 %v484
        %v529 = vunpack.c.h.b16 %v484
        %v530 = vunpack.c.l.b16 %v485
        %v531 = vunpack.c.h.b16 %v485
        %v532 = vunpack.c.l.b16 %v486
        %v533 = vunpack.c.h.b16 %v486
        %v534 = vunpack.c.l.b16 %v487
        %v535 = vunpack.c.h.b16 %v487
        %v536 = vunpack.c.l.b16 %v488
        %v537 = vunpack.c.h.b16 %v488
        %v538 = vunpack.c.l.b16 %v489
        %v539 = vunpack.c.h.b16 %v489
        %v540 = vunpack.c.l.b16 %v490
        %v541 = vunpack.c.h.b16 %v490
        %v542 = vunpack.c.l.b16 %v491
        %v543 = vunpack.c.h.b16 %v491
        %v544 = vunpack.c.l.b16 %v492
        %v545 = vunpack.c.h.b16 %v492
        %v546 = vunpack.c.l.b16 %v493
        %v547 = vunpack.c.h.b16 %v493
        %v548 = vunpack.c.l.b16 %v494
        %v549 = vunpack.c.h.b16 %v494
        %v550 = vunpack.c.l.b16 %v495
        %v551 = vunpack.c.h.b16 %v495
        %v552 = vunpack.c.l.b16 %v496
        %v553 = vunpack.c.h.b16 %v496
        %v554 = vunpack.c.l.b16 %v497
        %v555 = vunpack.c.h.b16 %v497
        %v556 = vunpack.c.l.b16 %v498
        %v557 = vunpack.c.h.b16 %v498
        %v558 = vunpack.c.l.b16 %v499
        %v559 = vunpack.c.h.b16 %v499
        %v560 = vpack.c.b16 %v530, %v528
        %v561 = vpack.c.b16 %v531, %v529
        %v562 = vpack.c.b16 %v534, %v532
        %v563 = vpack.c.b16 %v535, %v533
        %v564 = vpack.c.b16 %v538, %v536
        %v565 = vpack.c.b16 %v539, %v537
        %v566 = vpack.c.b16 %v542, %v540
        %v567 = vpack.c.b16 %v543, %v541
        %v568 = vpack.c.b16 %v546, %v544
        %v569 = vpack.c.b16 %v547, %v545
        %v570 = vpack.c.b16 %v550, %v548
        %v571 = vpack.c.b16 %v551, %v549
        %v572 = vpack.c.b16 %v554, %v552
        %v573 = vpack.c.b16 %v555, %v553
        %v574 = vpack.c.b16 %v558, %v556
        %v575 = vpack.c.b16 %v559, %v557
        %592 = vmatprep.subr.bf16.mxu0 %v575
        %593 = vmatpush1.bf16.msra.mxu0 %v574
        %594 = vmatprep.subr.bf16.mxu0 %v573
        %595 = vmatpush1.bf16.msra.mxu0 %v572
        %596 = vmatprep.subr.bf16.mxu0 %v571
        %597 = vmatpush1.bf16.msra.mxu0 %v570
        %598 = vmatprep.subr.bf16.mxu0 %v569
        %599 = vmatpush1.bf16.msra.mxu0 %v568
        %600 = vmatprep.subr.bf16.mxu0 %v567
        %601 = vmatpush1.bf16.msra.mxu0 %v566
        %602 = vmatprep.subr.bf16.mxu0 %v565
        %603 = vmatpush1.bf16.msra.mxu0 %v564
        %604 = vmatprep.subr.bf16.mxu0 %v563
        %605 = vmatpush1.bf16.msra.mxu0 %v562
        %606 = vmatprep.subr.bf16.mxu0 %v561
        %607 = vmatpush1.bf16.msra.mxu0 %v560
        %608 = vmatprep.subr.bf16.mxu0 0
        %609 = vmatpush2.bf16.msra.mxu0 0
        %610 = vmatprep.subr.bf16.mxu0 0
        %611 = vmatpush2.bf16.msra.mxu0 0
        %612 = vmatprep.subr.bf16.mxu0 0
        %613 = vmatpush2.bf16.msra.mxu0 0
        %614 = vmatprep.subr.bf16.mxu0 0
        %615 = vmatpush2.bf16.msra.mxu0 0
        %616 = vmatprep.subr.bf16.mxu0 0
        %617 = vmatpush2.bf16.msra.mxu0 0
        %618 = vmatprep.subr.bf16.mxu0 0
        %619 = vmatpush2.bf16.msra.mxu0 0
        %620 = vmatprep.subr.bf16.mxu0 0
        %621 = vmatpush2.bf16.msra.mxu0 0
        %622 = vmatprep.subr.bf16.mxu0 0
        %623 = vmatpush2.bf16.msra.mxu0 0
        %624 = vmatprep.mubr.bf16.mxu0 0
        %625 = vmatmul.mubr.bf16.gmra.mxu0 %v482
        %v626 = vpop.f32.mrf.mxu0
        %v627 = vadd.f32 %v505, %v626
        %v628 = vpop.f32.mrf.mxu0
        %v629 = vadd.f32 %v509, %v628
        %v630 = vpop.f32.mrf.mxu0
        %v631 = vadd.f32 %v505, %v630
        %v632 = vpop.f32.mrf.mxu0
        %v633 = vadd.f32 %v509, %v632
        %634 = vmatprep.mubr.bf16.mxu0 0
        %635 = vmatmul.mubr.bf16.gmra.mxu0 %v483
        %v636 = vpop.f32.mrf.mxu0
        %v637 = vadd.f32 %v505, %v636
        %v638 = vpop.f32.mrf.mxu0
        %v639 = vadd.f32 %v509, %v638
        %v640 = vpop.f32.mrf.mxu0
        %v641 = vadd.f32 %v505, %v640
        %v642 = vpop.f32.mrf.mxu0
        %v643 = vadd.f32 %v509, %v642
        %644 = vdwg.mxu0
        %v645 = vpack.c.bf16 %v631, %v627
        %v646 = vpack.c.bf16 %v633, %v629
        %v647 = vpack.c.bf16 %v641, %v637
        %v648 = vpack.c.bf16 %v643, %v639
        %v649 = vpack.c.bf16 %v472, %v470
        %v650 = vpack.c.bf16 %v473, %v471
        %v651 = vpack.c.bf16 %v476, %v474
        %v652 = vpack.c.bf16 %v477, %v475
        %v653 = vpack.c.bf16 %v480, %v478
        %v654 = vpack.c.bf16 %v481, %v479
        %v655 = vld [vmem:[#allocation9] sm:$0xff]
        %v656 = vld [vmem:[#allocation9 + $0x8] sm:$0xff]
        %v657 = vld [vmem:[#allocation9 + $0x10] sm:$0xff]
        %v658 = vld [vmem:[#allocation9 + $0x18] sm:$0xff]
        %v659 = vld [vmem:[#allocation9 + $0x20] sm:$0xff]
        %v660 = vld [vmem:[#allocation9 + $0x28] sm:$0xff]
        %v661 = vld [vmem:[#allocation9 + $0x30] sm:$0xff]
        %v662 = vld [vmem:[#allocation9 + $0x38] sm:$0xff]
        %v663 = vld [vmem:[#allocation9 + $0x40] sm:$0xff]
        %v664 = vld [vmem:[#allocation9 + $0x48] sm:$0xff]
        %v665 = vld [vmem:[#allocation9 + $0x50] sm:$0xff]
        %v666 = vld [vmem:[#allocation9 + $0x58] sm:$0xff]
        %v667 = vld [vmem:[#allocation9 + $0x60] sm:$0xff]
        %v668 = vld [vmem:[#allocation9 + $0x68] sm:$0xff]
        %v669 = vld [vmem:[#allocation9 + $0x70] sm:$0xff]
        %v670 = vld [vmem:[#allocation9 + $0x78] sm:$0xff]
        %v671 = vld [vmem:[#allocation9 + $0x80] sm:$0xff]
        %v672 = vld [vmem:[#allocation9 + $0x88] sm:$0xff]
        %v673 = vld [vmem:[#allocation9 + $0x90] sm:$0xff]
        %v674 = vld [vmem:[#allocation9 + $0x98] sm:$0xff]
        %v675 = vld [vmem:[#allocation9 + $0xa0] sm:$0xff]
        %v676 = vld [vmem:[#allocation9 + $0xa8] sm:$0xff]
        %v677 = vld [vmem:[#allocation9 + $0xb0] sm:$0xff]
        %v678 = vld [vmem:[#allocation9 + $0xb8] sm:$0xff]
        %v679 = vld [vmem:[#allocation9 + $0xc0] sm:$0xff]
        %v680 = vld [vmem:[#allocation9 + $0xc8] sm:$0xff]
        %v681 = vld [vmem:[#allocation9 + $0xd0] sm:$0xff]
        %v682 = vld [vmem:[#allocation9 + $0xd8] sm:$0xff]
        %v683 = vld [vmem:[#allocation9 + $0xe0] sm:$0xff]
        %v684 = vld [vmem:[#allocation9 + $0xe8] sm:$0xff]
        %v685 = vld [vmem:[#allocation9 + $0xf0] sm:$0xff]
        %v686 = vld [vmem:[#allocation9 + $0xf8] sm:$0xff]
        %v687 = vld [vmem:[#allocation9 + $0x100] sm:$0xff]
        %v688 = vld [vmem:[#allocation9 + $0x108] sm:$0xff]
        %v689 = vld [vmem:[#allocation9 + $0x110] sm:$0xff]
        %v690 = vld [vmem:[#allocation9 + $0x118] sm:$0xff]
        %v691 = vld [vmem:[#allocation9 + $0x120] sm:$0xff]
        %v692 = vld [vmem:[#allocation9 + $0x128] sm:$0xff]
        %v693 = vld [vmem:[#allocation9 + $0x130] sm:$0xff]
        %v694 = vld [vmem:[#allocation9 + $0x138] sm:$0xff]
        %v695 = vld [vmem:[#allocation9 + $0x140] sm:$0xff]
        %v696 = vld [vmem:[#allocation9 + $0x148] sm:$0xff]
        %v697 = vld [vmem:[#allocation9 + $0x150] sm:$0xff]
        %v698 = vld [vmem:[#allocation9 + $0x158] sm:$0xff]
        %v699 = vld [vmem:[#allocation9 + $0x160] sm:$0xff]
        %v700 = vld [vmem:[#allocation9 + $0x168] sm:$0xff]
        %v701 = vld [vmem:[#allocation9 + $0x170] sm:$0xff]
        %v702 = vld [vmem:[#allocation9 + $0x178] sm:$0xff]
        %v703 = vld [vmem:[#allocation9 + $0x180] sm:$0xff]
        %v704 = vld [vmem:[#allocation9 + $0x188] sm:$0xff]
        %v705 = vld [vmem:[#allocation9 + $0x190] sm:$0xff]
        %v706 = vld [vmem:[#allocation9 + $0x198] sm:$0xff]
        %v707 = vld [vmem:[#allocation9 + $0x1a0] sm:$0xff]
        %v708 = vld [vmem:[#allocation9 + $0x1a8] sm:$0xff]
        %v709 = vld [vmem:[#allocation9 + $0x1b0] sm:$0xff]
        %v710 = vld [vmem:[#allocation9 + $0x1b8] sm:$0xff]
        %v711 = vld [vmem:[#allocation9 + $0x1c0] sm:$0xff]
        %v712 = vld [vmem:[#allocation9 + $0x1c8] sm:$0xff]
        %v713 = vld [vmem:[#allocation9 + $0x1d0] sm:$0xff]
        %v714 = vld [vmem:[#allocation9 + $0x1d8] sm:$0xff]
        %v715 = vld [vmem:[#allocation9 + $0x1e0] sm:$0xff]
        %v716 = vld [vmem:[#allocation9 + $0x1e8] sm:$0xff]
        %v717 = vld [vmem:[#allocation9 + $0x1f0] sm:$0xff]
        %v718 = vld [vmem:[#allocation9 + $0x1f8] sm:$0xff]
        %v719 = vld [vmem:[%s5] sm:$0xf]
        %v721 = vlaneseq
        %v722 = vshrl.u32 %v721, 7
        %v723 = vsub.s32 0, %v722
        %v724 = vrot.slane %v719, %v723
        %v725 = vlaneseq
        %v726 = vshrl.u32 %v725, 7
        %v727 = vsub.s32 1, %v726
        %v728 = vrot.slane %v719, %v727
        %v729 = vlaneseq
        %v730 = vshrl.u32 %v729, 7
        %v731 = vsub.s32 2, %v730
        %v732 = vrot.slane %v719, %v731
        %v733 = vlaneseq
        %v734 = vshrl.u32 %v733, 7
        %v735 = vsub.s32 3, %v734
        %v736 = vrot.slane %v719, %v735
        %v805 = vunpack.c.l.b16 %v655
        %v806 = vunpack.c.h.b16 %v655
        %v807 = vunpack.c.l.b16 %v656
        %v808 = vunpack.c.h.b16 %v656
        %v809 = vunpack.c.l.b16 %v657
        %v810 = vunpack.c.h.b16 %v657
        %v811 = vunpack.c.l.b16 %v658
        %v812 = vunpack.c.h.b16 %v658
        %v813 = vunpack.c.l.b16 %v659
        %v814 = vunpack.c.h.b16 %v659
        %v815 = vunpack.c.l.b16 %v660
        %v816 = vunpack.c.h.b16 %v660
        %v817 = vunpack.c.l.b16 %v661
        %v818 = vunpack.c.h.b16 %v661
        %v819 = vunpack.c.l.b16 %v662
        %v820 = vunpack.c.h.b16 %v662
        %v821 = vunpack.c.l.b16 %v663
        %v822 = vunpack.c.h.b16 %v663
        %v823 = vunpack.c.l.b16 %v664
        %v824 = vunpack.c.h.b16 %v664
        %v825 = vunpack.c.l.b16 %v665
        %v826 = vunpack.c.h.b16 %v665
        %v827 = vunpack.c.l.b16 %v666
        %v828 = vunpack.c.h.b16 %v666
        %v829 = vunpack.c.l.b16 %v667
        %v830 = vunpack.c.h.b16 %v667
        %v831 = vunpack.c.l.b16 %v668
        %v832 = vunpack.c.h.b16 %v668
        %v833 = vunpack.c.l.b16 %v669
        %v834 = vunpack.c.h.b16 %v669
        %v835 = vunpack.c.l.b16 %v670
        %v836 = vunpack.c.h.b16 %v670
        %v837 = vunpack.c.l.b16 %v671
        %v838 = vunpack.c.h.b16 %v671
        %v839 = vunpack.c.l.b16 %v672
        %v840 = vunpack.c.h.b16 %v672
        %v841 = vunpack.c.l.b16 %v673
        %v842 = vunpack.c.h.b16 %v673
        %v843 = vunpack.c.l.b16 %v674
        %v844 = vunpack.c.h.b16 %v674
        %v845 = vunpack.c.l.b16 %v675
        %v846 = vunpack.c.h.b16 %v675
        %v847 = vunpack.c.l.b16 %v676
        %v848 = vunpack.c.h.b16 %v676
        %v849 = vunpack.c.l.b16 %v677
        %v850 = vunpack.c.h.b16 %v677
        %v851 = vunpack.c.l.b16 %v678
        %v852 = vunpack.c.h.b16 %v678
        %v853 = vunpack.c.l.b16 %v679
        %v854 = vunpack.c.h.b16 %v679
        %v855 = vunpack.c.l.b16 %v680
        %v856 = vunpack.c.h.b16 %v680
        %v857 = vunpack.c.l.b16 %v681
        %v858 = vunpack.c.h.b16 %v681
        %v859 = vunpack.c.l.b16 %v682
        %v860 = vunpack.c.h.b16 %v682
        %v861 = vunpack.c.l.b16 %v683
        %v862 = vunpack.c.h.b16 %v683
        %v863 = vunpack.c.l.b16 %v684
        %v864 = vunpack.c.h.b16 %v684
        %v865 = vunpack.c.l.b16 %v685
        %v866 = vunpack.c.h.b16 %v685
        %v867 = vunpack.c.l.b16 %v686
        %v868 = vunpack.c.h.b16 %v686
        %v869 = vunpack.c.l.b16 %v687
        %v870 = vunpack.c.h.b16 %v687
        %v871 = vunpack.c.l.b16 %v688
        %v872 = vunpack.c.h.b16 %v688
        %v873 = vunpack.c.l.b16 %v689
        %v874 = vunpack.c.h.b16 %v689
        %v875 = vunpack.c.l.b16 %v690
        %v876 = vunpack.c.h.b16 %v690
        %v877 = vunpack.c.l.b16 %v691
        %v878 = vunpack.c.h.b16 %v691
        %v879 = vunpack.c.l.b16 %v692
        %v880 = vunpack.c.h.b16 %v692
        %v881 = vunpack.c.l.b16 %v693
        %v882 = vunpack.c.h.b16 %v693
        %v883 = vunpack.c.l.b16 %v694
        %v884 = vunpack.c.h.b16 %v694
        %v885 = vunpack.c.l.b16 %v695
        %v886 = vunpack.c.h.b16 %v695
        %v887 = vunpack.c.l.b16 %v696
        %v888 = vunpack.c.h.b16 %v696
        %v889 = vunpack.c.l.b16 %v697
        %v890 = vunpack.c.h.b16 %v697
        %v891 = vunpack.c.l.b16 %v698
        %v892 = vunpack.c.h.b16 %v698
        %v893 = vunpack.c.l.b16 %v699
        %v894 = vunpack.c.h.b16 %v699
        %v895 = vunpack.c.l.b16 %v700
        %v896 = vunpack.c.h.b16 %v700
        %v897 = vunpack.c.l.b16 %v701
        %v898 = vunpack.c.h.b16 %v701
        %v899 = vunpack.c.l.b16 %v702
        %v900 = vunpack.c.h.b16 %v702
        %v901 = vunpack.c.l.b16 %v703
        %v902 = vunpack.c.h.b16 %v703
        %v903 = vunpack.c.l.b16 %v704
        %v904 = vunpack.c.h.b16 %v704
        %v905 = vunpack.c.l.b16 %v705
        %v906 = vunpack.c.h.b16 %v705
        %v907 = vunpack.c.l.b16 %v706
        %v908 = vunpack.c.h.b16 %v706
        %v909 = vunpack.c.l.b16 %v707
        %v910 = vunpack.c.h.b16 %v707
        %v911 = vunpack.c.l.b16 %v708
        %v912 = vunpack.c.h.b16 %v708
        %v913 = vunpack.c.l.b16 %v709
        %v914 = vunpack.c.h.b16 %v709
        %v915 = vunpack.c.l.b16 %v710
        %v916 = vunpack.c.h.b16 %v710
        %v917 = vunpack.c.l.b16 %v711
        %v918 = vunpack.c.h.b16 %v711
        %v919 = vunpack.c.l.b16 %v712
        %v920 = vunpack.c.h.b16 %v712
        %v921 = vunpack.c.l.b16 %v713
        %v922 = vunpack.c.h.b16 %v713
        %v923 = vunpack.c.l.b16 %v714
        %v924 = vunpack.c.h.b16 %v714
        %v925 = vunpack.c.l.b16 %v715
        %v926 = vunpack.c.h.b16 %v715
        %v927 = vunpack.c.l.b16 %v716
        %v928 = vunpack.c.h.b16 %v716
        %v929 = vunpack.c.l.b16 %v717
        %v930 = vunpack.c.h.b16 %v717
        %v931 = vunpack.c.l.b16 %v718
        %v932 = vunpack.c.h.b16 %v718
        %v933 = vpack.c.b16 %v809, %v805
        %v934 = vpack.c.b16 %v810, %v806
        %v935 = vpack.c.b16 %v811, %v807
        %v936 = vpack.c.b16 %v812, %v808
        %v937 = vpack.c.b16 %v817, %v813
        %v938 = vpack.c.b16 %v818, %v814
        %v939 = vpack.c.b16 %v819, %v815
        %v940 = vpack.c.b16 %v820, %v816
        %v941 = vpack.c.b16 %v825, %v821
        %v942 = vpack.c.b16 %v826, %v822
        %v943 = vpack.c.b16 %v827, %v823
        %v944 = vpack.c.b16 %v828, %v824
        %v945 = vpack.c.b16 %v833, %v829
        %v946 = vpack.c.b16 %v834, %v830
        %v947 = vpack.c.b16 %v835, %v831
        %v948 = vpack.c.b16 %v836, %v832
        %v949 = vpack.c.b16 %v841, %v837
        %v950 = vpack.c.b16 %v842, %v838
        %v951 = vpack.c.b16 %v843, %v839
        %v952 = vpack.c.b16 %v844, %v840
        %v953 = vpack.c.b16 %v849, %v845
        %v954 = vpack.c.b16 %v850, %v846
        %v955 = vpack.c.b16 %v851, %v847
        %v956 = vpack.c.b16 %v852, %v848
        %v957 = vpack.c.b16 %v857, %v853
        %v958 = vpack.c.b16 %v858, %v854
        %v959 = vpack.c.b16 %v859, %v855
        %v960 = vpack.c.b16 %v860, %v856
        %v961 = vpack.c.b16 %v865, %v861
        %v962 = vpack.c.b16 %v866, %v862
        %v963 = vpack.c.b16 %v867, %v863
        %v964 = vpack.c.b16 %v868, %v864
        %v965 = vpack.c.b16 %v873, %v869
        %v966 = vpack.c.b16 %v874, %v870
        %v967 = vpack.c.b16 %v875, %v871
        %v968 = vpack.c.b16 %v876, %v872
        %v969 = vpack.c.b16 %v881, %v877
        %v970 = vpack.c.b16 %v882, %v878
        %v971 = vpack.c.b16 %v883, %v879
        %v972 = vpack.c.b16 %v884, %v880
        %v973 = vpack.c.b16 %v889, %v885
        %v974 = vpack.c.b16 %v890, %v886
        %v975 = vpack.c.b16 %v891, %v887
        %v976 = vpack.c.b16 %v892, %v888
        %v977 = vpack.c.b16 %v897, %v893
        %v978 = vpack.c.b16 %v898, %v894
        %v979 = vpack.c.b16 %v899, %v895
        %v980 = vpack.c.b16 %v900, %v896
        %v981 = vpack.c.b16 %v905, %v901
        %v982 = vpack.c.b16 %v906, %v902
        %v983 = vpack.c.b16 %v907, %v903
        %v984 = vpack.c.b16 %v908, %v904
        %v985 = vpack.c.b16 %v913, %v909
        %v986 = vpack.c.b16 %v914, %v910
        %v987 = vpack.c.b16 %v915, %v911
        %v988 = vpack.c.b16 %v916, %v912
        %v989 = vpack.c.b16 %v921, %v917
        %v990 = vpack.c.b16 %v922, %v918
        %v991 = vpack.c.b16 %v923, %v919
        %v992 = vpack.c.b16 %v924, %v920
        %v993 = vpack.c.b16 %v929, %v925
        %v994 = vpack.c.b16 %v930, %v926
        %v995 = vpack.c.b16 %v931, %v927
        %v996 = vpack.c.b16 %v932, %v928
        %1061 = vmatprep.subr.bf16.mxu0 %v962
        %1062 = vmatpush1.bf16.msra.mxu0 %v961
        %1063 = vmatprep.subr.bf16.mxu0 %v958
        %1064 = vmatpush1.bf16.msra.mxu0 %v957
        %1065 = vmatprep.subr.bf16.mxu0 %v954
        %1066 = vmatpush1.bf16.msra.mxu0 %v953
        %1067 = vmatprep.subr.bf16.mxu0 %v950
        %1068 = vmatpush1.bf16.msra.mxu0 %v949
        %1069 = vmatprep.subr.bf16.mxu0 %v946
        %1070 = vmatpush1.bf16.msra.mxu0 %v945
        %1071 = vmatprep.subr.bf16.mxu0 %v942
        %1072 = vmatpush1.bf16.msra.mxu0 %v941
        %1073 = vmatprep.subr.bf16.mxu0 %v938
        %1074 = vmatpush1.bf16.msra.mxu0 %v937
        %1075 = vmatprep.subr.bf16.mxu0 %v934
        %1076 = vmatpush1.bf16.msra.mxu0 %v933
        %1077 = vmatprep.subr.bf16.mxu0 %v994
        %1078 = vmatpush2.bf16.msra.mxu0 %v993
        %1079 = vmatprep.subr.bf16.mxu0 %v990
        %1080 = vmatpush2.bf16.msra.mxu0 %v989
        %1081 = vmatprep.subr.bf16.mxu0 %v986
        %1082 = vmatpush2.bf16.msra.mxu0 %v985
        %1083 = vmatprep.subr.bf16.mxu0 %v982
        %1084 = vmatpush2.bf16.msra.mxu0 %v981
        %1085 = vmatprep.subr.bf16.mxu0 %v978
        %1086 = vmatpush2.bf16.msra.mxu0 %v977
        %1087 = vmatprep.subr.bf16.mxu0 %v974
        %1088 = vmatpush2.bf16.msra.mxu0 %v973
        %1089 = vmatprep.subr.bf16.mxu0 %v970
        %1090 = vmatpush2.bf16.msra.mxu0 %v969
        %1091 = vmatprep.subr.bf16.mxu0 %v966
        %1092 = vmatpush2.bf16.msra.mxu0 %v965
        %1093 = vmatprep.mubr.bf16.mxu0 %v650
        %1094 = vmatmul.mubr.bf16.gmra.mxu0 %v649
        %v1095 = vpop.f32.mrf.mxu0
        %v1096 = vadd.f32 %v724, %v1095
        %v1097 = vpop.f32.mrf.mxu0
        %v1098 = vadd.f32 %v728, %v1097
        %v1099 = vpop.f32.mrf.mxu0
        %v1100 = vadd.f32 %v724, %v1099
        %v1101 = vpop.f32.mrf.mxu0
        %v1102 = vadd.f32 %v728, %v1101
        %1103 = vmatprep.mubr.bf16.mxu0 %v652
        %1104 = vmatmul.mubr.bf16.gmra.mxu0 %v651
        %v1105 = vpop.f32.mrf.mxu0
        %v1106 = vadd.f32 %v724, %v1105
        %v1107 = vpop.f32.mrf.mxu0
        %v1108 = vadd.f32 %v728, %v1107
        %v1109 = vpop.f32.mrf.mxu0
        %v1110 = vadd.f32 %v724, %v1109
        %v1111 = vpop.f32.mrf.mxu0
        %v1112 = vadd.f32 %v728, %v1111
        %1113 = vmatprep.mubr.bf16.mxu0 %v654
        %1114 = vmatmul.mubr.bf16.gmra.mxu0 %v653
        %v1115 = vpop.f32.mrf.mxu0
        %v1116 = vadd.f32 %v724, %v1115
        %v1117 = vpop.f32.mrf.mxu0
        %v1118 = vadd.f32 %v728, %v1117
        %v1119 = vpop.f32.mrf.mxu0
        %v1120 = vadd.f32 %v724, %v1119
        %v1121 = vpop.f32.mrf.mxu0
        %v1122 = vadd.f32 %v728, %v1121
        %1123 = vdwg.mxu0
        %1124 = vmatprep.subr.bf16.mxu0 %v964
        %1125 = vmatpush1.bf16.msra.mxu0 %v963
        %1126 = vmatprep.subr.bf16.mxu0 %v960
        %1127 = vmatpush1.bf16.msra.mxu0 %v959
        %1128 = vmatprep.subr.bf16.mxu0 %v956
        %1129 = vmatpush1.bf16.msra.mxu0 %v955
        %1130 = vmatprep.subr.bf16.mxu0 %v952
        %1131 = vmatpush1.bf16.msra.mxu0 %v951
        %1132 = vmatprep.subr.bf16.mxu0 %v948
        %1133 = vmatpush1.bf16.msra.mxu0 %v947
        %1134 = vmatprep.subr.bf16.mxu0 %v944
        %1135 = vmatpush1.bf16.msra.mxu0 %v943
        %1136 = vmatprep.subr.bf16.mxu0 %v940
        %1137 = vmatpush1.bf16.msra.mxu0 %v939
        %1138 = vmatprep.subr.bf16.mxu0 %v936
        %1139 = vmatpush1.bf16.msra.mxu0 %v935
        %1140 = vmatprep.subr.bf16.mxu0 %v996
        %1141 = vmatpush2.bf16.msra.mxu0 %v995
        %1142 = vmatprep.subr.bf16.mxu0 %v992
        %1143 = vmatpush2.bf16.msra.mxu0 %v991
        %1144 = vmatprep.subr.bf16.mxu0 %v988
        %1145 = vmatpush2.bf16.msra.mxu0 %v987
        %1146 = vmatprep.subr.bf16.mxu0 %v984
        %1147 = vmatpush2.bf16.msra.mxu0 %v983
        %1148 = vmatprep.subr.bf16.mxu0 %v980
        %1149 = vmatpush2.bf16.msra.mxu0 %v979
        %1150 = vmatprep.subr.bf16.mxu0 %v976
        %1151 = vmatpush2.bf16.msra.mxu0 %v975
        %1152 = vmatprep.subr.bf16.mxu0 %v972
        %1153 = vmatpush2.bf16.msra.mxu0 %v971
        %1154 = vmatprep.subr.bf16.mxu0 %v968
        %1155 = vmatpush2.bf16.msra.mxu0 %v967
        %1156 = vmatprep.mubr.bf16.mxu0 %v650
        %1157 = vmatmul.mubr.bf16.gmra.mxu0 %v649
        %v1158 = vpop.f32.mrf.mxu0
        %v1159 = vadd.f32 %v732, %v1158
        %v1160 = vpop.f32.mrf.mxu0
        %v1161 = vadd.f32 %v736, %v1160
        %v1162 = vpop.f32.mrf.mxu0
        %v1163 = vadd.f32 %v732, %v1162
        %v1164 = vpop.f32.mrf.mxu0
        %v1165 = vadd.f32 %v736, %v1164
        %1166 = vmatprep.mubr.bf16.mxu0 %v652
        %1167 = vmatmul.mubr.bf16.gmra.mxu0 %v651
        %v1168 = vpop.f32.mrf.mxu0
        %v1169 = vadd.f32 %v732, %v1168
        %v1170 = vpop.f32.mrf.mxu0
        %v1171 = vadd.f32 %v736, %v1170
        %v1172 = vpop.f32.mrf.mxu0
        %v1173 = vadd.f32 %v732, %v1172
        %v1174 = vpop.f32.mrf.mxu0
        %v1175 = vadd.f32 %v736, %v1174
        %1176 = vmatprep.mubr.bf16.mxu0 %v654
        %1177 = vmatmul.mubr.bf16.gmra.mxu0 %v653
        %v1178 = vpop.f32.mrf.mxu0
        %v1179 = vadd.f32 %v732, %v1178
        %v1180 = vpop.f32.mrf.mxu0
        %v1181 = vadd.f32 %v736, %v1180
        %v1182 = vpop.f32.mrf.mxu0
        %v1183 = vadd.f32 %v732, %v1182
        %v1184 = vpop.f32.mrf.mxu0
        %v1185 = vadd.f32 %v736, %v1184
        %1186 = vdwg.mxu0
        %v1187 = vpack.c.bf16 %v1100, %v1096
        %v1188 = vpack.c.bf16 %v1102, %v1098
        %v1189 = vpack.c.bf16 %v1163, %v1159
        %v1190 = vpack.c.bf16 %v1165, %v1161
        %v1191 = vpack.c.bf16 %v1110, %v1106
        %v1192 = vpack.c.bf16 %v1112, %v1108
        %v1193 = vpack.c.bf16 %v1173, %v1169
        %v1194 = vpack.c.bf16 %v1175, %v1171
        %v1195 = vpack.c.bf16 %v1120, %v1116
        %v1196 = vpack.c.bf16 %v1122, %v1118
        %v1197 = vpack.c.bf16 %v1183, %v1179
        %v1198 = vpack.c.bf16 %v1185, %v1181
        %1199 = vmatprep.subr.bf16.mxu0 0
        %1200 = vmatpush1.bf16.xpose.msra.mxu0 0
        %1201 = vmatprep.subr.bf16.mxu0 0
        %1202 = vmatpush1.bf16.xpose.msra.mxu0 0
        %1203 = vmatprep.subr.bf16.mxu0 0
        %1204 = vmatpush1.bf16.xpose.msra.mxu0 0
        %1205 = vmatprep.subr.bf16.mxu0 0
        %1206 = vmatpush1.bf16.xpose.msra.mxu0 0
        %1207 = vmatprep.subr.bf16.mxu0 0
        %1208 = vmatpush1.bf16.xpose.msra.mxu0 0
        %1209 = vmatprep.subr.bf16.mxu0 0
        %1210 = vmatpush1.bf16.xpose.msra.mxu0 0
        %1211 = vmatprep.subr.bf16.mxu0 0
        %1212 = vmatpush1.bf16.xpose.msra.mxu0 %v1191
        %1213 = vmatprep.subr.bf16.mxu0 0
        %1214 = vmatpush1.bf16.xpose.msra.mxu0 %v1187
        %1215 = vmatprep.subr.bf16.mxu0 0
        %1216 = vmatpush2.bf16.xpose.msra.mxu0 0
        %1217 = vmatprep.subr.bf16.mxu0 0
        %1218 = vmatpush2.bf16.xpose.msra.mxu0 0
        %1219 = vmatprep.subr.bf16.mxu0 0
        %1220 = vmatpush2.bf16.xpose.msra.mxu0 0
        %1221 = vmatprep.subr.bf16.mxu0 0
        %1222 = vmatpush2.bf16.xpose.msra.mxu0 0
        %1223 = vmatprep.subr.bf16.mxu0 0
        %1224 = vmatpush2.bf16.xpose.msra.mxu0 0
        %1225 = vmatprep.subr.bf16.mxu0 0
        %1226 = vmatpush2.bf16.xpose.msra.mxu0 0
        %1227 = vmatprep.subr.bf16.mxu0 0
        %1228 = vmatpush2.bf16.xpose.msra.mxu0 0
        %1229 = vmatprep.subr.bf16.mxu0 0
        %1230 = vmatpush2.bf16.xpose.msra.mxu0 0
        %1231 = vmatprep.mubr.bf16.mxu0 0
        %1232 = vmatmul.mubr.bf16.gmra.mxu0 %v645
        %v1233 = vpop.f32.mrf.mxu0
        %v1234 = vadd.f32 0.0, %v1233
        %v1235 = vpop.f32.mrf.mxu0
        %v1236 = vpop.f32.mrf.mxu0
        %v1237 = vadd.f32 0.0, %v1236
        %v1238 = vpop.f32.mrf.mxu0
        %1239 = vdwg.mxu0
        %vm1240 = vcmask 195584
        %v1241 = vsel %vm1240, %v1234, -inf
        %1242 = vmax.xlane.f32.xlu0 %v1241
        %v1243 = vpop.xlane.xlu0 %1242
        %v1244 = vsel %vm1240, %v1237, -inf
        %1245 = vmax.xlane.f32.xlu0 %v1244
        %v1246 = vpop.xlane.xlu0 %1245
        %v1247 = vsub.f32 %v1234, %v1243
        %v1248 = vsub.f32 %v1237, %v1246
        %v1249 = vmul.f32 %v1247, 1.442695
        %v1250 = vpow.pop %v1249
        %v1251 = vmul.f32 %v1248, 1.442695
        %v1252 = vpow.pop %v1251
        %v1253 = vsel %vm1240, %v1250, 0.0
        %1254 = vadd.xlane.f32.xlu0 %v1253
        %v1255 = vpop.xlane.xlu0 %1254
        %v1256 = vsel %vm1240, %v1252, 0.0
        %1257 = vadd.xlane.f32.xlu0 %v1256
        %v1258 = vpop.xlane.xlu0 %1257
        %v1259 = vpack.c.bf16 %v1252, %v1250
        %v1261 = vsel %vm1240, %v1259, 0
        %vm1263 = vcmask 1043456
        %v1265 = vsel %vm1263, %v1193, 0
        %1267 = vmatprep.subr.bf16.mxu0 0
        %1268 = vmatpush1.bf16.msra.mxu0 0
        %1269 = vmatprep.subr.bf16.mxu0 0
        %1270 = vmatpush1.bf16.msra.mxu0 0
        %1271 = vmatprep.subr.bf16.mxu0 0
        %1272 = vmatpush1.bf16.msra.mxu0 0
        %1273 = vmatprep.subr.bf16.mxu0 0
        %1274 = vmatpush1.bf16.msra.mxu0 0
        %1275 = vmatprep.subr.bf16.mxu0 0
        %1276 = vmatpush1.bf16.msra.mxu0 0
        %1277 = vmatprep.subr.bf16.mxu0 0
        %1278 = vmatpush1.bf16.msra.mxu0 0
        %1279 = vmatprep.subr.bf16.mxu0 0
        %1280 = vmatpush1.bf16.msra.mxu0 %v1265
        %1281 = vmatprep.subr.bf16.mxu0 0
        %1282 = vmatpush1.bf16.msra.mxu0 %v1189
        %1283 = vmatprep.subr.bf16.mxu0 0
        %1284 = vmatpush2.bf16.msra.mxu0 0
        %1285 = vmatprep.subr.bf16.mxu0 0
        %1286 = vmatpush2.bf16.msra.mxu0 0
        %1287 = vmatprep.subr.bf16.mxu0 0
        %1288 = vmatpush2.bf16.msra.mxu0 0
        %1289 = vmatprep.subr.bf16.mxu0 0
        %1290 = vmatpush2.bf16.msra.mxu0 0
        %1291 = vmatprep.subr.bf16.mxu0 0
        %1292 = vmatpush2.bf16.msra.mxu0 0
        %1293 = vmatprep.subr.bf16.mxu0 0
        %1294 = vmatpush2.bf16.msra.mxu0 0
        %1295 = vmatprep.subr.bf16.mxu0 0
        %1296 = vmatpush2.bf16.msra.mxu0 0
        %1297 = vmatprep.subr.bf16.mxu0 0
        %1298 = vmatpush2.bf16.msra.mxu0 0
        %1299 = vmatprep.mubr.bf16.mxu0 0
        %1300 = vmatmul.mubr.bf16.gmra.mxu0 %v1261
        %v1301 = vpop.f32.mrf.mxu0
        %v1302 = vadd.f32 0.0, %v1301
        %v1303 = vpop.f32.mrf.mxu0
        %v1304 = vpop.f32.mrf.mxu0
        %v1305 = vadd.f32 0.0, %v1304
        %v1306 = vpop.f32.mrf.mxu0
        %1307 = vdwg.mxu0
        %v1308 = vrcp.pop %v1255
        %v1309 = vrcp.pop %v1258
        %v1310 = vmul.f32 %v1302, %v1308
        %v1311 = vmul.f32 %v1305, %v1309
        %v1312 = vpack.c.bf16 %v1311, %v1310
        %v1314 = vunpack.c.l.b16 %v1312
        %v1315 = vunpack.c.h.b16 %v1312
        %v1316 = vpack.c.b16 %v1314, %v1314
        %v1317 = vpack.c.b16 %v1315, %v1315
        %1320 = vst [vmem:[#allocation2] sm:$0xf] %v1316
        %1321 = vst [vmem:[#allocation2 + $0x8] sm:$0xf] %v1317
        %1322 = vmatprep.subr.bf16.mxu0 0
        %1323 = vmatpush1.bf16.xpose.msra.mxu0 0
        %1324 = vmatprep.subr.bf16.mxu0 0
        %1325 = vmatpush1.bf16.xpose.msra.mxu0 0
        %1326 = vmatprep.subr.bf16.mxu0 0
        %1327 = vmatpush1.bf16.xpose.msra.mxu0 0
        %1328 = vmatprep.subr.bf16.mxu0 0
        %1329 = vmatpush1.bf16.xpose.msra.mxu0 0
        %1330 = vmatprep.subr.bf16.mxu0 0
        %1331 = vmatpush1.bf16.xpose.msra.mxu0 0
        %1332 = vmatprep.subr.bf16.mxu0 0
        %1333 = vmatpush1.bf16.xpose.msra.mxu0 0
        %1334 = vmatprep.subr.bf16.mxu0 0
        %1335 = vmatpush1.bf16.xpose.msra.mxu0 %v1192
        %1336 = vmatprep.subr.bf16.mxu0 0
        %1337 = vmatpush1.bf16.xpose.msra.mxu0 %v1188
        %1338 = vmatprep.subr.bf16.mxu0 0
        %1339 = vmatpush2.bf16.xpose.msra.mxu0 0
        %1340 = vmatprep.subr.bf16.mxu0 0
        %1341 = vmatpush2.bf16.xpose.msra.mxu0 0
        %1342 = vmatprep.subr.bf16.mxu0 0
        %1343 = vmatpush2.bf16.xpose.msra.mxu0 0
        %1344 = vmatprep.subr.bf16.mxu0 0
        %1345 = vmatpush2.bf16.xpose.msra.mxu0 0
        %1346 = vmatprep.subr.bf16.mxu0 0
        %1347 = vmatpush2.bf16.xpose.msra.mxu0 0
        %1348 = vmatprep.subr.bf16.mxu0 0
        %1349 = vmatpush2.bf16.xpose.msra.mxu0 0
        %1350 = vmatprep.subr.bf16.mxu0 0
        %1351 = vmatpush2.bf16.xpose.msra.mxu0 0
        %1352 = vmatprep.subr.bf16.mxu0 0
        %1353 = vmatpush2.bf16.xpose.msra.mxu0 0
        %1354 = vmatprep.mubr.bf16.mxu0 0
        %1355 = vmatmul.mubr.bf16.gmra.mxu0 %v646
        %v1356 = vpop.f32.mrf.mxu0
        %v1357 = vadd.f32 0.0, %v1356
        %v1358 = vpop.f32.mrf.mxu0
        %v1359 = vpop.f32.mrf.mxu0
        %v1360 = vadd.f32 0.0, %v1359
        %v1361 = vpop.f32.mrf.mxu0
        %1362 = vdwg.mxu0
        %v1363 = vsel %vm1240, %v1357, -inf
        %1364 = vmax.xlane.f32.xlu0 %v1363
        %v1365 = vpop.xlane.xlu0 %1364
        %v1366 = vsel %vm1240, %v1360, -inf
        %1367 = vmax.xlane.f32.xlu0 %v1366
        %v1368 = vpop.xlane.xlu0 %1367
        %v1369 = vsub.f32 %v1357, %v1365
        %v1370 = vsub.f32 %v1360, %v1368
        %v1371 = vmul.f32 %v1369, 1.442695
        %v1372 = vpow.pop %v1371
        %v1373 = vmul.f32 %v1370, 1.442695
        %v1374 = vpow.pop %v1373
        %v1375 = vsel %vm1240, %v1372, 0.0
        %1376 = vadd.xlane.f32.xlu0 %v1375
        %v1377 = vpop.xlane.xlu0 %1376
        %v1378 = vsel %vm1240, %v1374, 0.0
        %1379 = vadd.xlane.f32.xlu0 %v1378
        %v1380 = vpop.xlane.xlu0 %1379
        %v1381 = vpack.c.bf16 %v1374, %v1372
        %v1383 = vsel %vm1240, %v1381, 0
        %v1386 = vsel %vm1263, %v1194, 0
        %1388 = vmatprep.subr.bf16.mxu0 0
        %1389 = vmatpush1.bf16.msra.mxu0 0
        %1390 = vmatprep.subr.bf16.mxu0 0
        %1391 = vmatpush1.bf16.msra.mxu0 0
        %1392 = vmatprep.subr.bf16.mxu0 0
        %1393 = vmatpush1.bf16.msra.mxu0 0
        %1394 = vmatprep.subr.bf16.mxu0 0
        %1395 = vmatpush1.bf16.msra.mxu0 0
        %1396 = vmatprep.subr.bf16.mxu0 0
        %1397 = vmatpush1.bf16.msra.mxu0 0
        %1398 = vmatprep.subr.bf16.mxu0 0
        %1399 = vmatpush1.bf16.msra.mxu0 0
        %1400 = vmatprep.subr.bf16.mxu0 0
        %1401 = vmatpush1.bf16.msra.mxu0 %v1386
        %1402 = vmatprep.subr.bf16.mxu0 0
        %1403 = vmatpush1.bf16.msra.mxu0 %v1190
        %1404 = vmatprep.subr.bf16.mxu0 0
        %1405 = vmatpush2.bf16.msra.mxu0 0
        %1406 = vmatprep.subr.bf16.mxu0 0
        %1407 = vmatpush2.bf16.msra.mxu0 0
        %1408 = vmatprep.subr.bf16.mxu0 0
        %1409 = vmatpush2.bf16.msra.mxu0 0
        %1410 = vmatprep.subr.bf16.mxu0 0
        %1411 = vmatpush2.bf16.msra.mxu0 0
        %1412 = vmatprep.subr.bf16.mxu0 0
        %1413 = vmatpush2.bf16.msra.mxu0 0
        %1414 = vmatprep.subr.bf16.mxu0 0
        %1415 = vmatpush2.bf16.msra.mxu0 0
        %1416 = vmatprep.subr.bf16.mxu0 0
        %1417 = vmatpush2.bf16.msra.mxu0 0
        %1418 = vmatprep.subr.bf16.mxu0 0
        %1419 = vmatpush2.bf16.msra.mxu0 0
        %1420 = vmatprep.mubr.bf16.mxu0 0
        %1421 = vmatmul.mubr.bf16.gmra.mxu0 %v1383
        %v1422 = vpop.f32.mrf.mxu0
        %v1423 = vadd.f32 0.0, %v1422
        %v1424 = vpop.f32.mrf.mxu0
        %v1425 = vpop.f32.mrf.mxu0
        %v1426 = vadd.f32 0.0, %v1425
        %v1427 = vpop.f32.mrf.mxu0
        %1428 = vdwg.mxu0
        %v1429 = vrcp.pop %v1377
        %v1430 = vrcp.pop %v1380
        %v1431 = vmul.f32 %v1423, %v1429
        %v1432 = vmul.f32 %v1426, %v1430
        %v1433 = vpack.c.bf16 %v1432, %v1431
        %v1435 = vunpack.c.l.b16 %v1433
        %v1436 = vunpack.c.h.b16 %v1433
        %v1437 = vpack.c.b16 %v1435, %v1435
        %v1438 = vpack.c.b16 %v1436, %v1436
        %1441 = vst [vmem:[#allocation2 + $0x4] sm:$0xf] %v1437
        %1442 = vst [vmem:[#allocation2 + $0xc] sm:$0xf] %v1438
        %vm1445 = vcmask 1043456
        %v1446 = vrot.slane %v1191, 4
        %v1447 = vrot.slane %v1195, 4
        %v1448 = vsel %vm1445, %v1446, %v1447
        %1451 = vmatprep.subr.bf16.mxu0 0
        %1452 = vmatpush1.bf16.xpose.msra.mxu0 0
        %1453 = vmatprep.subr.bf16.mxu0 0
        %1454 = vmatpush1.bf16.xpose.msra.mxu0 0
        %1455 = vmatprep.subr.bf16.mxu0 0
        %1456 = vmatpush1.bf16.xpose.msra.mxu0 0
        %1457 = vmatprep.subr.bf16.mxu0 0
        %1458 = vmatpush1.bf16.xpose.msra.mxu0 0
        %1459 = vmatprep.subr.bf16.mxu0 0
        %1460 = vmatpush1.bf16.xpose.msra.mxu0 0
        %1461 = vmatprep.subr.bf16.mxu0 0
        %1462 = vmatpush1.bf16.xpose.msra.mxu0 0
        %1463 = vmatprep.subr.bf16.mxu0 0
        %1464 = vmatpush1.bf16.xpose.msra.mxu0 %v1447
        %1465 = vmatprep.subr.bf16.mxu0 0
        %1466 = vmatpush1.bf16.xpose.msra.mxu0 %v1448
        %1467 = vmatprep.subr.bf16.mxu0 0
        %1468 = vmatpush2.bf16.xpose.msra.mxu0 0
        %1469 = vmatprep.subr.bf16.mxu0 0
        %1470 = vmatpush2.bf16.xpose.msra.mxu0 0
        %1471 = vmatprep.subr.bf16.mxu0 0
        %1472 = vmatpush2.bf16.xpose.msra.mxu0 0
        %1473 = vmatprep.subr.bf16.mxu0 0
        %1474 = vmatpush2.bf16.xpose.msra.mxu0 0
        %1475 = vmatprep.subr.bf16.mxu0 0
        %1476 = vmatpush2.bf16.xpose.msra.mxu0 0
        %1477 = vmatprep.subr.bf16.mxu0 0
        %1478 = vmatpush2.bf16.xpose.msra.mxu0 0
        %1479 = vmatprep.subr.bf16.mxu0 0
        %1480 = vmatpush2.bf16.xpose.msra.mxu0 0
        %1481 = vmatprep.subr.bf16.mxu0 0
        %1482 = vmatpush2.bf16.xpose.msra.mxu0 0
        %1483 = vmatprep.mubr.bf16.mxu0 0
        %1484 = vmatmul.mubr.bf16.gmra.mxu0 %v647
        %v1485 = vpop.f32.mrf.mxu0
        %v1486 = vadd.f32 0.0, %v1485
        %v1487 = vpop.f32.mrf.mxu0
        %v1488 = vpop.f32.mrf.mxu0
        %v1489 = vadd.f32 0.0, %v1488
        %v1490 = vpop.f32.mrf.mxu0
        %1491 = vdwg.mxu0
        %v1492 = vsel %vm1240, %v1486, -inf
        %1493 = vmax.xlane.f32.xlu0 %v1492
        %v1494 = vpop.xlane.xlu0 %1493
        %v1495 = vsel %vm1240, %v1489, -inf
        %1496 = vmax.xlane.f32.xlu0 %v1495
        %v1497 = vpop.xlane.xlu0 %1496
        %v1498 = vsub.f32 %v1486, %v1494
        %v1499 = vsub.f32 %v1489, %v1497
        %v1500 = vmul.f32 %v1498, 1.442695
        %v1501 = vpow.pop %v1500
        %v1502 = vmul.f32 %v1499, 1.442695
        %v1503 = vpow.pop %v1502
        %v1504 = vsel %vm1240, %v1501, 0.0
        %1505 = vadd.xlane.f32.xlu0 %v1504
        %v1506 = vpop.xlane.xlu0 %1505
        %v1507 = vsel %vm1240, %v1503, 0.0
        %1508 = vadd.xlane.f32.xlu0 %v1507
        %v1509 = vpop.xlane.xlu0 %1508
        %v1510 = vpack.c.bf16 %v1503, %v1501
        %v1513 = vrot.slane %v1193, 4
        %v1514 = vrot.slane %v1197, 4
        %v1515 = vsel %vm1445, %v1513, %v1514
        %v1518 = vsel %vm1240, %v1510, 0
        %v1521 = vsel %vm1263, %v1514, 0
        %1523 = vmatprep.subr.bf16.mxu0 0
        %1524 = vmatpush1.bf16.msra.mxu0 0
        %1525 = vmatprep.subr.bf16.mxu0 0
        %1526 = vmatpush1.bf16.msra.mxu0 0
        %1527 = vmatprep.subr.bf16.mxu0 0
        %1528 = vmatpush1.bf16.msra.mxu0 0
        %1529 = vmatprep.subr.bf16.mxu0 0
        %1530 = vmatpush1.bf16.msra.mxu0 0
        %1531 = vmatprep.subr.bf16.mxu0 0
        %1532 = vmatpush1.bf16.msra.mxu0 0
        %1533 = vmatprep.subr.bf16.mxu0 0
        %1534 = vmatpush1.bf16.msra.mxu0 0
        %1535 = vmatprep.subr.bf16.mxu0 0
        %1536 = vmatpush1.bf16.msra.mxu0 %v1521
        %1537 = vmatprep.subr.bf16.mxu0 0
        %1538 = vmatpush1.bf16.msra.mxu0 %v1515
        %1539 = vmatprep.subr.bf16.mxu0 0
        %1540 = vmatpush2.bf16.msra.mxu0 0
        %1541 = vmatprep.subr.bf16.mxu0 0
        %1542 = vmatpush2.bf16.msra.mxu0 0
        %1543 = vmatprep.subr.bf16.mxu0 0
        %1544 = vmatpush2.bf16.msra.mxu0 0
        %1545 = vmatprep.subr.bf16.mxu0 0
        %1546 = vmatpush2.bf16.msra.mxu0 0
        %1547 = vmatprep.subr.bf16.mxu0 0
        %1548 = vmatpush2.bf16.msra.mxu0 0
        %1549 = vmatprep.subr.bf16.mxu0 0
        %1550 = vmatpush2.bf16.msra.mxu0 0
        %1551 = vmatprep.subr.bf16.mxu0 0
        %1552 = vmatpush2.bf16.msra.mxu0 0
        %1553 = vmatprep.subr.bf16.mxu0 0
        %1554 = vmatpush2.bf16.msra.mxu0 0
        %1555 = vmatprep.mubr.bf16.mxu0 0
        %1556 = vmatmul.mubr.bf16.gmra.mxu0 %v1518
        %v1557 = vpop.f32.mrf.mxu0
        %v1558 = vadd.f32 0.0, %v1557
        %v1559 = vpop.f32.mrf.mxu0
        %v1560 = vpop.f32.mrf.mxu0
        %v1561 = vadd.f32 0.0, %v1560
        %v1562 = vpop.f32.mrf.mxu0
        %1563 = vdwg.mxu0
        %v1564 = vrcp.pop %v1506
        %v1565 = vrcp.pop %v1509
        %v1566 = vmul.f32 %v1558, %v1564
        %v1567 = vmul.f32 %v1561, %v1565
        %v1568 = vpack.c.bf16 %v1567, %v1566
        %v1570 = vunpack.c.l.b16 %v1568
        %v1571 = vunpack.c.h.b16 %v1568
        %v1572 = vpack.c.b16 %v1570, %v1570
        %v1573 = vpack.c.b16 %v1571, %v1571
        %1576 = vst [vmem:[#allocation2 + $0x10] sm:$0xf] %v1572
        %1577 = vst [vmem:[#allocation2 + $0x18] sm:$0xf] %v1573
        %v1580 = vrot.slane %v1192, 4
        %v1581 = vrot.slane %v1196, 4
        %v1582 = vsel %vm1445, %v1580, %v1581
        %1585 = vmatprep.subr.bf16.mxu0 0
        %1586 = vmatpush1.bf16.xpose.msra.mxu0 0
        %1587 = vmatprep.subr.bf16.mxu0 0
        %1588 = vmatpush1.bf16.xpose.msra.mxu0 0
        %1589 = vmatprep.subr.bf16.mxu0 0
        %1590 = vmatpush1.bf16.xpose.msra.mxu0 0
        %1591 = vmatprep.subr.bf16.mxu0 0
        %1592 = vmatpush1.bf16.xpose.msra.mxu0 0
        %1593 = vmatprep.subr.bf16.mxu0 0
        %1594 = vmatpush1.bf16.xpose.msra.mxu0 0
        %1595 = vmatprep.subr.bf16.mxu0 0
        %1596 = vmatpush1.bf16.xpose.msra.mxu0 0
        %1597 = vmatprep.subr.bf16.mxu0 0
        %1598 = vmatpush1.bf16.xpose.msra.mxu0 %v1581
        %1599 = vmatprep.subr.bf16.mxu0 0
        %1600 = vmatpush1.bf16.xpose.msra.mxu0 %v1582
        %1601 = vmatprep.subr.bf16.mxu0 0
        %1602 = vmatpush2.bf16.xpose.msra.mxu0 0
        %1603 = vmatprep.subr.bf16.mxu0 0
        %1604 = vmatpush2.bf16.xpose.msra.mxu0 0
        %1605 = vmatprep.subr.bf16.mxu0 0
        %1606 = vmatpush2.bf16.xpose.msra.mxu0 0
        %1607 = vmatprep.subr.bf16.mxu0 0
        %1608 = vmatpush2.bf16.xpose.msra.mxu0 0
        %1609 = vmatprep.subr.bf16.mxu0 0
        %1610 = vmatpush2.bf16.xpose.msra.mxu0 0
        %1611 = vmatprep.subr.bf16.mxu0 0
        %1612 = vmatpush2.bf16.xpose.msra.mxu0 0
        %1613 = vmatprep.subr.bf16.mxu0 0
        %1614 = vmatpush2.bf16.xpose.msra.mxu0 0
        %1615 = vmatprep.subr.bf16.mxu0 0
        %1616 = vmatpush2.bf16.xpose.msra.mxu0 0
        %1617 = vmatprep.mubr.bf16.mxu0 0
        %1618 = vmatmul.mubr.bf16.gmra.mxu0 %v648
        %v1619 = vpop.f32.mrf.mxu0
        %v1620 = vadd.f32 0.0, %v1619
        %v1621 = vpop.f32.mrf.mxu0
        %v1622 = vpop.f32.mrf.mxu0
        %v1623 = vadd.f32 0.0, %v1622
        %v1624 = vpop.f32.mrf.mxu0
        %1625 = vdwg.mxu0
        %v1626 = vsel %vm1240, %v1620, -inf
        %1627 = vmax.xlane.f32.xlu0 %v1626
        %v1628 = vpop.xlane.xlu0 %1627
        %v1629 = vsel %vm1240, %v1623, -inf
        %1630 = vmax.xlane.f32.xlu0 %v1629
        %v1631 = vpop.xlane.xlu0 %1630
        %v1632 = vsub.f32 %v1620, %v1628
        %v1633 = vsub.f32 %v1623, %v1631
        %v1634 = vmul.f32 %v1632, 1.442695
        %v1635 = vpow.pop %v1634
        %v1636 = vmul.f32 %v1633, 1.442695
        %v1637 = vpow.pop %v1636
        %v1638 = vsel %vm1240, %v1635, 0.0
        %1639 = vadd.xlane.f32.xlu0 %v1638
        %v1640 = vpop.xlane.xlu0 %1639
        %v1641 = vsel %vm1240, %v1637, 0.0
        %1642 = vadd.xlane.f32.xlu0 %v1641
        %v1643 = vpop.xlane.xlu0 %1642
        %v1644 = vpack.c.bf16 %v1637, %v1635
        %v1647 = vrot.slane %v1194, 4
        %v1648 = vrot.slane %v1198, 4
        %v1649 = vsel %vm1445, %v1647, %v1648
        %v1652 = vsel %vm1240, %v1644, 0
        %v1655 = vsel %vm1263, %v1648, 0
        %1657 = vmatprep.subr.bf16.mxu0 0
        %1658 = vmatpush1.bf16.msra.mxu0 0
        %1659 = vmatprep.subr.bf16.mxu0 0
        %1660 = vmatpush1.bf16.msra.mxu0 0
        %1661 = vmatprep.subr.bf16.mxu0 0
        %1662 = vmatpush1.bf16.msra.mxu0 0
        %1663 = vmatprep.subr.bf16.mxu0 0
        %1664 = vmatpush1.bf16.msra.mxu0 0
        %1665 = vmatprep.subr.bf16.mxu0 0
        %1666 = vmatpush1.bf16.msra.mxu0 0
        %1667 = vmatprep.subr.bf16.mxu0 0
        %1668 = vmatpush1.bf16.msra.mxu0 0
        %1669 = vmatprep.subr.bf16.mxu0 0
        %1670 = vmatpush1.bf16.msra.mxu0 %v1655
        %1671 = vmatprep.subr.bf16.mxu0 0
        %1672 = vmatpush1.bf16.msra.mxu0 %v1649
        %1673 = vmatprep.subr.bf16.mxu0 0
        %1674 = vmatpush2.bf16.msra.mxu0 0
        %1675 = vmatprep.subr.bf16.mxu0 0
        %1676 = vmatpush2.bf16.msra.mxu0 0
        %1677 = vmatprep.subr.bf16.mxu0 0
        %1678 = vmatpush2.bf16.msra.mxu0 0
        %1679 = vmatprep.subr.bf16.mxu0 0
        %1680 = vmatpush2.bf16.msra.mxu0 0
        %1681 = vmatprep.subr.bf16.mxu0 0
        %1682 = vmatpush2.bf16.msra.mxu0 0
        %1683 = vmatprep.subr.bf16.mxu0 0
        %1684 = vmatpush2.bf16.msra.mxu0 0
        %1685 = vmatprep.subr.bf16.mxu0 0
        %1686 = vmatpush2.bf16.msra.mxu0 0
        %1687 = vmatprep.subr.bf16.mxu0 0
        %1688 = vmatpush2.bf16.msra.mxu0 0
        %1689 = vmatprep.mubr.bf16.mxu0 0
        %1690 = vmatmul.mubr.bf16.gmra.mxu0 %v1652
        %v1691 = vpop.f32.mrf.mxu0
        %v1692 = vadd.f32 0.0, %v1691
        %v1693 = vpop.f32.mrf.mxu0
        %v1694 = vpop.f32.mrf.mxu0
        %v1695 = vadd.f32 0.0, %v1694
        %v1696 = vpop.f32.mrf.mxu0
        %1697 = vdwg.mxu0
        %v1698 = vrcp.pop %v1640
        %v1699 = vrcp.pop %v1643
        %v1700 = vmul.f32 %v1692, %v1698
        %v1701 = vmul.f32 %v1695, %v1699
        %v1702 = vpack.c.bf16 %v1701, %v1700
        %v1704 = vunpack.c.l.b16 %v1702
        %v1705 = vunpack.c.h.b16 %v1702
        %v1706 = vpack.c.b16 %v1704, %v1704
        %v1707 = vpack.c.b16 %v1705, %v1705
        %1710 = vst [vmem:[#allocation2 + $0x14] sm:$0xf] %v1706
        %1711 = vst [vmem:[#allocation2 + $0x1c] sm:$0xf] %v1707
        %v1712 = vld [vmem:[#allocation2] sm:$0xff]
        %v1713 = vld [vmem:[#allocation2 + $0x8] sm:$0xff]
        %v1714 = vld [vmem:[#allocation2 + $0x10] sm:$0xff]
        %v1715 = vld [vmem:[#allocation2 + $0x18] sm:$0xff]
        %v1716 = vld [vmem:[#allocation11] sm:$0xf]
        %v1717 = vld [vmem:[#allocation11 + $0x4] sm:$0xf]
        %v1718 = vld [vmem:[#allocation11 + $0x8] sm:$0xf]
        %v1719 = vld [vmem:[#allocation11 + $0xc] sm:$0xf]
        %v1720 = vld [vmem:[#allocation11 + $0x10] sm:$0xf]
        %v1721 = vld [vmem:[#allocation11 + $0x14] sm:$0xf]
        %v1722 = vld [vmem:[#allocation11 + $0x18] sm:$0xf]
        %v1723 = vld [vmem:[#allocation11 + $0x1c] sm:$0xf]
        %v1724 = vld [vmem:[#allocation11 + $0x20] sm:$0xf]
        %v1725 = vld [vmem:[#allocation11 + $0x24] sm:$0xf]
        %v1726 = vld [vmem:[#allocation11 + $0x28] sm:$0xf]
        %v1727 = vld [vmem:[#allocation11 + $0x2c] sm:$0xf]
        %v1728 = vld [vmem:[#allocation11 + $0x30] sm:$0xf]
        %v1729 = vld [vmem:[#allocation11 + $0x34] sm:$0xf]
        %v1730 = vld [vmem:[#allocation11 + $0x38] sm:$0xf]
        %v1731 = vld [vmem:[#allocation11 + $0x3c] sm:$0xf]
        %v1732 = vld [vmem:[#allocation11 + $0x40] sm:$0xf]
        %v1733 = vld [vmem:[#allocation11 + $0x44] sm:$0xf]
        %v1734 = vld [vmem:[#allocation11 + $0x48] sm:$0xf]
        %v1735 = vld [vmem:[#allocation11 + $0x4c] sm:$0xf]
        %v1736 = vld [vmem:[#allocation11 + $0x50] sm:$0xf]
        %v1737 = vld [vmem:[#allocation11 + $0x54] sm:$0xf]
        %v1738 = vld [vmem:[#allocation11 + $0x58] sm:$0xf]
        %v1739 = vld [vmem:[#allocation11 + $0x5c] sm:$0xf]
        %v1740 = vld [vmem:[#allocation11 + $0x60] sm:$0xf]
        %v1741 = vld [vmem:[#allocation11 + $0x64] sm:$0xf]
        %v1742 = vld [vmem:[#allocation11 + $0x68] sm:$0xf]
        %v1743 = vld [vmem:[#allocation11 + $0x6c] sm:$0xf]
        %v1744 = vld [vmem:[#allocation11 + $0x70] sm:$0xf]
        %v1745 = vld [vmem:[#allocation11 + $0x74] sm:$0xf]
        %v1746 = vld [vmem:[#allocation11 + $0x78] sm:$0xf]
        %v1747 = vld [vmem:[#allocation11 + $0x7c] sm:$0xf]
        %v1748 = vld [vmem:[%s7] sm:$0x1]
        %v1750 = vlaneseq
        %v1751 = vshrl.u32 %v1750, 7
        %v1752 = vsub.s32 0, %v1751
        %v1753 = vrot.slane %v1748, %v1752
        %v1759 = vunpack.c.l.b16 %v1712
        %v1760 = vunpack.c.h.b16 %v1712
        %v1761 = vunpack.c.l.b16 %v1713
        %v1762 = vunpack.c.h.b16 %v1713
        %v1763 = vunpack.c.l.b16 %v1714
        %v1764 = vunpack.c.h.b16 %v1714
        %v1765 = vunpack.c.l.b16 %v1715
        %v1766 = vunpack.c.h.b16 %v1715
        %v1767 = vpack.c.b16 %v1761, %v1759
        %v1768 = vpack.c.b16 %v1762, %v1760
        %v1769 = vpack.c.b16 %v1765, %v1763
        %v1770 = vpack.c.b16 %v1766, %v1764
        %v1807 = vunpack.c.l.b16 %v1716
        %v1808 = vunpack.c.l.b16 %v1717
        %v1809 = vunpack.c.l.b16 %v1718
        %v1810 = vunpack.c.l.b16 %v1719
        %v1811 = vunpack.c.l.b16 %v1720
        %v1812 = vunpack.c.l.b16 %v1721
        %v1813 = vunpack.c.l.b16 %v1722
        %v1814 = vunpack.c.l.b16 %v1723
        %v1815 = vunpack.c.l.b16 %v1724
        %v1816 = vunpack.c.l.b16 %v1725
        %v1817 = vunpack.c.l.b16 %v1726
        %v1818 = vunpack.c.l.b16 %v1727
        %v1819 = vunpack.c.l.b16 %v1728
        %v1820 = vunpack.c.l.b16 %v1729
        %v1821 = vunpack.c.l.b16 %v1730
        %v1822 = vunpack.c.l.b16 %v1731
        %v1823 = vunpack.c.l.b16 %v1732
        %v1824 = vunpack.c.l.b16 %v1733
        %v1825 = vunpack.c.l.b16 %v1734
        %v1826 = vunpack.c.l.b16 %v1735
        %v1827 = vunpack.c.l.b16 %v1736
        %v1828 = vunpack.c.l.b16 %v1737
        %v1829 = vunpack.c.l.b16 %v1738
        %v1830 = vunpack.c.l.b16 %v1739
        %v1831 = vunpack.c.l.b16 %v1740
        %v1832 = vunpack.c.l.b16 %v1741
        %v1833 = vunpack.c.l.b16 %v1742
        %v1834 = vunpack.c.l.b16 %v1743
        %v1835 = vunpack.c.l.b16 %v1744
        %v1836 = vunpack.c.l.b16 %v1745
        %v1837 = vunpack.c.l.b16 %v1746
        %v1838 = vunpack.c.l.b16 %v1747
        %v1839 = vpack.c.b16 %v1808, %v1807
        %v1840 = vpack.c.b16 %v1810, %v1809
        %v1841 = vpack.c.b16 %v1812, %v1811
        %v1842 = vpack.c.b16 %v1814, %v1813
        %v1843 = vpack.c.b16 %v1816, %v1815
        %v1844 = vpack.c.b16 %v1818, %v1817
        %v1845 = vpack.c.b16 %v1820, %v1819
        %v1846 = vpack.c.b16 %v1822, %v1821
        %v1847 = vpack.c.b16 %v1824, %v1823
        %v1848 = vpack.c.b16 %v1826, %v1825
        %v1849 = vpack.c.b16 %v1828, %v1827
        %v1850 = vpack.c.b16 %v1830, %v1829
        %v1851 = vpack.c.b16 %v1832, %v1831
        %v1852 = vpack.c.b16 %v1834, %v1833
        %v1853 = vpack.c.b16 %v1836, %v1835
        %v1854 = vpack.c.b16 %v1838, %v1837
        %1871 = vmatprep.subr.bf16.mxu0 0
        %1872 = vmatpush1.bf16.msra.mxu0 %v1846
        %1873 = vmatprep.subr.bf16.mxu0 0
        %1874 = vmatpush1.bf16.msra.mxu0 %v1845
        %1875 = vmatprep.subr.bf16.mxu0 0
        %1876 = vmatpush1.bf16.msra.mxu0 %v1844
        %1877 = vmatprep.subr.bf16.mxu0 0
        %1878 = vmatpush1.bf16.msra.mxu0 %v1843
        %1879 = vmatprep.subr.bf16.mxu0 0
        %1880 = vmatpush1.bf16.msra.mxu0 %v1842
        %1881 = vmatprep.subr.bf16.mxu0 0
        %1882 = vmatpush1.bf16.msra.mxu0 %v1841
        %1883 = vmatprep.subr.bf16.mxu0 0
        %1884 = vmatpush1.bf16.msra.mxu0 %v1840
        %1885 = vmatprep.subr.bf16.mxu0 0
        %1886 = vmatpush1.bf16.msra.mxu0 %v1839
        %1887 = vmatprep.subr.bf16.mxu0 0
        %1888 = vmatpush2.bf16.msra.mxu0 %v1854
        %1889 = vmatprep.subr.bf16.mxu0 0
        %1890 = vmatpush2.bf16.msra.mxu0 %v1853
        %1891 = vmatprep.subr.bf16.mxu0 0
        %1892 = vmatpush2.bf16.msra.mxu0 %v1852
        %1893 = vmatprep.subr.bf16.mxu0 0
        %1894 = vmatpush2.bf16.msra.mxu0 %v1851
        %1895 = vmatprep.subr.bf16.mxu0 0
        %1896 = vmatpush2.bf16.msra.mxu0 %v1850
        %1897 = vmatprep.subr.bf16.mxu0 0
        %1898 = vmatpush2.bf16.msra.mxu0 %v1849
        %1899 = vmatprep.subr.bf16.mxu0 0
        %1900 = vmatpush2.bf16.msra.mxu0 %v1848
        %1901 = vmatprep.subr.bf16.mxu0 0
        %1902 = vmatpush2.bf16.msra.mxu0 %v1847
        %1903 = vmatprep.mubr.bf16.mxu0 %v1768
        %1904 = vmatmul.mubr.bf16.gmra.mxu0 %v1767
        %v1905 = vpop.f32.mrf.mxu0
        %v1906 = vadd.f32 %v1753, %v1905
        %v1907 = vpop.f32.mrf.mxu0
        %v1908 = vpop.f32.mrf.mxu0
        %v1909 = vadd.f32 %v1753, %v1908
        %v1910 = vpop.f32.mrf.mxu0
        %1911 = vmatprep.mubr.bf16.mxu0 %v1770
        %1912 = vmatmul.mubr.bf16.gmra.mxu0 %v1769
        %v1913 = vpop.f32.mrf.mxu0
        %v1914 = vadd.f32 %v1753, %v1913
        %v1915 = vpop.f32.mrf.mxu0
        %v1916 = vpop.f32.mrf.mxu0
        %v1917 = vadd.f32 %v1753, %v1916
        %v1918 = vpop.f32.mrf.mxu0
        %1919 = vdwg.mxu0
        %1920 = vadd.xlane.f32.xlu0 %v1906
        %v1921 = vpop.xlane.xlu0 %1920
        %1922 = vadd.xlane.f32.xlu0 %v1909
        %v1923 = vpop.xlane.xlu0 %1922
        %1924 = vadd.xlane.f32.xlu0 %v1914
        %v1925 = vpop.xlane.xlu0 %1924
        %1926 = vadd.xlane.f32.xlu0 %v1917
        %v1927 = vpop.xlane.xlu0 %1926
        %v1928 = vrcp.pop 128.0
        %v1929 = vmul.f32 %v1921, %v1928
        %v1930 = vmul.f32 %v1923, %v1928
        %v1931 = vmul.f32 %v1925, %v1928
        %v1932 = vmul.f32 %v1927, %v1928
        %v1933 = vsub.f32 %v1906, %v1929
        %v1934 = vsub.f32 %v1909, %v1930
        %v1935 = vsub.f32 %v1914, %v1931
        %v1936 = vsub.f32 %v1917, %v1932
        %v1937 = vmul.f32 %v1933, %v1933
        %v1938 = vmul.f32 %v1934, %v1934
        %v1939 = vmul.f32 %v1935, %v1935
        %v1940 = vmul.f32 %v1936, %v1936
        %1941 = vadd.xlane.f32.xlu0 %v1937
        %v1942 = vpop.xlane.xlu0 %1941
        %1943 = vadd.xlane.f32.xlu0 %v1938
        %v1944 = vpop.xlane.xlu0 %1943
        %1945 = vadd.xlane.f32.xlu0 %v1939
        %v1946 = vpop.xlane.xlu0 %1945
        %1947 = vadd.xlane.f32.xlu0 %v1940
        %v1948 = vpop.xlane.xlu0 %1947
        %v1949 = vmul.f32 %v1942, %v1928
        %v1950 = vmul.f32 %v1944, %v1928
        %v1951 = vmul.f32 %v1946, %v1928
        %v1952 = vmul.f32 %v1948, %v1928
        %v1953 = vadd.f32 %v1949, 1e-05
        %v1954 = vadd.f32 %v1950, 1e-05
        %v1955 = vadd.f32 %v1951, 1e-05
        %v1956 = vadd.f32 %v1952, 1e-05
        %v1957 = vrsqrt.pop %v1953
        %v1958 = vrsqrt.pop %v1954
        %v1959 = vrsqrt.pop %v1955
        %v1960 = vrsqrt.pop %v1956
        %v1961 = vmul.f32 %v1933, %v1957
        %v1962 = vmul.f32 %v1934, %v1958
        %v1963 = vmul.f32 %v1935, %v1959
        %v1964 = vmul.f32 %v1936, %v1960
        %v1965 = vld [vmem:[%s8] sm:$0x1]
        %v1967 = vlaneseq
        %v1968 = vshrl.u32 %v1967, 7
        %v1969 = vsub.s32 0, %v1968
        %v1970 = vrot.slane %v1965, %v1969
        %v1972 = vmul.f32 %v1961, %v1970
        %v1973 = vmul.f32 %v1962, %v1970
        %v1974 = vmul.f32 %v1963, %v1970
        %v1975 = vmul.f32 %v1964, %v1970
        %v1976 = vld [vmem:[%s9] sm:$0x1]
        %v1978 = vlaneseq
        %v1979 = vshrl.u32 %v1978, 7
        %v1980 = vsub.s32 0, %v1979
        %v1981 = vrot.slane %v1976, %v1980
        %v1983 = vadd.f32 %v1972, %v1981
        %v1984 = vadd.f32 %v1973, %v1981
        %v1985 = vadd.f32 %v1974, %v1981
        %v1986 = vadd.f32 %v1975, %v1981
        %1987 = vst [vmem:[%s461] sm:$0xff] %v1983
        %1988 = vst [vmem:[%s461 + $0x8] sm:$0xff] %v1984
        %1989 = vst [vmem:[%s461 + $0x10] sm:$0xff] %v1985
        %1990 = vst [vmem:[%s461 + $0x18] sm:$0xff] %v1986
        %s1991 = sand.u32 %s259, 1
        %s1992 = scalar_lea.sflag [#allocation5], %s1991
        %s1993 = sand.u32 %s259, 1
        %s1994 = smul.addr %s1993, 32
        %s1995 = scalar_lea.vmem [#allocation12], %s1994
        // Predicated region
        $region81: #{tpu_custom_call.1} parent=59 // pred_check
          %p1996 = pneg %p269
        $region82: #{tpu_custom_call.1} parent=59 // pred_check_branch
          %1998 = sbr.rel (%p1996) target = $region84
        $region83: #{tpu_custom_call.1} parent=59 // pred_region
          %s1999 = smul.u32 4, %s31
          %s2001 = ssub.s32 512, 512
          %2002 = vsyncadd %s1992, %s2001
          %s2003 = smul.addr %s1999, 128
          %s2004 = scalar_lea.hbm %s10, %s2003
          %s2005 = sshll.u32 %s1995, 4
          %s2006 = int_to_ptr.vmem [resolvable:$true] %s2005
          %2011 = dma.vmem_to_hbm [thread:$0]  %s2006, 512, %s2004, %s1992, 128, 128, 8
        $region84: #{tpu_custom_call.1} parent=59 // pred_fallthru
          _
      $region60: #{tpu_custom_call.1} parent=5 // pred_fallthru
        _
      %p2012 = scmp.le.s32.totalorder 2, %s26
      // Predicated region
      $region85: #{tpu_custom_call.1} parent=5 // pred_check
        %p2013 = pneg %p2012
      $region86: #{tpu_custom_call.1} parent=5 // pred_check_branch
        %2015 = sbr.rel (%p2013) target = $region88
      $region87: #{tpu_custom_call.1} parent=5 // pred_region
        %s2016 = ssub.s32 %s26, 2
        // Predicated region
        $region89: #{tpu_custom_call.1} parent=87 // pred_check
          %p2017 = pneg %p275
        $region90: #{tpu_custom_call.1} parent=87 // pred_check_branch
          %2019 = sbr.rel (%p2017) target = $region92
        $region91: #{tpu_custom_call.1} parent=87 // pred_region
          %s2020 = sand.u32 %s260, 1
          %s2021 = scalar_lea.sflag [#allocation5], %s2020
          %s2022 = sand.u32 %s260, 1
          %s2023 = smul.addr %s2022, 32
          %s2024 = scalar_lea.vmem [#allocation12], %s2023
          %2025 = dma.done %s2021, 512
        $region92: #{tpu_custom_call.1} parent=87 // pred_fallthru
          _
      $region88: #{tpu_custom_call.1} parent=5 // pred_fallthru
        _
    $region6: #{tpu_custom_call.1} parent=1 // loop_footer
      %s30 = sadd.s32 1, %s26
    $region7: #{tpu_custom_call.1} parent=1 // loop_footer_branch
      %25 = sbr.rel target = $region3
    $region8: #{tpu_custom_call.1} parent=1 // loop_exit
      _
    %2026 = vsyncpa [#allocation4], 1
    %s2027 = scalar_lea.sflag [#allocation4], 1
    %2028 = vsyncpa %s2027, 1
    %2029 = vsyncpa [#allocation7], 1
    %s2030 = scalar_lea.sflag [#allocation7], 1
    %2031 = vsyncpa %s2030, 1
    %2032 = vsyncpa [#allocation10], 1
    %2033 = vsyncpa [#allocation5], 1
    %s2034 = scalar_lea.sflag [#allocation5], 1
    %2035 = vsyncpa %s2034, 1

// kernel: tpu_custom_call.1
$region0: #{tpu_custom_call.1}
  #allocation0 [shape = 'u32[]', space=smem, size = 0x4, offset = 0x4, fixed_abs, tag = 'smem constant byte address 0x4 - core index']
  #allocation1 [shape = 'u32[144,128]{1,0:T(1,128)}', space=vmem, size = 0x12000, scoped, tag = 'internal scratch']
  #allocation2 [shape = 'bf16[32,256]{1,0:T(8,128)(2,1)}', space=vmem, size = 0x4000, scoped, tag = 'scratch operand']
  %s0 = inlined_call_operand.hbm [shape: f32[64,128], index: 0, kind: input, shape index: {}]
  %s1 = inlined_call_operand.hbm [shape: f32[96,256], index: 1, kind: input, shape index: {}]
  %s2 = inlined_call_operand.hbm [shape: bf16[128,256], index: 2, kind: input, shape index: {}]
  %s3 = inlined_call_operand.vmem [shape: f32[1,256], index: 3, kind: input, shape index: {}]
  %s4 = inlined_call_operand.hbm [shape: bf16[256,512], index: 4, kind: input, shape index: {}]
  %s5 = inlined_call_operand.vmem [shape: f32[1,512], index: 5, kind: input, shape index: {}]
  %s6 = inlined_call_operand.hbm [shape: bf16[256,128], index: 6, kind: input, shape index: {}]
  %s7 = inlined_call_operand.vmem [shape: f32[1,128], index: 7, kind: input, shape index: {}]
  %s8 = inlined_call_operand.vmem [shape: f32[1,128], index: 8, kind: input, shape index: {}]
  %s9 = inlined_call_operand.vmem [shape: f32[1,128], index: 9, kind: input, shape index: {}]
  %s10 = inlined_call_operand.hbm [shape: f32[64,128], index: 10, kind: output, shape index: {}]
  %s11 = sld [smem:[#allocation0]]
  $region93: #{tpu_custom_call.1} parent=0
    _
  %s13 = ssub.s32 1, %s11
  %s14 = scalar_select 0, %s13, %s11
  $region1: #{tpu_custom_call.1} parent=0
    #allocation3 [shape = 'u8[32768]{0}', space=vmem, size = 0x8000, scoped, tag = 'input window, operand 0']
    #allocation4 [shape = 's32[2]{0}', space=sflag, size = 0x8, scoped, tag = 'scoped memory for tpu_custom_call.1']
    #allocation5 [shape = 's32[2]{0}', space=sflag, size = 0x8, scoped, tag = 'scoped memory for tpu_custom_call.1']
    #allocation6 [shape = 'u8[98304]{0}', space=vmem, size = 0x18000, scoped, tag = 'input window, operand 1']
    #allocation7 [shape = 's32[2]{0}', space=sflag, size = 0x8, scoped, tag = 'scoped memory for tpu_custom_call.1']
    #allocation8 [shape = 'u8[65536]{0}', space=vmem, size = 0x10000, scoped, tag = 'input window, operand 2, single buffered']
    #allocation9 [shape = 'u8[262144]{0}', space=vmem, size = 0x40000, scoped, tag = 'input window, operand 4, single buffered']
    #allocation10 [shape = 's32[1]{0}', space=sflag, size = 0x4, scoped, tag = 'scoped memory for tpu_custom_call.1']
    #allocation11 [shape = 'u8[65536]{0}', space=vmem, size = 0x10000, scoped, tag = 'input window, operand 6, single buffered']
    #allocation12 [shape = 'u8[32768]{0}', space=vmem, size = 0x8000, scoped, tag = 'output window, operand 0']
    %15 = vsyncpa [#allocation4], 0
    %s16 = scalar_lea.sflag [#allocation4], 1
    %17 = vsyncpa %s16, 0
    %18 = vsyncpa [#allocation7], 0
    %s19 = scalar_lea.sflag [#allocation7], 1
    %20 = vsyncpa %s19, 0
    %21 = vsyncpa [#allocation10], 0
    %22 = vsyncpa [#allocation5], 0
    %s23 = scalar_lea.sflag [#allocation5], 1
    %24 = vsyncpa %s23, 0
    loop: start=0, step=1, limit=4
    $region2: #{tpu_custom_call.1} parent=1 // loop_pre_header
      _
    $region3: #{tpu_custom_call.1} parent=1 // loop_header
      %s26 = sphi 0, %s30
      %p27 = scmp.ge.s32.totalorder %s26, 4
      %s36 = sphi 0, %s38
      %s39 = sphi 0, %s36
      %s40 = sphi 0, %s39
      %s56 = sphi 0, %s40
      %s62 = sphi 0, %s64
      %s65 = sphi 0, %s62
      %s66 = sphi 0, %s65
      %s82 = sphi 0, %s66
      %s86 = sphi 0, %s86
      %s88 = sphi 0, %s86
      %s89 = sphi 0, %s88
      %s103 = sphi 0, %s89
      %s107 = sphi 0, %s107
      %s109 = sphi 0, %s107
      %s110 = sphi 0, %s109
      %s124 = sphi 0, %s110
      %s128 = sphi 0, %s128
      %s130 = sphi 0, %s128
      %s131 = sphi 0, %s130
      %s145 = sphi 0, %s131
      %s149 = sphi 0, %s149
      %s151 = sphi 0, %s149
      %s152 = sphi 0, %s151
      %s166 = sphi 0, %s152
      %s170 = sphi 0, %s170
      %s172 = sphi 0, %s170
      %s173 = sphi 0, %s172
      %s187 = sphi 0, %s173
      %s191 = sphi 0, %s191
      %s193 = sphi 0, %s191
      %s194 = sphi 0, %s193
      %s208 = sphi 0, %s194
      %s212 = sphi 0, %s212
      %s214 = sphi 0, %s212
      %s215 = sphi 0, %s214
      %s229 = sphi 0, %s215
      %s233 = sphi 0, %s233
      %s235 = sphi 0, %s233
      %s236 = sphi 0, %s235
      %s250 = sphi 0, %s236
      %s256 = sphi 0, %s258
      %s259 = sphi 0, %s256
      %s260 = sphi 0, %s259
      %s276 = sphi 0, %s260
    $region4: #{tpu_custom_call.1} parent=1 // loop_header_branch
      %29 = sbr.rel (%p27) target = $region8
    $region5: #{tpu_custom_call.1} parent=1 // loop_body
      %s31 = ssub.s32 %s26, 1
      %s32 = ssub.s32 %s26, 2
      %s33 = sadd.s32 %s26, 1
      %s34 = ssub.s32 %s26, %s33
      %p35 = scmp.eq.s32.totalorder %s34, 0
      %s37 = sadd.s32 %s36, 1
      %s38 = scalar_select %p35, %s36, %s37
      %p41 = pneg %p35
      %p42 = scmp.eq.s32.totalorder %s26, 1
      %p43 = por %p41, %p42
      %p44 = scmp.ne.s32.totalorder %s36, %s39
      %p45 = scmp.eq.s32.totalorder %s26, 0
      %p46 = por %p44, %p45
      %p47 = scmp.ne.s32.totalorder %s36, %s39
      %p48 = scmp.eq.s32.totalorder %s31, 1
      %p49 = por %p47, %p48
      %p50 = scmp.ne.s32.totalorder %s39, %s40
      %p51 = scmp.eq.s32.totalorder %s31, 0
      %p52 = por %p50, %p51
      %p53 = scmp.ne.s32.totalorder %s39, %s40
      %p54 = scmp.eq.s32.totalorder %s32, 1
      %p55 = por %p53, %p54
      %p57 = scmp.ne.s32.totalorder %s40, %s56
      %p58 = scmp.eq.s32.totalorder %s32, 0
      %p59 = por %p57, %p58
      %s60 = ssub.s32 %s26, %s33
      %p61 = scmp.eq.s32.totalorder %s60, 0
      %s63 = sadd.s32 %s62, 1
      %s64 = scalar_select %p61, %s62, %s63
      %p67 = pneg %p61
      %p68 = scmp.eq.s32.totalorder %s26, 1
      %p69 = por %p67, %p68
      %p70 = scmp.ne.s32.totalorder %s62, %s65
      %p71 = scmp.eq.s32.totalorder %s26, 0
      %p72 = por %p70, %p71
      %p73 = scmp.ne.s32.totalorder %s62, %s65
      %p74 = scmp.eq.s32.totalorder %s31, 1
      %p75 = por %p73, %p74
      %p76 = scmp.ne.s32.totalorder %s65, %s66
      %p77 = scmp.eq.s32.totalorder %s31, 0
      %p78 = por %p76, %p77
      %p79 = scmp.ne.s32.totalorder %s65, %s66
      %p80 = scmp.eq.s32.totalorder %s32, 1
      %p81 = por %p79, %p80
      %p83 = scmp.ne.s32.totalorder %s66, %s82
      %p84 = scmp.eq.s32.totalorder %s32, 0
      %p85 = por %p83, %p84
      %s87 = sadd.s32 %s86, 1
      %p90 = scmp.eq.s32.totalorder %s26, 1
      %p91 = scmp.ne.s32.totalorder %s86, %s88
      %p92 = scmp.eq.s32.totalorder %s26, 0
      %p93 = por %p91, %p92
      %p94 = scmp.ne.s32.totalorder %s86, %s88
      %p95 = scmp.eq.s32.totalorder %s31, 1
      %p96 = por %p94, %p95
      %p97 = scmp.ne.s32.totalorder %s88, %s89
      %p98 = scmp.eq.s32.totalorder %s31, 0
      %p99 = por %p97, %p98
      %p100 = scmp.ne.s32.totalorder %s88, %s89
      %p101 = scmp.eq.s32.totalorder %s32, 1
      %p102 = por %p100, %p101
      %p104 = scmp.ne.s32.totalorder %s89, %s103
      %p105 = scmp.eq.s32.totalorder %s32, 0
      %p106 = por %p104, %p105
      %s108 = sadd.s32 %s107, 1
      %p111 = scmp.eq.s32.totalorder %s26, 1
      %p112 = scmp.ne.s32.totalorder %s107, %s109
      %p113 = scmp.eq.s32.totalorder %s26, 0
      %p114 = por %p112, %p113
      %p115 = scmp.ne.s32.totalorder %s107, %s109
      %p116 = scmp.eq.s32.totalorder %s31, 1
      %p117 = por %p115, %p116
      %p118 = scmp.ne.s32.totalorder %s109, %s110
      %p119 = scmp.eq.s32.totalorder %s31, 0
      %p120 = por %p118, %p119
      %p121 = scmp.ne.s32.totalorder %s109, %s110
      %p122 = scmp.eq.s32.totalorder %s32, 1
      %p123 = por %p121, %p122
      %p125 = scmp.ne.s32.totalorder %s110, %s124
      %p126 = scmp.eq.s32.totalorder %s32, 0
      %p127 = por %p125, %p126
      %s129 = sadd.s32 %s128, 1
      %p132 = scmp.eq.s32.totalorder %s26, 1
      %p133 = scmp.ne.s32.totalorder %s128, %s130
      %p134 = scmp.eq.s32.totalorder %s26, 0
      %p135 = por %p133, %p134
      %p136 = scmp.ne.s32.totalorder %s128, %s130
      %p137 = scmp.eq.s32.totalorder %s31, 1
      %p138 = por %p136, %p137
      %p139 = scmp.ne.s32.totalorder %s130, %s131
      %p140 = scmp.eq.s32.totalorder %s31, 0
      %p141 = por %p139, %p140
      %p142 = scmp.ne.s32.totalorder %s130, %s131
      %p143 = scmp.eq.s32.totalorder %s32, 1
      %p144 = por %p142, %p143
      %p146 = scmp.ne.s32.totalorder %s131, %s145
      %p147 = scmp.eq.s32.totalorder %s32, 0
      %p148 = por %p146, %p147
      %s150 = sadd.s32 %s149, 1
      %p153 = scmp.eq.s32.totalorder %s26, 1
      %p154 = scmp.ne.s32.totalorder %s149, %s151
      %p155 = scmp.eq.s32.totalorder %s26, 0
      %p156 = por %p154, %p155
      %p157 = scmp.ne.s32.totalorder %s149, %s151
      %p158 = scmp.eq.s32.totalorder %s31, 1
      %p159 = por %p157, %p158
      %p160 = scmp.ne.s32.totalorder %s151, %s152
      %p161 = scmp.eq.s32.totalorder %s31, 0
      %p162 = por %p160, %p161
      %p163 = scmp.ne.s32.totalorder %s151, %s152
      %p164 = scmp.eq.s32.totalorder %s32, 1
      %p165 = por %p163, %p164
      %p167 = scmp.ne.s32.totalorder %s152, %s166
      %p168 = scmp.eq.s32.totalorder %s32, 0
      %p169 = por %p167, %p168
      %s171 = sadd.s32 %s170, 1
      %p174 = scmp.eq.s32.totalorder %s26, 1
      %p175 = scmp.ne.s32.totalorder %s170, %s172
      %p176 = scmp.eq.s32.totalorder %s26, 0
      %p177 = por %p175, %p176
      %p178 = scmp.ne.s32.totalorder %s170, %s172
      %p179 = scmp.eq.s32.totalorder %s31, 1
      %p180 = por %p178, %p179
      %p181 = scmp.ne.s32.totalorder %s172, %s173
      %p182 = scmp.eq.s32.totalorder %s31, 0
      %p183 = por %p181, %p182
      %p184 = scmp.ne.s32.totalorder %s172, %s173
      %p185 = scmp.eq.s32.totalorder %s32, 1
      %p186 = por %p184, %p185
      %p188 = scmp.ne.s32.totalorder %s173, %s187
      %p189 = scmp.eq.s32.totalorder %s32, 0
      %p190 = por %p188, %p189
      %s192 = sadd.s32 %s191, 1
      %p195 = scmp.eq.s32.totalorder %s26, 1
      %p196 = scmp.ne.s32.totalorder %s191, %s193
      %p197 = scmp.eq.s32.totalorder %s26, 0
      %p198 = por %p196, %p197
      %p199 = scmp.ne.s32.totalorder %s191, %s193
      %p200 = scmp.eq.s32.totalorder %s31, 1
      %p201 = por %p199, %p200
      %p202 = scmp.ne.s32.totalorder %s193, %s194
      %p203 = scmp.eq.s32.totalorder %s31, 0
      %p204 = por %p202, %p203
      %p205 = scmp.ne.s32.totalorder %s193, %s194
      %p206 = scmp.eq.s32.totalorder %s32, 1
      %p207 = por %p205, %p206
      %p209 = scmp.ne.s32.totalorder %s194, %s208
      %p210 = scmp.eq.s32.totalorder %s32, 0
      %p211 = por %p209, %p210
      %s213 = sadd.s32 %s212, 1
      %p216 = scmp.eq.s32.totalorder %s26, 1
      %p217 = scmp.ne.s32.totalorder %s212, %s214
      %p218 = scmp.eq.s32.totalorder %s26, 0
      %p219 = por %p217, %p218
      %p220 = scmp.ne.s32.totalorder %s212, %s214
      %p221 = scmp.eq.s32.totalorder %s31, 1
      %p222 = por %p220, %p221
      %p223 = scmp.ne.s32.totalorder %s214, %s215
      %p224 = scmp.eq.s32.totalorder %s31, 0
      %p225 = por %p223, %p224
      %p226 = scmp.ne.s32.totalorder %s214, %s215
      %p227 = scmp.eq.s32.totalorder %s32, 1
      %p228 = por %p226, %p227
      %p230 = scmp.ne.s32.totalorder %s215, %s229
      %p231 = scmp.eq.s32.totalorder %s32, 0
      %p232 = por %p230, %p231
      %s234 = sadd.s32 %s233, 1
      %p237 = scmp.eq.s32.totalorder %s26, 1
      %p238 = scmp.ne.s32.totalorder %s233, %s235
      %p239 = scmp.eq.s32.totalorder %s26, 0
      %p240 = por %p238, %p239
      %p241 = scmp.ne.s32.totalorder %s233, %s235
      %p242 = scmp.eq.s32.totalorder %s31, 1
      %p243 = por %p241, %p242
      %p244 = scmp.ne.s32.totalorder %s235, %s236
      %p245 = scmp.eq.s32.totalorder %s31, 0
      %p246 = por %p244, %p245
      %p247 = scmp.ne.s32.totalorder %s235, %s236
      %p248 = scmp.eq.s32.totalorder %s32, 1
      %p249 = por %p247, %p248
      %p251 = scmp.ne.s32.totalorder %s236, %s250
      %p252 = scmp.eq.s32.totalorder %s32, 0
      %p253 = por %p251, %p252
      %s254 = ssub.s32 %s26, %s33
      %p255 = scmp.eq.s32.totalorder %s254, 0
      %s257 = sadd.s32 %s256, 1
      %s258 = scalar_select %p255, %s256, %s257
      %p261 = pneg %p255
      %p262 = scmp.eq.s32.totalorder %s26, 1
      %p263 = por %p261, %p262
      %p264 = scmp.ne.s32.totalorder %s256, %s259
      %p265 = scmp.eq.s32.totalorder %s26, 0
      %p266 = por %p264, %p265
      %p267 = scmp.ne.s32.totalorder %s256, %s259
      %p268 = scmp.eq.s32.totalorder %s31, 1
      %p269 = por %p267, %p268
      %p270 = scmp.ne.s32.totalorder %s259, %s260
      %p271 = scmp.eq.s32.totalorder %s31, 0
      %p272 = por %p270, %p271
      %p273 = scmp.ne.s32.totalorder %s259, %s260
      %p274 = scmp.eq.s32.totalorder %s32, 1
      %p275 = por %p273, %p274
      %p277 = scmp.ne.s32.totalorder %s260, %s276
      %p278 = scmp.eq.s32.totalorder %s32, 0
      %p279 = por %p277, %p278
      %p280 = scmp.le.s32.totalorder 1, %s26
      %p281 = scmp.lt.s32.totalorder %s26, 3
      %p282 = pnand %p280, %p281
      %p283 = pneg %p282
      // Predicated region
      $region9: #{tpu_custom_call.1} parent=5 // pred_check
        _
      $region10: #{tpu_custom_call.1} parent=5 // pred_check_branch
        %285 = sbr.rel (%p282) target = $region12
      $region11: #{tpu_custom_call.1} parent=5 // pred_region
        %s286 = ssub.s32 %s26, 1
        // Predicated region
        $region13: #{tpu_custom_call.1} parent=11 // pred_check
          %p287 = pneg %p99
        $region14: #{tpu_custom_call.1} parent=11 // pred_check_branch
          %289 = sbr.rel (%p287) target = $region16
        $region15: #{tpu_custom_call.1} parent=11 // pred_region
          %s291 = ssub.s32 2048, 2048
          %292 = vsyncadd [#allocation7], %s291
          %s293 = sshll.u32 [#allocation8], 4
          %s294 = int_to_ptr.vmem [resolvable:$true] %s293
          %299 = dma.hbm_to_vmem [thread:$0]  %s2, 2048, %s294, [#allocation7], 128, 128, 8
        $region16: #{tpu_custom_call.1} parent=11 // pred_fallthru
          _
        // Predicated region
        $region17: #{tpu_custom_call.1} parent=11 // pred_check
          %p300 = pneg %p120
        $region18: #{tpu_custom_call.1} parent=11 // pred_check_branch
          %302 = sbr.rel (%p300) target = $region20
        $region19: #{tpu_custom_call.1} parent=11 // pred_region
          _
        $region20: #{tpu_custom_call.1} parent=11 // pred_fallthru
          _
        // Predicated region
        $region21: #{tpu_custom_call.1} parent=11 // pred_check
          %p303 = pneg %p141
        $region22: #{tpu_custom_call.1} parent=11 // pred_check_branch
          %305 = sbr.rel (%p303) target = $region24
        $region23: #{tpu_custom_call.1} parent=11 // pred_region
          %s307 = ssub.s32 8192, 8192
          %308 = vsyncadd [#allocation10], %s307
          %s309 = sshll.u32 [#allocation9], 4
          %s310 = int_to_ptr.vmem [resolvable:$true] %s309
          %315 = dma.hbm_to_vmem [thread:$0]  %s4, 8192, %s310, [#allocation10], 256, 256, 16
        $region24: #{tpu_custom_call.1} parent=11 // pred_fallthru
          _
        // Predicated region
        $region25: #{tpu_custom_call.1} parent=11 // pred_check
          %p316 = pneg %p162
        $region26: #{tpu_custom_call.1} parent=11 // pred_check_branch
          %318 = sbr.rel (%p316) target = $region28
        $region27: #{tpu_custom_call.1} parent=11 // pred_region
          _
        $region28: #{tpu_custom_call.1} parent=11 // pred_fallthru
          _
        // Predicated region
        $region29: #{tpu_custom_call.1} parent=11 // pred_check
          %p319 = pneg %p183
        $region30: #{tpu_custom_call.1} parent=11 // pred_check_branch
          %321 = sbr.rel (%p319) target = $region32
        $region31: #{tpu_custom_call.1} parent=11 // pred_region
          %s323 = ssub.s32 2048, 2048
          %324 = vsyncadd [#allocation10], %s323
          %s325 = sshll.u32 [#allocation11], 4
          %s326 = int_to_ptr.vmem [resolvable:$true] %s325
          %331 = dma.hbm_to_vmem [thread:$0]  %s6, 2048, %s326, [#allocation10], 64, 64, 4
        $region32: #{tpu_custom_call.1} parent=11 // pred_fallthru
          _
        // Predicated region
        $region33: #{tpu_custom_call.1} parent=11 // pred_check
          %p332 = pneg %p204
        $region34: #{tpu_custom_call.1} parent=11 // pred_check_branch
          %334 = sbr.rel (%p332) target = $region36
        $region35: #{tpu_custom_call.1} parent=11 // pred_region
          _
        $region36: #{tpu_custom_call.1} parent=11 // pred_fallthru
          _
        // Predicated region
        $region37: #{tpu_custom_call.1} parent=11 // pred_check
          %p335 = pneg %p225
        $region38: #{tpu_custom_call.1} parent=11 // pred_check_branch
          %337 = sbr.rel (%p335) target = $region40
        $region39: #{tpu_custom_call.1} parent=11 // pred_region
          _
        $region40: #{tpu_custom_call.1} parent=11 // pred_fallthru
          _
        // Predicated region
        $region41: #{tpu_custom_call.1} parent=11 // pred_check
          %p338 = pneg %p246
        $region42: #{tpu_custom_call.1} parent=11 // pred_check_branch
          %340 = sbr.rel (%p338) target = $region44
        $region43: #{tpu_custom_call.1} parent=11 // pred_region
          _
        $region44: #{tpu_custom_call.1} parent=11 // pred_fallthru
          _
      $region12: #{tpu_custom_call.1} parent=5 // pred_fallthru
        _
      %p341 = scmp.lt.s32.totalorder %s26, 2
      // Predicated region
      $region45: #{tpu_custom_call.1} parent=5 // pred_check
        %p342 = pneg %p341
      $region46: #{tpu_custom_call.1} parent=5 // pred_check_branch
        %344 = sbr.rel (%p342) target = $region48
      $region47: #{tpu_custom_call.1} parent=5 // pred_region
        // Predicated region
        $region49: #{tpu_custom_call.1} parent=47 // pred_check
          %p345 = pneg %p46
        $region50: #{tpu_custom_call.1} parent=47 // pred_check_branch
          %347 = sbr.rel (%p345) target = $region52
        $region51: #{tpu_custom_call.1} parent=47 // pred_region
          %s348 = sand.u32 %s36, 1
          %s349 = scalar_lea.sflag [#allocation4], %s348
          %s350 = sand.u32 %s36, 1
          %s351 = smul.addr %s350, 32
          %s352 = scalar_lea.vmem [#allocation3], %s351
          %s353 = smul.u32 4, %s26
          %s355 = ssub.s32 512, 512
          %356 = vsyncadd %s349, %s355
          %s357 = smul.addr %s353, 128
          %s358 = scalar_lea.hbm %s0, %s357
          %s359 = sshll.u32 %s352, 4
          %s360 = int_to_ptr.vmem [resolvable:$true] %s359
          %365 = dma.hbm_to_vmem [thread:$0]  %s358, 512, %s360, %s349, 128, 128, 8
        $region52: #{tpu_custom_call.1} parent=47 // pred_fallthru
          _
        // Predicated region
        $region53: #{tpu_custom_call.1} parent=47 // pred_check
          %p366 = pneg %p72
        $region54: #{tpu_custom_call.1} parent=47 // pred_check_branch
          %368 = sbr.rel (%p366) target = $region56
        $region55: #{tpu_custom_call.1} parent=47 // pred_region
          %s369 = sand.u32 %s26, 1
          %s370 = scalar_lea.sflag [#allocation7], %s369
          %s371 = sand.u32 %s62, 1
          %s372 = smul.addr %s371, 96
          %s373 = scalar_lea.vmem [#allocation6], %s372
          %s374 = smul.u32 6, %s26
          %s376 = ssub.s32 1536, 1536
          %377 = vsyncadd %s370, %s376
          %s378 = smul.addr %s374, 2
          %s379 = smul.addr %s378, 128
          %s380 = scalar_lea.hbm %s1, %s379
          %s381 = sshll.u32 %s373, 4
          %s382 = int_to_ptr.vmem [resolvable:$true] %s381
          %387 = dma.hbm_to_vmem [thread:$0]  %s380, 1536, %s382, %s370, 256, 256, 16
        $region56: #{tpu_custom_call.1} parent=47 // pred_fallthru
          _
      $region48: #{tpu_custom_call.1} parent=5 // pred_fallthru
        _
      %p388 = scmp.le.s32.totalorder 1, %s26
      %p389 = scmp.lt.s32.totalorder %s26, 3
      %p390 = pnand %p388, %p389
      %p391 = pneg %p390
      // Predicated region
      $region57: #{tpu_custom_call.1} parent=5 // pred_check
        _
      $region58: #{tpu_custom_call.1} parent=5 // pred_check_branch
        %393 = sbr.rel (%p390) target = $region60
      $region59: #{tpu_custom_call.1} parent=5 // pred_region
        %s394 = ssub.s32 %s26, 1
        %s395 = sand.u32 %s39, 1
        %s396 = scalar_lea.sflag [#allocation4], %s395
        %s397 = sand.u32 %s39, 1
        %s398 = smul.addr %s397, 32
        %s399 = scalar_lea.vmem [#allocation3], %s398
        // Predicated region
        $region61: #{tpu_custom_call.1} parent=59 // pred_check
          %p400 = pneg %p52
        $region62: #{tpu_custom_call.1} parent=59 // pred_check_branch
          %402 = sbr.rel (%p400) target = $region64
        $region63: #{tpu_custom_call.1} parent=59 // pred_region
          %403 = dma.done %s396, 512
        $region64: #{tpu_custom_call.1} parent=59 // pred_fallthru
          _
        %s404 = sand.u32 %s31, 1
        %s405 = scalar_lea.sflag [#allocation7], %s404
        %s406 = sand.u32 %s65, 1
        %s407 = smul.addr %s406, 96
        %s408 = scalar_lea.vmem [#allocation6], %s407
        // Predicated region
        $region65: #{tpu_custom_call.1} parent=59 // pred_check
          %p409 = pneg %p78
        $region66: #{tpu_custom_call.1} parent=59 // pred_check_branch
          %411 = sbr.rel (%p409) target = $region68
        $region67: #{tpu_custom_call.1} parent=59 // pred_region
          %412 = dma.done %s405, 1536
        $region68: #{tpu_custom_call.1} parent=59 // pred_fallthru
          _
        // Predicated region
        $region69: #{tpu_custom_call.1} parent=59 // pred_check
          %p413 = pneg %p99
        $region70: #{tpu_custom_call.1} parent=59 // pred_check_branch
          %415 = sbr.rel (%p413) target = $region72
        $region71: #{tpu_custom_call.1} parent=59 // pred_region
          %416 = dma.done [#allocation7], 2048
        $region72: #{tpu_custom_call.1} parent=59 // pred_fallthru
          _
        // Predicated region
        $region73: #{tpu_custom_call.1} parent=59 // pred_check
          %p417 = pneg %p141
        $region74: #{tpu_custom_call.1} parent=59 // pred_check_branch
          %419 = sbr.rel (%p417) target = $region76
        $region75: #{tpu_custom_call.1} parent=59 // pred_region
          %420 = dma.done [#allocation10], 8192
        $region76: #{tpu_custom_call.1} parent=59 // pred_fallthru
          _
        // Predicated region
        $region77: #{tpu_custom_call.1} parent=59 // pred_check
          %p421 = pneg %p183
        $region78: #{tpu_custom_call.1} parent=59 // pred_check_branch
          %423 = sbr.rel (%p421) target = $region80
        $region79: #{tpu_custom_call.1} parent=59 // pred_region
          %424 = dma.done [#allocation10], 2048
        $region80: #{tpu_custom_call.1} parent=59 // pred_fallthru
          _
        %s425 = sand.u32 %s39, 1
        %s426 = scalar_lea.sflag [#allocation4], %s425
        %s427 = sand.u32 %s39, 1
        %s428 = smul.addr %s427, 32
        %s429 = scalar_lea.vmem [#allocation3], %s428
        %p430 = pneg %p52
        %p431 = pneg %p49
        %s432 = sand.u32 %s31, 1
        %s433 = scalar_lea.sflag [#allocation7], %s432
        %s434 = sand.u32 %s65, 1
        %s435 = smul.addr %s434, 96
        %s436 = scalar_lea.vmem [#allocation6], %s435
        %p437 = pneg %p78
        %p438 = pneg %p75
        %p439 = pneg %p99
        %p440 = pneg %p96
        %p441 = pneg %p120
        %p442 = pneg %p117
        %p443 = pneg %p141
        %p444 = pneg %p138
        %p445 = pneg %p162
        %p446 = pneg %p159
        %p447 = pneg %p183
        %p448 = pneg %p180
        %p449 = pneg %p204
        %p450 = pneg %p201
        %p451 = pneg %p225
        %p452 = pneg %p222
        %p453 = pneg %p246
        %p454 = pneg %p243
        %p455 = pneg %p272
        %p456 = pneg %p269
        %s457 = sand.u32 %s259, 1
        %s458 = scalar_lea.sflag [#allocation5], %s457
        %s459 = sand.u32 %s259, 1
        %s460 = smul.addr %s459, 32
        %s461 = scalar_lea.vmem [#allocation12], %s460
        %s462 = smul.u32 4, %s31
        %s463 = smul.u32 6, %s31
        %s464 = smul.u32 4, %s31
        %v466 = vld [vmem:[%s399] sm:$0xff]
        %v467 = vld [vmem:[%s399 + $0x8] sm:$0xff]
        %v468 = vld [vmem:[%s399 + $0x10] sm:$0xff]
        %v469 = vld [vmem:[%s399 + $0x18] sm:$0xff]
        %v470 = vld [vmem:[%s408] sm:$0xff]
        %v471 = vld [vmem:[%s408 + $0x8] sm:$0xff]
        %v472 = vld [vmem:[%s408 + $0x10] sm:$0xff]
        %v473 = vld [vmem:[%s408 + $0x18] sm:$0xff]
        %v474 = vld [vmem:[%s408 + $0x20] sm:$0xff]
        %v475 = vld [vmem:[%s408 + $0x28] sm:$0xff]
        %v476 = vld [vmem:[%s408 + $0x30] sm:$0xff]
        %v477 = vld [vmem:[%s408 + $0x38] sm:$0xff]
        %v478 = vld [vmem:[%s408 + $0x40] sm:$0xff]
        %v479 = vld [vmem:[%s408 + $0x48] sm:$0xff]
        %v480 = vld [vmem:[%s408 + $0x50] sm:$0xff]
        %v481 = vld [vmem:[%s408 + $0x58] sm:$0xff]
        %v482 = vpack.c.bf16 %v467, %v466
        %v483 = vpack.c.bf16 %v469, %v468
        %v484 = vld [vmem:[#allocation8] sm:$0xff]
        %v485 = vld [vmem:[#allocation8 + $0x8] sm:$0xff]
        %v486 = vld [vmem:[#allocation8 + $0x10] sm:$0xff]
        %v487 = vld [vmem:[#allocation8 + $0x18] sm:$0xff]
        %v488 = vld [vmem:[#allocation8 + $0x20] sm:$0xff]
        %v489 = vld [vmem:[#allocation8 + $0x28] sm:$0xff]
        %v490 = vld [vmem:[#allocation8 + $0x30] sm:$0xff]
        %v491 = vld [vmem:[#allocation8 + $0x38] sm:$0xff]
        %v492 = vld [vmem:[#allocation8 + $0x40] sm:$0xff]
        %v493 = vld [vmem:[#allocation8 + $0x48] sm:$0xff]
        %v494 = vld [vmem:[#allocation8 + $0x50] sm:$0xff]
        %v495 = vld [vmem:[#allocation8 + $0x58] sm:$0xff]
        %v496 = vld [vmem:[#allocation8 + $0x60] sm:$0xff]
        %v497 = vld [vmem:[#allocation8 + $0x68] sm:$0xff]
        %v498 = vld [vmem:[#allocation8 + $0x70] sm:$0xff]
        %v499 = vld [vmem:[#allocation8 + $0x78] sm:$0xff]
        %v500 = vld [vmem:[%s3] sm:$0x3]
        %v502 = vlaneseq
        %v503 = vshrl.u32 %v502, 7
        %v504 = vsub.s32 0, %v503
        %v505 = vrot.slane %v500, %v504
        %v506 = vlaneseq
        %v507 = vshrl.u32 %v506, 7
        %v508 = vsub.s32 1, %v507
        %v509 = vrot.slane %v500, %v508
        %v528 = vunpack.c.l.b16 %v484
        %v529 = vunpack.c.h.b16 %v484
        %v530 = vunpack.c.l.b16 %v485
        %v531 = vunpack.c.h.b16 %v485
        %v532 = vunpack.c.l.b16 %v486
        %v533 = vunpack.c.h.b16 %v486
        %v534 = vunpack.c.l.b16 %v487
        %v535 = vunpack.c.h.b16 %v487
        %v536 = vunpack.c.l.b16 %v488
        %v537 = vunpack.c.h.b16 %v488
        %v538 = vunpack.c.l.b16 %v489
        %v539 = vunpack.c.h.b16 %v489
        %v540 = vunpack.c.l.b16 %v490
        %v541 = vunpack.c.h.b16 %v490
        %v542 = vunpack.c.l.b16 %v491
        %v543 = vunpack.c.h.b16 %v491
        %v544 = vunpack.c.l.b16 %v492
        %v545 = vunpack.c.h.b16 %v492
        %v546 = vunpack.c.l.b16 %v493
        %v547 = vunpack.c.h.b16 %v493
        %v548 = vunpack.c.l.b16 %v494
        %v549 = vunpack.c.h.b16 %v494
        %v550 = vunpack.c.l.b16 %v495
        %v551 = vunpack.c.h.b16 %v495
        %v552 = vunpack.c.l.b16 %v496
        %v553 = vunpack.c.h.b16 %v496
        %v554 = vunpack.c.l.b16 %v497
        %v555 = vunpack.c.h.b16 %v497
        %v556 = vunpack.c.l.b16 %v498
        %v557 = vunpack.c.h.b16 %v498
        %v558 = vunpack.c.l.b16 %v499
        %v559 = vunpack.c.h.b16 %v499
        %v560 = vpack.c.b16 %v530, %v528
        %v561 = vpack.c.b16 %v531, %v529
        %v562 = vpack.c.b16 %v534, %v532
        %v563 = vpack.c.b16 %v535, %v533
        %v564 = vpack.c.b16 %v538, %v536
        %v565 = vpack.c.b16 %v539, %v537
        %v566 = vpack.c.b16 %v542, %v540
        %v567 = vpack.c.b16 %v543, %v541
        %v568 = vpack.c.b16 %v546, %v544
        %v569 = vpack.c.b16 %v547, %v545
        %v570 = vpack.c.b16 %v550, %v548
        %v571 = vpack.c.b16 %v551, %v549
        %v572 = vpack.c.b16 %v554, %v552
        %v573 = vpack.c.b16 %v555, %v553
        %v574 = vpack.c.b16 %v558, %v556
        %v575 = vpack.c.b16 %v559, %v557
        %592 = vmatprep.subr.bf16.mxu0 %v575
        %593 = vmatpush1.bf16.msra.mxu0 %v574
        %594 = vmatprep.subr.bf16.mxu0 %v573
        %595 = vmatpush1.bf16.msra.mxu0 %v572
        %596 = vmatprep.subr.bf16.mxu0 %v571
        %597 = vmatpush1.bf16.msra.mxu0 %v570
        %598 = vmatprep.subr.bf16.mxu0 %v569
        %599 = vmatpush1.bf16.msra.mxu0 %v568
        %600 = vmatprep.subr.bf16.mxu0 %v567
        %601 = vmatpush1.bf16.msra.mxu0 %v566
        %602 = vmatprep.subr.bf16.mxu0 %v565
        %603 = vmatpush1.bf16.msra.mxu0 %v564
        %604 = vmatprep.subr.bf16.mxu0 %v563
        %605 = vmatpush1.bf16.msra.mxu0 %v562
        %606 = vmatprep.subr.bf16.mxu0 %v561
        %607 = vmatpush1.bf16.msra.mxu0 %v560
        %608 = vmatprep.subr.bf16.mxu0 0
        %609 = vmatpush2.bf16.msra.mxu0 0
        %610 = vmatprep.subr.bf16.mxu0 0
        %611 = vmatpush2.bf16.msra.mxu0 0
        %612 = vmatprep.subr.bf16.mxu0 0
        %613 = vmatpush2.bf16.msra.mxu0 0
        %614 = vmatprep.subr.bf16.mxu0 0
        %615 = vmatpush2.bf16.msra.mxu0 0
        %616 = vmatprep.subr.bf16.mxu0 0
        %617 = vmatpush2.bf16.msra.mxu0 0
        %618 = vmatprep.subr.bf16.mxu0 0
        %619 = vmatpush2.bf16.msra.mxu0 0
        %620 = vmatprep.subr.bf16.mxu0 0
        %621 = vmatpush2.bf16.msra.mxu0 0
        %622 = vmatprep.subr.bf16.mxu0 0
        %623 = vmatpush2.bf16.msra.mxu0 0
        %624 = vmatprep.mubr.bf16.mxu0 0
        %625 = vmatmul.mubr.bf16.gmra.mxu0 %v482
        %v626 = vpop.f32.mrf.mxu0
        %v627 = vadd.f32 %v505, %v626
        %v628 = vpop.f32.mrf.mxu0
        %v629 = vadd.f32 %v509, %v628
        %v630 = vpop.f32.mrf.mxu0
        %v631 = vadd.f32 %v505, %v630
        %v632 = vpop.f32.mrf.mxu0
        %v633 = vadd.f32 %v509, %v632
        %634 = vmatprep.mubr.bf16.mxu0 0
        %635 = vmatmul.mubr.bf16.gmra.mxu0 %v483
        %v636 = vpop.f32.mrf.mxu0
        %v637 = vadd.f32 %v505, %v636
        %v638 = vpop.f32.mrf.mxu0
        %v639 = vadd.f32 %v509, %v638
        %v640 = vpop.f32.mrf.mxu0
        %v641 = vadd.f32 %v505, %v640
        %v642 = vpop.f32.mrf.mxu0
        %v643 = vadd.f32 %v509, %v642
        %644 = vdwg.mxu0
        %v645 = vpack.c.bf16 %v631, %v627
        %v646 = vpack.c.bf16 %v633, %v629
        %v647 = vpack.c.bf16 %v641, %v637
        %v648 = vpack.c.bf16 %v643, %v639
        %v649 = vpack.c.bf16 %v472, %v470
        %v650 = vpack.c.bf16 %v473, %v471
        %v651 = vpack.c.bf16 %v476, %v474
        %v652 = vpack.c.bf16 %v477, %v475
        %v653 = vpack.c.bf16 %v480, %v478
        %v654 = vpack.c.bf16 %v481, %v479
        %v655 = vld [vmem:[#allocation9] sm:$0xff]
        %v656 = vld [vmem:[#allocation9 + $0x8] sm:$0xff]
        %v657 = vld [vmem:[#allocation9 + $0x10] sm:$0xff]
        %v658 = vld [vmem:[#allocation9 + $0x18] sm:$0xff]
        %v659 = vld [vmem:[#allocation9 + $0x20] sm:$0xff]
        %v660 = vld [vmem:[#allocation9 + $0x28] sm:$0xff]
        %v661 = vld [vmem:[#allocation9 + $0x30] sm:$0xff]
        %v662 = vld [vmem:[#allocation9 + $0x38] sm:$0xff]
        %v663 = vld [vmem:[#allocation9 + $0x40] sm:$0xff]
        %v664 = vld [vmem:[#allocation9 + $0x48] sm:$0xff]
        %v665 = vld [vmem:[#allocation9 + $0x50] sm:$0xff]
        %v666 = vld [vmem:[#allocation9 + $0x58] sm:$0xff]
        %v667 = vld [vmem:[#allocation9 + $0x60] sm:$0xff]
        %v668 = vld [vmem:[#allocation9 + $0x68] sm:$0xff]
        %v669 = vld [vmem:[#allocation9 + $0x70] sm:$0xff]
        %v670 = vld [vmem:[#allocation9 + $0x78] sm:$0xff]
        %v671 = vld [vmem:[#allocation9 + $0x80] sm:$0xff]
        %v672 = vld [vmem:[#allocation9 + $0x88] sm:$0xff]
        %v673 = vld [vmem:[#allocation9 + $0x90] sm:$0xff]
        %v674 = vld [vmem:[#allocation9 + $0x98] sm:$0xff]
        %v675 = vld [vmem:[#allocation9 + $0xa0] sm:$0xff]
        %v676 = vld [vmem:[#allocation9 + $0xa8] sm:$0xff]
        %v677 = vld [vmem:[#allocation9 + $0xb0] sm:$0xff]
        %v678 = vld [vmem:[#allocation9 + $0xb8] sm:$0xff]
        %v679 = vld [vmem:[#allocation9 + $0xc0] sm:$0xff]
        %v680 = vld [vmem:[#allocation9 + $0xc8] sm:$0xff]
        %v681 = vld [vmem:[#allocation9 + $0xd0] sm:$0xff]
        %v682 = vld [vmem:[#allocation9 + $0xd8] sm:$0xff]
        %v683 = vld [vmem:[#allocation9 + $0xe0] sm:$0xff]
        %v684 = vld [vmem:[#allocation9 + $0xe8] sm:$0xff]
        %v685 = vld [vmem:[#allocation9 + $0xf0] sm:$0xff]
        %v686 = vld [vmem:[#allocation9 + $0xf8] sm:$0xff]
        %v687 = vld [vmem:[#allocation9 + $0x100] sm:$0xff]
        %v688 = vld [vmem:[#allocation9 + $0x108] sm:$0xff]
        %v689 = vld [vmem:[#allocation9 + $0x110] sm:$0xff]
        %v690 = vld [vmem:[#allocation9 + $0x118] sm:$0xff]
        %v691 = vld [vmem:[#allocation9 + $0x120] sm:$0xff]
        %v692 = vld [vmem:[#allocation9 + $0x128] sm:$0xff]
        %v693 = vld [vmem:[#allocation9 + $0x130] sm:$0xff]
        %v694 = vld [vmem:[#allocation9 + $0x138] sm:$0xff]
        %v695 = vld [vmem:[#allocation9 + $0x140] sm:$0xff]
        %v696 = vld [vmem:[#allocation9 + $0x148] sm:$0xff]
        %v697 = vld [vmem:[#allocation9 + $0x150] sm:$0xff]
        %v698 = vld [vmem:[#allocation9 + $0x158] sm:$0xff]
        %v699 = vld [vmem:[#allocation9 + $0x160] sm:$0xff]
        %v700 = vld [vmem:[#allocation9 + $0x168] sm:$0xff]
        %v701 = vld [vmem:[#allocation9 + $0x170] sm:$0xff]
        %v702 = vld [vmem:[#allocation9 + $0x178] sm:$0xff]
        %v703 = vld [vmem:[#allocation9 + $0x180] sm:$0xff]
        %v704 = vld [vmem:[#allocation9 + $0x188] sm:$0xff]
        %v705 = vld [vmem:[#allocation9 + $0x190] sm:$0xff]
        %v706 = vld [vmem:[#allocation9 + $0x198] sm:$0xff]
        %v707 = vld [vmem:[#allocation9 + $0x1a0] sm:$0xff]
        %v708 = vld [vmem:[#allocation9 + $0x1a8] sm:$0xff]
        %v709 = vld [vmem:[#allocation9 + $0x1b0] sm:$0xff]
        %v710 = vld [vmem:[#allocation9 + $0x1b8] sm:$0xff]
        %v711 = vld [vmem:[#allocation9 + $0x1c0] sm:$0xff]
        %v712 = vld [vmem:[#allocation9 + $0x1c8] sm:$0xff]
        %v713 = vld [vmem:[#allocation9 + $0x1d0] sm:$0xff]
        %v714 = vld [vmem:[#allocation9 + $0x1d8] sm:$0xff]
        %v715 = vld [vmem:[#allocation9 + $0x1e0] sm:$0xff]
        %v716 = vld [vmem:[#allocation9 + $0x1e8] sm:$0xff]
        %v717 = vld [vmem:[#allocation9 + $0x1f0] sm:$0xff]
        %v718 = vld [vmem:[#allocation9 + $0x1f8] sm:$0xff]
        %v719 = vld [vmem:[%s5] sm:$0xf]
        %v721 = vlaneseq
        %v722 = vshrl.u32 %v721, 7
        %v723 = vsub.s32 0, %v722
        %v724 = vrot.slane %v719, %v723
        %v725 = vlaneseq
        %v726 = vshrl.u32 %v725, 7
        %v727 = vsub.s32 1, %v726
        %v728 = vrot.slane %v719, %v727
        %v729 = vlaneseq
        %v730 = vshrl.u32 %v729, 7
        %v731 = vsub.s32 2, %v730
        %v732 = vrot.slane %v719, %v731
        %v733 = vlaneseq
        %v734 = vshrl.u32 %v733, 7
        %v735 = vsub.s32 3, %v734
        %v736 = vrot.slane %v719, %v735
        %v805 = vunpack.c.l.b16 %v655
        %v806 = vunpack.c.h.b16 %v655
        %v807 = vunpack.c.l.b16 %v656
        %v808 = vunpack.c.h.b16 %v656
        %v809 = vunpack.c.l.b16 %v657
        %v810 = vunpack.c.h.b16 %v657
        %v811 = vunpack.c.l.b16 %v658
        %v812 = vunpack.c.h.b16 %v658
        %v813 = vunpack.c.l.b16 %v659
        %v814 = vunpack.c.h.b16 %v659
        %v815 = vunpack.c.l.b16 %v660
        %v816 = vunpack.c.h.b16 %v660
        %v817 = vunpack.c.l.b16 %v661
        %v818 = vunpack.c.h.b16 %v661
        %v819 = vunpack.c.l.b16 %v662
        %v820 = vunpack.c.h.b16 %v662
        %v821 = vunpack.c.l.b16 %v663
        %v822 = vunpack.c.h.b16 %v663
        %v823 = vunpack.c.l.b16 %v664
        %v824 = vunpack.c.h.b16 %v664
        %v825 = vunpack.c.l.b16 %v665
        %v826 = vunpack.c.h.b16 %v665
        %v827 = vunpack.c.l.b16 %v666
        %v828 = vunpack.c.h.b16 %v666
        %v829 = vunpack.c.l.b16 %v667
        %v830 = vunpack.c.h.b16 %v667
        %v831 = vunpack.c.l.b16 %v668
        %v832 = vunpack.c.h.b16 %v668
        %v833 = vunpack.c.l.b16 %v669
        %v834 = vunpack.c.h.b16 %v669
        %v835 = vunpack.c.l.b16 %v670
        %v836 = vunpack.c.h.b16 %v670
        %v837 = vunpack.c.l.b16 %v671
        %v838 = vunpack.c.h.b16 %v671
        %v839 = vunpack.c.l.b16 %v672
        %v840 = vunpack.c.h.b16 %v672
        %v841 = vunpack.c.l.b16 %v673
        %v842 = vunpack.c.h.b16 %v673
        %v843 = vunpack.c.l.b16 %v674
        %v844 = vunpack.c.h.b16 %v674
        %v845 = vunpack.c.l.b16 %v675
        %v846 = vunpack.c.h.b16 %v675
        %v847 = vunpack.c.l.b16 %v676
        %v848 = vunpack.c.h.b16 %v676
        %v849 = vunpack.c.l.b16 %v677
        %v850 = vunpack.c.h.b16 %v677
        %v851 = vunpack.c.l.b16 %v678
        %v852 = vunpack.c.h.b16 %v678
        %v853 = vunpack.c.l.b16 %v679
        %v854 = vunpack.c.h.b16 %v679
        %v855 = vunpack.c.l.b16 %v680
        %v856 = vunpack.c.h.b16 %v680
        %v857 = vunpack.c.l.b16 %v681
        %v858 = vunpack.c.h.b16 %v681
        %v859 = vunpack.c.l.b16 %v682
        %v860 = vunpack.c.h.b16 %v682
        %v861 = vunpack.c.l.b16 %v683
        %v862 = vunpack.c.h.b16 %v683
        %v863 = vunpack.c.l.b16 %v684
        %v864 = vunpack.c.h.b16 %v684
        %v865 = vunpack.c.l.b16 %v685
        %v866 = vunpack.c.h.b16 %v685
        %v867 = vunpack.c.l.b16 %v686
        %v868 = vunpack.c.h.b16 %v686
        %v869 = vunpack.c.l.b16 %v687
        %v870 = vunpack.c.h.b16 %v687
        %v871 = vunpack.c.l.b16 %v688
        %v872 = vunpack.c.h.b16 %v688
        %v873 = vunpack.c.l.b16 %v689
        %v874 = vunpack.c.h.b16 %v689
        %v875 = vunpack.c.l.b16 %v690
        %v876 = vunpack.c.h.b16 %v690
        %v877 = vunpack.c.l.b16 %v691
        %v878 = vunpack.c.h.b16 %v691
        %v879 = vunpack.c.l.b16 %v692
        %v880 = vunpack.c.h.b16 %v692
        %v881 = vunpack.c.l.b16 %v693
        %v882 = vunpack.c.h.b16 %v693
        %v883 = vunpack.c.l.b16 %v694
        %v884 = vunpack.c.h.b16 %v694
        %v885 = vunpack.c.l.b16 %v695
        %v886 = vunpack.c.h.b16 %v695
        %v887 = vunpack.c.l.b16 %v696
        %v888 = vunpack.c.h.b16 %v696
        %v889 = vunpack.c.l.b16 %v697
        %v890 = vunpack.c.h.b16 %v697
        %v891 = vunpack.c.l.b16 %v698
        %v892 = vunpack.c.h.b16 %v698
        %v893 = vunpack.c.l.b16 %v699
        %v894 = vunpack.c.h.b16 %v699
        %v895 = vunpack.c.l.b16 %v700
        %v896 = vunpack.c.h.b16 %v700
        %v897 = vunpack.c.l.b16 %v701
        %v898 = vunpack.c.h.b16 %v701
        %v899 = vunpack.c.l.b16 %v702
        %v900 = vunpack.c.h.b16 %v702
        %v901 = vunpack.c.l.b16 %v703
        %v902 = vunpack.c.h.b16 %v703
        %v903 = vunpack.c.l.b16 %v704
        %v904 = vunpack.c.h.b16 %v704
        %v905 = vunpack.c.l.b16 %v705
        %v906 = vunpack.c.h.b16 %v705
        %v907 = vunpack.c.l.b16 %v706
        %v908 = vunpack.c.h.b16 %v706
        %v909 = vunpack.c.l.b16 %v707
        %v910 = vunpack.c.h.b16 %v707
        %v911 = vunpack.c.l.b16 %v708
        %v912 = vunpack.c.h.b16 %v708
        %v913 = vunpack.c.l.b16 %v709
        %v914 = vunpack.c.h.b16 %v709
        %v915 = vunpack.c.l.b16 %v710
        %v916 = vunpack.c.h.b16 %v710
        %v917 = vunpack.c.l.b16 %v711
        %v918 = vunpack.c.h.b16 %v711
        %v919 = vunpack.c.l.b16 %v712
        %v920 = vunpack.c.h.b16 %v712
        %v921 = vunpack.c.l.b16 %v713
        %v922 = vunpack.c.h.b16 %v713
        %v923 = vunpack.c.l.b16 %v714
        %v924 = vunpack.c.h.b16 %v714
        %v925 = vunpack.c.l.b16 %v715
        %v926 = vunpack.c.h.b16 %v715
        %v927 = vunpack.c.l.b16 %v716
        %v928 = vunpack.c.h.b16 %v716
        %v929 = vunpack.c.l.b16 %v717
        %v930 = vunpack.c.h.b16 %v717
        %v931 = vunpack.c.l.b16 %v718
        %v932 = vunpack.c.h.b16 %v718
        %v933 = vpack.c.b16 %v809, %v805
        %v934 = vpack.c.b16 %v810, %v806
        %v935 = vpack.c.b16 %v811, %v807
        %v936 = vpack.c.b16 %v812, %v808
        %v937 = vpack.c.b16 %v817, %v813
        %v938 = vpack.c.b16 %v818, %v814
        %v939 = vpack.c.b16 %v819, %v815
        %v940 = vpack.c.b16 %v820, %v816
        %v941 = vpack.c.b16 %v825, %v821
        %v942 = vpack.c.b16 %v826, %v822
        %v943 = vpack.c.b16 %v827, %v823
        %v944 = vpack.c.b16 %v828, %v824
        %v945 = vpack.c.b16 %v833, %v829
        %v946 = vpack.c.b16 %v834, %v830
        %v947 = vpack.c.b16 %v835, %v831
        %v948 = vpack.c.b16 %v836, %v832
        %v949 = vpack.c.b16 %v841, %v837
        %v950 = vpack.c.b16 %v842, %v838
        %v951 = vpack.c.b16 %v843, %v839
        %v952 = vpack.c.b16 %v844, %v840
        %v953 = vpack.c.b16 %v849, %v845
        %v954 = vpack.c.b16 %v850, %v846
        %v955 = vpack.c.b16 %v851, %v847
        %v956 = vpack.c.b16 %v852, %v848
        %v957 = vpack.c.b16 %v857, %v853
        %v958 = vpack.c.b16 %v858, %v854
        %v959 = vpack.c.b16 %v859, %v855
        %v960 = vpack.c.b16 %v860, %v856
        %v961 = vpack.c.b16 %v865, %v861
        %v962 = vpack.c.b16 %v866, %v862
        %v963 = vpack.c.b16 %v867, %v863
        %v964 = vpack.c.b16 %v868, %v864
        %v965 = vpack.c.b16 %v873, %v869
        %v966 = vpack.c.b16 %v874, %v870
        %v967 = vpack.c.b16 %v875, %v871
        %v968 = vpack.c.b16 %v876, %v872
        %v969 = vpack.c.b16 %v881, %v877
        %v970 = vpack.c.b16 %v882, %v878
        %v971 = vpack.c.b16 %v883, %v879
        %v972 = vpack.c.b16 %v884, %v880
        %v973 = vpack.c.b16 %v889, %v885
        %v974 = vpack.c.b16 %v890, %v886
        %v975 = vpack.c.b16 %v891, %v887
        %v976 = vpack.c.b16 %v892, %v888
        %v977 = vpack.c.b16 %v897, %v893
        %v978 = vpack.c.b16 %v898, %v894
        %v979 = vpack.c.b16 %v899, %v895
        %v980 = vpack.c.b16 %v900, %v896
        %v981 = vpack.c.b16 %v905, %v901
        %v982 = vpack.c.b16 %v906, %v902
        %v983 = vpack.c.b16 %v907, %v903
        %v984 = vpack.c.b16 %v908, %v904
        %v985 = vpack.c.b16 %v913, %v909
        %v986 = vpack.c.b16 %v914, %v910
        %v987 = vpack.c.b16 %v915, %v911
        %v988 = vpack.c.b16 %v916, %v912
        %v989 = vpack.c.b16 %v921, %v917
        %v990 = vpack.c.b16 %v922, %v918
        %v991 = vpack.c.b16 %v923, %v919
        %v992 = vpack.c.b16 %v924, %v920
        %v993 = vpack.c.b16 %v929, %v925
        %v994 = vpack.c.b16 %v930, %v926
        %v995 = vpack.c.b16 %v931, %v927
        %v996 = vpack.c.b16 %v932, %v928
        %1061 = vmatprep.subr.bf16.mxu0 %v962
        %1062 = vmatpush1.bf16.msra.mxu0 %v961
        %1063 = vmatprep.subr.bf16.mxu0 %v958
        %1064 = vmatpush1.bf16.msra.mxu0 %v957
        %1065 = vmatprep.subr.bf16.mxu0 %v954
        %1066 = vmatpush1.bf16.msra.mxu0 %v953
        %1067 = vmatprep.subr.bf16.mxu0 %v950
        %1068 = vmatpush1.bf16.msra.mxu0 %v949
        %1069 = vmatprep.subr.bf16.mxu0 %v946
        %1070 = vmatpush1.bf16.msra.mxu0 %v945
        %1071 = vmatprep.subr.bf16.mxu0 %v942
        %1072 = vmatpush1.bf16.msra.mxu0 %v941
        %1073 = vmatprep.subr.bf16.mxu0 %v938
        %1074 = vmatpush1.bf16.msra.mxu0 %v937
        %1075 = vmatprep.subr.bf16.mxu0 %v934
        %1076 = vmatpush1.bf16.msra.mxu0 %v933
        %1077 = vmatprep.subr.bf16.mxu0 %v994
        %1078 = vmatpush2.bf16.msra.mxu0 %v993
        %1079 = vmatprep.subr.bf16.mxu0 %v990
        %1080 = vmatpush2.bf16.msra.mxu0 %v989
        %1081 = vmatprep.subr.bf16.mxu0 %v986
        %1082 = vmatpush2.bf16.msra.mxu0 %v985
        %1083 = vmatprep.subr.bf16.mxu0 %v982
        %1084 = vmatpush2.bf16.msra.mxu0 %v981
        %1085 = vmatprep.subr.bf16.mxu0 %v978
        %1086 = vmatpush2.bf16.msra.mxu0 %v977
        %1087 = vmatprep.subr.bf16.mxu0 %v974
        %1088 = vmatpush2.bf16.msra.mxu0 %v973
        %1089 = vmatprep.subr.bf16.mxu0 %v970
        %1090 = vmatpush2.bf16.msra.mxu0 %v969
        %1091 = vmatprep.subr.bf16.mxu0 %v966
        %1092 = vmatpush2.bf16.msra.mxu0 %v965
        %1093 = vmatprep.mubr.bf16.mxu0 %v650
        %1094 = vmatmul.mubr.bf16.gmra.mxu0 %v649
        %v1095 = vpop.f32.mrf.mxu0
        %v1096 = vadd.f32 %v724, %v1095
        %v1097 = vpop.f32.mrf.mxu0
        %v1098 = vadd.f32 %v728, %v1097
        %v1099 = vpop.f32.mrf.mxu0
        %v1100 = vadd.f32 %v724, %v1099
        %v1101 = vpop.f32.mrf.mxu0
        %v1102 = vadd.f32 %v728, %v1101
        %1103 = vmatprep.mubr.bf16.mxu0 %v652
        %1104 = vmatmul.mubr.bf16.gmra.mxu0 %v651
        %v1105 = vpop.f32.mrf.mxu0
        %v1106 = vadd.f32 %v724, %v1105
        %v1107 = vpop.f32.mrf.mxu0
        %v1108 = vadd.f32 %v728, %v1107
        %v1109 = vpop.f32.mrf.mxu0
        %v1110 = vadd.f32 %v724, %v1109
        %v1111 = vpop.f32.mrf.mxu0
        %v1112 = vadd.f32 %v728, %v1111
        %1113 = vmatprep.mubr.bf16.mxu0 %v654
        %1114 = vmatmul.mubr.bf16.gmra.mxu0 %v653
        %v1115 = vpop.f32.mrf.mxu0
        %v1116 = vadd.f32 %v724, %v1115
        %v1117 = vpop.f32.mrf.mxu0
        %v1118 = vadd.f32 %v728, %v1117
        %v1119 = vpop.f32.mrf.mxu0
        %v1120 = vadd.f32 %v724, %v1119
        %v1121 = vpop.f32.mrf.mxu0
        %v1122 = vadd.f32 %v728, %v1121
        %1123 = vdwg.mxu0
        %1124 = vmatprep.subr.bf16.mxu0 %v964
        %1125 = vmatpush1.bf16.msra.mxu0 %v963
        %1126 = vmatprep.subr.bf16.mxu0 %v960
        %1127 = vmatpush1.bf16.msra.mxu0 %v959
        %1128 = vmatprep.subr.bf16.mxu0 %v956
        %1129 = vmatpush1.bf16.msra.mxu0 %v955
        %1130 = vmatprep.subr.bf16.mxu0 %v952
        %1131 = vmatpush1.bf16.msra.mxu0 %v951
        %1132 = vmatprep.subr.bf16.mxu0 %v948
        %1133 = vmatpush1.bf16.msra.mxu0 %v947
        %1134 = vmatprep.subr.bf16.mxu0 %v944
        %1135 = vmatpush1.bf16.msra.mxu0 %v943
        %1136 = vmatprep.subr.bf16.mxu0 %v940
        %1137 = vmatpush1.bf16.msra.mxu0 %v939
        %1138 = vmatprep.subr.bf16.mxu0 %v936
        %1139 = vmatpush1.bf16.msra.mxu0 %v935
        %1140 = vmatprep.subr.bf16.mxu0 %v996
        %1141 = vmatpush2.bf16.msra.mxu0 %v995
        %1142 = vmatprep.subr.bf16.mxu0 %v992
        %1143 = vmatpush2.bf16.msra.mxu0 %v991
        %1144 = vmatprep.subr.bf16.mxu0 %v988
        %1145 = vmatpush2.bf16.msra.mxu0 %v987
        %1146 = vmatprep.subr.bf16.mxu0 %v984
        %1147 = vmatpush2.bf16.msra.mxu0 %v983
        %1148 = vmatprep.subr.bf16.mxu0 %v980
        %1149 = vmatpush2.bf16.msra.mxu0 %v979
        %1150 = vmatprep.subr.bf16.mxu0 %v976
        %1151 = vmatpush2.bf16.msra.mxu0 %v975
        %1152 = vmatprep.subr.bf16.mxu0 %v972
        %1153 = vmatpush2.bf16.msra.mxu0 %v971
        %1154 = vmatprep.subr.bf16.mxu0 %v968
        %1155 = vmatpush2.bf16.msra.mxu0 %v967
        %1156 = vmatprep.mubr.bf16.mxu0 %v650
        %1157 = vmatmul.mubr.bf16.gmra.mxu0 %v649
        %v1158 = vpop.f32.mrf.mxu0
        %v1159 = vadd.f32 %v732, %v1158
        %v1160 = vpop.f32.mrf.mxu0
        %v1161 = vadd.f32 %v736, %v1160
        %v1162 = vpop.f32.mrf.mxu0
        %v1163 = vadd.f32 %v732, %v1162
        %v1164 = vpop.f32.mrf.mxu0
        %v1165 = vadd.f32 %v736, %v1164
        %1166 = vmatprep.mubr.bf16.mxu0 %v652
        %1167 = vmatmul.mubr.bf16.gmra.mxu0 %v651
        %v1168 = vpop.f32.mrf.mxu0
        %v1169 = vadd.f32 %v732, %v1168
        %v1170 = vpop.f32.mrf.mxu0
        %v1171 = vadd.f32 %v736, %v1170
        %v1172 = vpop.f32.mrf.mxu0
        %v1173 = vadd.f32 %v732, %v1172
        %v1174 = vpop.f32.mrf.mxu0
        %v1175 = vadd.f32 %v736, %v1174
        %1176 = vmatprep.mubr.bf16.mxu0 %v654
        %1177 = vmatmul.mubr.bf16.gmra.mxu0 %v653
        %v1178 = vpop.f32.mrf.mxu0
        %v1179 = vadd.f32 %v732, %v1178
        %v1180 = vpop.f32.mrf.mxu0
        %v1181 = vadd.f32 %v736, %v1180
        %v1182 = vpop.f32.mrf.mxu0
        %v1183 = vadd.f32 %v732, %v1182
        %v1184 = vpop.f32.mrf.mxu0
        %v1185 = vadd.f32 %v736, %v1184
        %1186 = vdwg.mxu0
        %v1187 = vpack.c.bf16 %v1100, %v1096
        %v1188 = vpack.c.bf16 %v1102, %v1098
        %v1189 = vpack.c.bf16 %v1163, %v1159
        %v1190 = vpack.c.bf16 %v1165, %v1161
        %v1191 = vpack.c.bf16 %v1110, %v1106
        %v1192 = vpack.c.bf16 %v1112, %v1108
        %v1193 = vpack.c.bf16 %v1173, %v1169
        %v1194 = vpack.c.bf16 %v1175, %v1171
        %v1195 = vpack.c.bf16 %v1120, %v1116
        %v1196 = vpack.c.bf16 %v1122, %v1118
        %v1197 = vpack.c.bf16 %v1183, %v1179
        %v1198 = vpack.c.bf16 %v1185, %v1181
        %1199 = vmatprep.subr.bf16.mxu0 0
        %1200 = vmatpush1.bf16.xpose.msra.mxu0 0
        %1201 = vmatprep.subr.bf16.mxu0 0
        %1202 = vmatpush1.bf16.xpose.msra.mxu0 0
        %1203 = vmatprep.subr.bf16.mxu0 0
        %1204 = vmatpush1.bf16.xpose.msra.mxu0 0
        %1205 = vmatprep.subr.bf16.mxu0 0
        %1206 = vmatpush1.bf16.xpose.msra.mxu0 0
        %1207 = vmatprep.subr.bf16.mxu0 0
        %1208 = vmatpush1.bf16.xpose.msra.mxu0 0
        %1209 = vmatprep.subr.bf16.mxu0 0
        %1210 = vmatpush1.bf16.xpose.msra.mxu0 0
        %1211 = vmatprep.subr.bf16.mxu0 0
        %1212 = vmatpush1.bf16.xpose.msra.mxu0 %v1191
        %1213 = vmatprep.subr.bf16.mxu0 0
        %1214 = vmatpush1.bf16.xpose.msra.mxu0 %v1187
        %1215 = vmatprep.subr.bf16.mxu0 0
        %1216 = vmatpush2.bf16.xpose.msra.mxu0 0
        %1217 = vmatprep.subr.bf16.mxu0 0
        %1218 = vmatpush2.bf16.xpose.msra.mxu0 0
        %1219 = vmatprep.subr.bf16.mxu0 0
        %1220 = vmatpush2.bf16.xpose.msra.mxu0 0
        %1221 = vmatprep.subr.bf16.mxu0 0
        %1222 = vmatpush2.bf16.xpose.msra.mxu0 0
        %1223 = vmatprep.subr.bf16.mxu0 0
        %1224 = vmatpush2.bf16.xpose.msra.mxu0 0
        %1225 = vmatprep.subr.bf16.mxu0 0
        %1226 = vmatpush2.bf16.xpose.msra.mxu0 0
        %1227 = vmatprep.subr.bf16.mxu0 0
        %1228 = vmatpush2.bf16.xpose.msra.mxu0 0
        %1229 = vmatprep.subr.bf16.mxu0 0
        %1230 = vmatpush2.bf16.xpose.msra.mxu0 0
        %1231 = vmatprep.mubr.bf16.mxu0 0
        %1232 = vmatmul.mubr.bf16.gmra.mxu0 %v645
        %v1233 = vpop.f32.mrf.mxu0
        %v1234 = vadd.f32 0.0, %v1233
        %v1235 = vpop.f32.mrf.mxu0
        %v1236 = vpop.f32.mrf.mxu0
        %v1237 = vadd.f32 0.0, %v1236
        %v1238 = vpop.f32.mrf.mxu0
        %1239 = vdwg.mxu0
        %vm1240 = vcmask 195584
        %v1241 = vsel %vm1240, %v1234, -inf
        %1242 = vmax.xlane.f32.xlu0 %v1241
        %v1243 = vpop.xlane.xlu0 %1242
        %v1244 = vsel %vm1240, %v1237, -inf
        %1245 = vmax.xlane.f32.xlu0 %v1244
        %v1246 = vpop.xlane.xlu0 %1245
        %v1247 = vsub.f32 %v1234, %v1243
        %v1248 = vsub.f32 %v1237, %v1246
        %v1249 = vmul.f32 %v1247, 1.442695
        %v1250 = vpow.pop %v1249
        %v1251 = vmul.f32 %v1248, 1.442695
        %v1252 = vpow.pop %v1251
        %v1253 = vsel %vm1240, %v1250, 0.0
        %1254 = vadd.xlane.f32.xlu0 %v1253
        %v1255 = vpop.xlane.xlu0 %1254
        %v1256 = vsel %vm1240, %v1252, 0.0
        %1257 = vadd.xlane.f32.xlu0 %v1256
        %v1258 = vpop.xlane.xlu0 %1257
        %v1259 = vpack.c.bf16 %v1252, %v1250
        %v1261 = vsel %vm1240, %v1259, 0
        %vm1263 = vcmask 1043456
        %v1265 = vsel %vm1263, %v1193, 0
        %1267 = vmatprep.subr.bf16.mxu0 0
        %1268 = vmatpush1.bf16.msra.mxu0 0
        %1269 = vmatprep.subr.bf16.mxu0 0
        %1270 = vmatpush1.bf16.msra.mxu0 0
        %1271 = vmatprep.subr.bf16.mxu0 0
        %1272 = vmatpush1.bf16.msra.mxu0 0
        %1273 = vmatprep.subr.bf16.mxu0 0
        %1274 = vmatpush1.bf16.msra.mxu0 0
        %1275 = vmatprep.subr.bf16.mxu0 0
        %1276 = vmatpush1.bf16.msra.mxu0 0
        %1277 = vmatprep.subr.bf16.mxu0 0
        %1278 = vmatpush1.bf16.msra.mxu0 0
        %1279 = vmatprep.subr.bf16.mxu0 0
        %1280 = vmatpush1.bf16.msra.mxu0 %v1265
        %1281 = vmatprep.subr.bf16.mxu0 0
        %1282 = vmatpush1.bf16.msra.mxu0 %v1189
        %1283 = vmatprep.subr.bf16.mxu0 0
        %1284 = vmatpush2.bf16.msra.mxu0 0
        %1285 = vmatprep.subr.bf16.mxu0 0
        %1286 = vmatpush2.bf16.msra.mxu0 0
        %1287 = vmatprep.subr.bf16.mxu0 0
        %1288 = vmatpush2.bf16.msra.mxu0 0
        %1289 = vmatprep.subr.bf16.mxu0 0
        %1290 = vmatpush2.bf16.msra.mxu0 0
        %1291 = vmatprep.subr.bf16.mxu0 0
        %1292 = vmatpush2.bf16.msra.mxu0 0
        %1293 = vmatprep.subr.bf16.mxu0 0
        %1294 = vmatpush2.bf16.msra.mxu0 0
        %1295 = vmatprep.subr.bf16.mxu0 0
        %1296 = vmatpush2.bf16.msra.mxu0 0
        %1297 = vmatprep.subr.bf16.mxu0 0
        %1298 = vmatpush2.bf16.msra.mxu0 0
        %1299 = vmatprep.mubr.bf16.mxu0 0
        %1300 = vmatmul.mubr.bf16.gmra.mxu0 %v1261
        %v1301 = vpop.f32.mrf.mxu0
        %v1302 = vadd.f32 0.0, %v1301
        %v1303 = vpop.f32.mrf.mxu0
        %v1304 = vpop.f32.mrf.mxu0
        %v1305 = vadd.f32 0.0, %v1304
        %v1306 = vpop.f32.mrf.mxu0
        %1307 = vdwg.mxu0
        %v1308 = vrcp.pop %v1255
        %v1309 = vrcp.pop %v1258
        %v1310 = vmul.f32 %v1302, %v1308
        %v1311 = vmul.f32 %v1305, %v1309
        %v1312 = vpack.c.bf16 %v1311, %v1310
        %v1314 = vunpack.c.l.b16 %v1312
        %v1315 = vunpack.c.h.b16 %v1312
        %v1316 = vpack.c.b16 %v1314, %v1314
        %v1317 = vpack.c.b16 %v1315, %v1315
        %1320 = vst [vmem:[#allocation2] sm:$0xf] %v1316
        %1321 = vst [vmem:[#allocation2 + $0x8] sm:$0xf] %v1317
        %1322 = vmatprep.subr.bf16.mxu0 0
        %1323 = vmatpush1.bf16.xpose.msra.mxu0 0
        %1324 = vmatprep.subr.bf16.mxu0 0
        %1325 = vmatpush1.bf16.xpose.msra.mxu0 0
        %1326 = vmatprep.subr.bf16.mxu0 0
        %1327 = vmatpush1.bf16.xpose.msra.mxu0 0
        %1328 = vmatprep.subr.bf16.mxu0 0
        %1329 = vmatpush1.bf16.xpose.msra.mxu0 0
        %1330 = vmatprep.subr.bf16.mxu0 0
        %1331 = vmatpush1.bf16.xpose.msra.mxu0 0
        %1332 = vmatprep.subr.bf16.mxu0 0
        %1333 = vmatpush1.bf16.xpose.msra.mxu0 0
        %1334 = vmatprep.subr.bf16.mxu0 0
        %1335 = vmatpush1.bf16.xpose.msra.mxu0 %v1192
        %1336 = vmatprep.subr.bf16.mxu0 0
        %1337 = vmatpush1.bf16.xpose.msra.mxu0 %v1188
        %1338 = vmatprep.subr.bf16.mxu0 0
        %1339 = vmatpush2.bf16.xpose.msra.mxu0 0
        %1340 = vmatprep.subr.bf16.mxu0 0
        %1341 = vmatpush2.bf16.xpose.msra.mxu0 0
        %1342 = vmatprep.subr.bf16.mxu0 0
        %1343 = vmatpush2.bf16.xpose.msra.mxu0 0
        %1344 = vmatprep.subr.bf16.mxu0 0
        %1345 = vmatpush2.bf16.xpose.msra.mxu0 0
        %1346 = vmatprep.subr.bf16.mxu0 0
        %1347 = vmatpush2.bf16.xpose.msra.mxu0 0
        %1348 = vmatprep.subr.bf16.mxu0 0
        %1349 = vmatpush2.bf16.xpose.msra.mxu0 0
        %1350 = vmatprep.subr.bf16.mxu0 0
        %1351 = vmatpush2.bf16.xpose.msra.mxu0 0
        %1352 = vmatprep.subr.bf16.mxu0 0
        %1353 = vmatpush2.bf16.xpose.msra.mxu0 0
        %1354 = vmatprep.mubr.bf16.mxu0 0
        %1355 = vmatmul.mubr.bf16.gmra.mxu0 %v646
        %v1356 = vpop.f32.mrf.mxu0
        %v1357 = vadd.f32 0.0, %v1356
        %v1358 = vpop.f32.mrf.mxu0
        %v1359 = vpop.f32.mrf.mxu0
        %v1360 = vadd.f32 0.0, %v1359
        %v1361 = vpop.f32.mrf.mxu0
        %1362 = vdwg.mxu0
        %v1363 = vsel %vm1240, %v1357, -inf
        %1364 = vmax.xlane.f32.xlu0 %v1363
        %v1365 = vpop.xlane.xlu0 %1364
        %v1366 = vsel %vm1240, %v1360, -inf
        %1367 = vmax.xlane.f32.xlu0 %v1366
        %v1368 = vpop.xlane.xlu0 %1367
        %v1369 = vsub.f32 %v1357, %v1365
        %v1370 = vsub.f32 %v1360, %v1368
        %v1371 = vmul.f32 %v1369, 1.442695
        %v1372 = vpow.pop %v1371
        %v1373 = vmul.f32 %v1370, 1.442695
        %v1374 = vpow.pop %v1373
        %v1375 = vsel %vm1240, %v1372, 0.0
        %1376 = vadd.xlane.f32.xlu0 %v1375
        %v1377 = vpop.xlane.xlu0 %1376
        %v1378 = vsel %vm1240, %v1374, 0.0
        %1379 = vadd.xlane.f32.xlu0 %v1378
        %v1380 = vpop.xlane.xlu0 %1379
        %v1381 = vpack.c.bf16 %v1374, %v1372
        %v1383 = vsel %vm1240, %v1381, 0
        %v1386 = vsel %vm1263, %v1194, 0
        %1388 = vmatprep.subr.bf16.mxu0 0
        %1389 = vmatpush1.bf16.msra.mxu0 0
        %1390 = vmatprep.subr.bf16.mxu0 0
        %1391 = vmatpush1.bf16.msra.mxu0 0
        %1392 = vmatprep.subr.bf16.mxu0 0
        %1393 = vmatpush1.bf16.msra.mxu0 0
        %1394 = vmatprep.subr.bf16.mxu0 0
        %1395 = vmatpush1.bf16.msra.mxu0 0
        %1396 = vmatprep.subr.bf16.mxu0 0
        %1397 = vmatpush1.bf16.msra.mxu0 0
        %1398 = vmatprep.subr.bf16.mxu0 0
        %1399 = vmatpush1.bf16.msra.mxu0 0
        %1400 = vmatprep.subr.bf16.mxu0 0
        %1401 = vmatpush1.bf16.msra.mxu0 %v1386
        %1402 = vmatprep.subr.bf16.mxu0 0
        %1403 = vmatpush1.bf16.msra.mxu0 %v1190
        %1404 = vmatprep.subr.bf16.mxu0 0
        %1405 = vmatpush2.bf16.msra.mxu0 0
        %1406 = vmatprep.subr.bf16.mxu0 0
        %1407 = vmatpush2.bf16.msra.mxu0 0
        %1408 = vmatprep.subr.bf16.mxu0 0
        %1409 = vmatpush2.bf16.msra.mxu0 0
        %1410 = vmatprep.subr.bf16.mxu0 0
        %1411 = vmatpush2.bf16.msra.mxu0 0
        %1412 = vmatprep.subr.bf16.mxu0 0
        %1413 = vmatpush2.bf16.msra.mxu0 0
        %1414 = vmatprep.subr.bf16.mxu0 0
        %1415 = vmatpush2.bf16.msra.mxu0 0
        %1416 = vmatprep.subr.bf16.mxu0 0
        %1417 = vmatpush2.bf16.msra.mxu0 0
        %1418 = vmatprep.subr.bf16.mxu0 0
        %1419 = vmatpush2.bf16.msra.mxu0 0
        %1420 = vmatprep.mubr.bf16.mxu0 0
        %1421 = vmatmul.mubr.bf16.gmra.mxu0 %v1383
        %v1422 = vpop.f32.mrf.mxu0
        %v1423 = vadd.f32 0.0, %v1422
        %v1424 = vpop.f32.mrf.mxu0
        %v1425 = vpop.f32.mrf.mxu0
        %v1426 = vadd.f32 0.0, %v1425
        %v1427 = vpop.f32.mrf.mxu0
        %1428 = vdwg.mxu0
        %v1429 = vrcp.pop %v1377
        %v1430 = vrcp.pop %v1380
        %v1431 = vmul.f32 %v1423, %v1429
        %v1432 = vmul.f32 %v1426, %v1430
        %v1433 = vpack.c.bf16 %v1432, %v1431
        %v1435 = vunpack.c.l.b16 %v1433
        %v1436 = vunpack.c.h.b16 %v1433
        %v1437 = vpack.c.b16 %v1435, %v1435
        %v1438 = vpack.c.b16 %v1436, %v1436
        %1441 = vst [vmem:[#allocation2 + $0x4] sm:$0xf] %v1437
        %1442 = vst [vmem:[#allocation2 + $0xc] sm:$0xf] %v1438
        %vm1445 = vcmask 1043456
        %v1446 = vrot.slane %v1191, 4
        %v1447 = vrot.slane %v1195, 4
        %v1448 = vsel %vm1445, %v1446, %v1447
        %1451 = vmatprep.subr.bf16.mxu0 0
        %1452 = vmatpush1.bf16.xpose.msra.mxu0 0
        %1453 = vmatprep.subr.bf16.mxu0 0
        %1454 = vmatpush1.bf16.xpose.msra.mxu0 0
        %1455 = vmatprep.subr.bf16.mxu0 0
        %1456 = vmatpush1.bf16.xpose.msra.mxu0 0
        %1457 = vmatprep.subr.bf16.mxu0 0
        %1458 = vmatpush1.bf16.xpose.msra.mxu0 0
        %1459 = vmatprep.subr.bf16.mxu0 0
        %1460 = vmatpush1.bf16.xpose.msra.mxu0 0
        %1461 = vmatprep.subr.bf16.mxu0 0
        %1462 = vmatpush1.bf16.xpose.msra.mxu0 0
        %1463 = vmatprep.subr.bf16.mxu0 0
        %1464 = vmatpush1.bf16.xpose.msra.mxu0 %v1447
        %1465 = vmatprep.subr.bf16.mxu0 0
        %1466 = vmatpush1.bf16.xpose.msra.mxu0 %v1448
        %1467 = vmatprep.subr.bf16.mxu0 0
        %1468 = vmatpush2.bf16.xpose.msra.mxu0 0
        %1469 = vmatprep.subr.bf16.mxu0 0
        %1470 = vmatpush2.bf16.xpose.msra.mxu0 0
        %1471 = vmatprep.subr.bf16.mxu0 0
        %1472 = vmatpush2.bf16.xpose.msra.mxu0 0
        %1473 = vmatprep.subr.bf16.mxu0 0
        %1474 = vmatpush2.bf16.xpose.msra.mxu0 0
        %1475 = vmatprep.subr.bf16.mxu0 0
        %1476 = vmatpush2.bf16.xpose.msra.mxu0 0
        %1477 = vmatprep.subr.bf16.mxu0 0
        %1478 = vmatpush2.bf16.xpose.msra.mxu0 0
        %1479 = vmatprep.subr.bf16.mxu0 0
        %1480 = vmatpush2.bf16.xpose.msra.mxu0 0
        %1481 = vmatprep.subr.bf16.mxu0 0
        %1482 = vmatpush2.bf16.xpose.msra.mxu0 0
        %1483 = vmatprep.mubr.bf16.mxu0 0
        %1484 = vmatmul.mubr.bf16.gmra.mxu0 %v647
        %v1485 = vpop.f32.mrf.mxu0
        %v1486 = vadd.f32 0.0, %v1485
        %v1487 = vpop.f32.mrf.mxu0
        %v1488 = vpop.f32.mrf.mxu0
        %v1489 = vadd.f32 0.0, %v1488
        %v1490 = vpop.f32.mrf.mxu0
        %1491 = vdwg.mxu0
        %v1492 = vsel %vm1240, %v1486, -inf
        %1493 = vmax.xlane.f32.xlu0 %v1492
        %v1494 = vpop.xlane.xlu0 %1493
        %v1495 = vsel %vm1240, %v1489, -inf
        %1496 = vmax.xlane.f32.xlu0 %v1495
        %v1497 = vpop.xlane.xlu0 %1496
        %v1498 = vsub.f32 %v1486, %v1494
        %v1499 = vsub.f32 %v1489, %v1497
        %v1500 = vmul.f32 %v1498, 1.442695
        %v1501 = vpow.pop %v1500
        %v1502 = vmul.f32 %v1499, 1.442695
        %v1503 = vpow.pop %v1502
        %v1504 = vsel %vm1240, %v1501, 0.0
        %1505 = vadd.xlane.f32.xlu0 %v1504
        %v1506 = vpop.xlane.xlu0 %1505
        %v1507 = vsel %vm1240, %v1503, 0.0
        %1508 = vadd.xlane.f32.xlu0 %v1507
        %v1509 = vpop.xlane.xlu0 %1508
        %v1510 = vpack.c.bf16 %v1503, %v1501
        %v1513 = vrot.slane %v1193, 4
        %v1514 = vrot.slane %v1197, 4
        %v1515 = vsel %vm1445, %v1513, %v1514
        %v1518 = vsel %vm1240, %v1510, 0
        %v1521 = vsel %vm1263, %v1514, 0
        %1523 = vmatprep.subr.bf16.mxu0 0
        %1524 = vmatpush1.bf16.msra.mxu0 0
        %1525 = vmatprep.subr.bf16.mxu0 0
        %1526 = vmatpush1.bf16.msra.mxu0 0
        %1527 = vmatprep.subr.bf16.mxu0 0
        %1528 = vmatpush1.bf16.msra.mxu0 0
        %1529 = vmatprep.subr.bf16.mxu0 0
        %1530 = vmatpush1.bf16.msra.mxu0 0
        %1531 = vmatprep.subr.bf16.mxu0 0
        %1532 = vmatpush1.bf16.msra.mxu0 0
        %1533 = vmatprep.subr.bf16.mxu0 0
        %1534 = vmatpush1.bf16.msra.mxu0 0
        %1535 = vmatprep.subr.bf16.mxu0 0
        %1536 = vmatpush1.bf16.msra.mxu0 %v1521
        %1537 = vmatprep.subr.bf16.mxu0 0
        %1538 = vmatpush1.bf16.msra.mxu0 %v1515
        %1539 = vmatprep.subr.bf16.mxu0 0
        %1540 = vmatpush2.bf16.msra.mxu0 0
        %1541 = vmatprep.subr.bf16.mxu0 0
        %1542 = vmatpush2.bf16.msra.mxu0 0
        %1543 = vmatprep.subr.bf16.mxu0 0
        %1544 = vmatpush2.bf16.msra.mxu0 0
        %1545 = vmatprep.subr.bf16.mxu0 0
        %1546 = vmatpush2.bf16.msra.mxu0 0
        %1547 = vmatprep.subr.bf16.mxu0 0
        %1548 = vmatpush2.bf16.msra.mxu0 0
        %1549 = vmatprep.subr.bf16.mxu0 0
        %1550 = vmatpush2.bf16.msra.mxu0 0
        %1551 = vmatprep.subr.bf16.mxu0 0
        %1552 = vmatpush2.bf16.msra.mxu0 0
        %1553 = vmatprep.subr.bf16.mxu0 0
        %1554 = vmatpush2.bf16.msra.mxu0 0
        %1555 = vmatprep.mubr.bf16.mxu0 0
        %1556 = vmatmul.mubr.bf16.gmra.mxu0 %v1518
        %v1557 = vpop.f32.mrf.mxu0
        %v1558 = vadd.f32 0.0, %v1557
        %v1559 = vpop.f32.mrf.mxu0
        %v1560 = vpop.f32.mrf.mxu0
        %v1561 = vadd.f32 0.0, %v1560
        %v1562 = vpop.f32.mrf.mxu0
        %1563 = vdwg.mxu0
        %v1564 = vrcp.pop %v1506
        %v1565 = vrcp.pop %v1509
        %v1566 = vmul.f32 %v1558, %v1564
        %v1567 = vmul.f32 %v1561, %v1565
        %v1568 = vpack.c.bf16 %v1567, %v1566
        %v1570 = vunpack.c.l.b16 %v1568
        %v1571 = vunpack.c.h.b16 %v1568
        %v1572 = vpack.c.b16 %v1570, %v1570
        %v1573 = vpack.c.b16 %v1571, %v1571
        %1576 = vst [vmem:[#allocation2 + $0x10] sm:$0xf] %v1572
        %1577 = vst [vmem:[#allocation2 + $0x18] sm:$0xf] %v1573
        %v1580 = vrot.slane %v1192, 4
        %v1581 = vrot.slane %v1196, 4
        %v1582 = vsel %vm1445, %v1580, %v1581
        %1585 = vmatprep.subr.bf16.mxu0 0
        %1586 = vmatpush1.bf16.xpose.msra.mxu0 0
        %1587 = vmatprep.subr.bf16.mxu0 0
        %1588 = vmatpush1.bf16.xpose.msra.mxu0 0
        %1589 = vmatprep.subr.bf16.mxu0 0
        %1590 = vmatpush1.bf16.xpose.msra.mxu0 0
        %1591 = vmatprep.subr.bf16.mxu0 0
        %1592 = vmatpush1.bf16.xpose.msra.mxu0 0
        %1593 = vmatprep.subr.bf16.mxu0 0
        %1594 = vmatpush1.bf16.xpose.msra.mxu0 0
        %1595 = vmatprep.subr.bf16.mxu0 0
        %1596 = vmatpush1.bf16.xpose.msra.mxu0 0
        %1597 = vmatprep.subr.bf16.mxu0 0
        %1598 = vmatpush1.bf16.xpose.msra.mxu0 %v1581
        %1599 = vmatprep.subr.bf16.mxu0 0
        %1600 = vmatpush1.bf16.xpose.msra.mxu0 %v1582
        %1601 = vmatprep.subr.bf16.mxu0 0
        %1602 = vmatpush2.bf16.xpose.msra.mxu0 0
        %1603 = vmatprep.subr.bf16.mxu0 0
        %1604 = vmatpush2.bf16.xpose.msra.mxu0 0
        %1605 = vmatprep.subr.bf16.mxu0 0
        %1606 = vmatpush2.bf16.xpose.msra.mxu0 0
        %1607 = vmatprep.subr.bf16.mxu0 0
        %1608 = vmatpush2.bf16.xpose.msra.mxu0 0
        %1609 = vmatprep.subr.bf16.mxu0 0
        %1610 = vmatpush2.bf16.xpose.msra.mxu0 0
        %1611 = vmatprep.subr.bf16.mxu0 0
        %1612 = vmatpush2.bf16.xpose.msra.mxu0 0
        %1613 = vmatprep.subr.bf16.mxu0 0
        %1614 = vmatpush2.bf16.xpose.msra.mxu0 0
        %1615 = vmatprep.subr.bf16.mxu0 0
        %1616 = vmatpush2.bf16.xpose.msra.mxu0 0
        %1617 = vmatprep.mubr.bf16.mxu0 0
        %1618 = vmatmul.mubr.bf16.gmra.mxu0 %v648
        %v1619 = vpop.f32.mrf.mxu0
        %v1620 = vadd.f32 0.0, %v1619
        %v1621 = vpop.f32.mrf.mxu0
        %v1622 = vpop.f32.mrf.mxu0
        %v1623 = vadd.f32 0.0, %v1622
        %v1624 = vpop.f32.mrf.mxu0
        %1625 = vdwg.mxu0
        %v1626 = vsel %vm1240, %v1620, -inf
        %1627 = vmax.xlane.f32.xlu0 %v1626
        %v1628 = vpop.xlane.xlu0 %1627
        %v1629 = vsel %vm1240, %v1623, -inf
        %1630 = vmax.xlane.f32.xlu0 %v1629
        %v1631 = vpop.xlane.xlu0 %1630
        %v1632 = vsub.f32 %v1620, %v1628
        %v1633 = vsub.f32 %v1623, %v1631
        %v1634 = vmul.f32 %v1632, 1.442695
        %v1635 = vpow.pop %v1634
        %v1636 = vmul.f32 %v1633, 1.442695
        %v1637 = vpow.pop %v1636
        %v1638 = vsel %vm1240, %v1635, 0.0
        %1639 = vadd.xlane.f32.xlu0 %v1638
        %v1640 = vpop.xlane.xlu0 %1639
        %v1641 = vsel %vm1240, %v1637, 0.0
        %1642 = vadd.xlane.f32.xlu0 %v1641
        %v1643 = vpop.xlane.xlu0 %1642
        %v1644 = vpack.c.bf16 %v1637, %v1635
        %v1647 = vrot.slane %v1194, 4
        %v1648 = vrot.slane %v1198, 4
        %v1649 = vsel %vm1445, %v1647, %v1648
        %v1652 = vsel %vm1240, %v1644, 0
        %v1655 = vsel %vm1263, %v1648, 0
        %1657 = vmatprep.subr.bf16.mxu0 0
        %1658 = vmatpush1.bf16.msra.mxu0 0
        %1659 = vmatprep.subr.bf16.mxu0 0
        %1660 = vmatpush1.bf16.msra.mxu0 0
        %1661 = vmatprep.subr.bf16.mxu0 0
        %1662 = vmatpush1.bf16.msra.mxu0 0
        %1663 = vmatprep.subr.bf16.mxu0 0
        %1664 = vmatpush1.bf16.msra.mxu0 0
        %1665 = vmatprep.subr.bf16.mxu0 0
        %1666 = vmatpush1.bf16.msra.mxu0 0
        %1667 = vmatprep.subr.bf16.mxu0 0
        %1668 = vmatpush1.bf16.msra.mxu0 0
        %1669 = vmatprep.subr.bf16.mxu0 0
        %1670 = vmatpush1.bf16.msra.mxu0 %v1655
        %1671 = vmatprep.subr.bf16.mxu0 0
        %1672 = vmatpush1.bf16.msra.mxu0 %v1649
        %1673 = vmatprep.subr.bf16.mxu0 0
        %1674 = vmatpush2.bf16.msra.mxu0 0
        %1675 = vmatprep.subr.bf16.mxu0 0
        %1676 = vmatpush2.bf16.msra.mxu0 0
        %1677 = vmatprep.subr.bf16.mxu0 0
        %1678 = vmatpush2.bf16.msra.mxu0 0
        %1679 = vmatprep.subr.bf16.mxu0 0
        %1680 = vmatpush2.bf16.msra.mxu0 0
        %1681 = vmatprep.subr.bf16.mxu0 0
        %1682 = vmatpush2.bf16.msra.mxu0 0
        %1683 = vmatprep.subr.bf16.mxu0 0
        %1684 = vmatpush2.bf16.msra.mxu0 0
        %1685 = vmatprep.subr.bf16.mxu0 0
        %1686 = vmatpush2.bf16.msra.mxu0 0
        %1687 = vmatprep.subr.bf16.mxu0 0
        %1688 = vmatpush2.bf16.msra.mxu0 0
        %1689 = vmatprep.mubr.bf16.mxu0 0
        %1690 = vmatmul.mubr.bf16.gmra.mxu0 %v1652
        %v1691 = vpop.f32.mrf.mxu0
        %v1692 = vadd.f32 0.0, %v1691
        %v1693 = vpop.f32.mrf.mxu0
        %v1694 = vpop.f32.mrf.mxu0
        %v1695 = vadd.f32 0.0, %v1694
        %v1696 = vpop.f32.mrf.mxu0
        %1697 = vdwg.mxu0
        %v1698 = vrcp.pop %v1640
        %v1699 = vrcp.pop %v1643
        %v1700 = vmul.f32 %v1692, %v1698
        %v1701 = vmul.f32 %v1695, %v1699
        %v1702 = vpack.c.bf16 %v1701, %v1700
        %v1704 = vunpack.c.l.b16 %v1702
        %v1705 = vunpack.c.h.b16 %v1702
        %v1706 = vpack.c.b16 %v1704, %v1704
        %v1707 = vpack.c.b16 %v1705, %v1705
        %1710 = vst [vmem:[#allocation2 + $0x14] sm:$0xf] %v1706
        %1711 = vst [vmem:[#allocation2 + $0x1c] sm:$0xf] %v1707
        %v1712 = vld [vmem:[#allocation2] sm:$0xff]
        %v1713 = vld [vmem:[#allocation2 + $0x8] sm:$0xff]
        %v1714 = vld [vmem:[#allocation2 + $0x10] sm:$0xff]
        %v1715 = vld [vmem:[#allocation2 + $0x18] sm:$0xff]
        %v1716 = vld [vmem:[#allocation11] sm:$0xf]
        %v1717 = vld [vmem:[#allocation11 + $0x4] sm:$0xf]
        %v1718 = vld [vmem:[#allocation11 + $0x8] sm:$0xf]
        %v1719 = vld [vmem:[#allocation11 + $0xc] sm:$0xf]
        %v1720 = vld [vmem:[#allocation11 + $0x10] sm:$0xf]
        %v1721 = vld [vmem:[#allocation11 + $0x14] sm:$0xf]
        %v1722 = vld [vmem:[#allocation11 + $0x18] sm:$0xf]
        %v1723 = vld [vmem:[#allocation11 + $0x1c] sm:$0xf]
        %v1724 = vld [vmem:[#allocation11 + $0x20] sm:$0xf]
        %v1725 = vld [vmem:[#allocation11 + $0x24] sm:$0xf]
        %v1726 = vld [vmem:[#allocation11 + $0x28] sm:$0xf]
        %v1727 = vld [vmem:[#allocation11 + $0x2c] sm:$0xf]
        %v1728 = vld [vmem:[#allocation11 + $0x30] sm:$0xf]
        %v1729 = vld [vmem:[#allocation11 + $0x34] sm:$0xf]
        %v1730 = vld [vmem:[#allocation11 + $0x38] sm:$0xf]
        %v1731 = vld [vmem:[#allocation11 + $0x3c] sm:$0xf]
        %v1732 = vld [vmem:[#allocation11 + $0x40] sm:$0xf]
        %v1733 = vld [vmem:[#allocation11 + $0x44] sm:$0xf]
        %v1734 = vld [vmem:[#allocation11 + $0x48] sm:$0xf]
        %v1735 = vld [vmem:[#allocation11 + $0x4c] sm:$0xf]
        %v1736 = vld [vmem:[#allocation11 + $0x50] sm:$0xf]
        %v1737 = vld [vmem:[#allocation11 + $0x54] sm:$0xf]
        %v1738 = vld [vmem:[#allocation11 + $0x58] sm:$0xf]
        %v1739 = vld [vmem:[#allocation11 + $0x5c] sm:$0xf]
        %v1740 = vld [vmem:[#allocation11 + $0x60] sm:$0xf]
        %v1741 = vld [vmem:[#allocation11 + $0x64] sm:$0xf]
        %v1742 = vld [vmem:[#allocation11 + $0x68] sm:$0xf]
        %v1743 = vld [vmem:[#allocation11 + $0x6c] sm:$0xf]
        %v1744 = vld [vmem:[#allocation11 + $0x70] sm:$0xf]
        %v1745 = vld [vmem:[#allocation11 + $0x74] sm:$0xf]
        %v1746 = vld [vmem:[#allocation11 + $0x78] sm:$0xf]
        %v1747 = vld [vmem:[#allocation11 + $0x7c] sm:$0xf]
        %v1748 = vld [vmem:[%s7] sm:$0x1]
        %v1750 = vlaneseq
        %v1751 = vshrl.u32 %v1750, 7
        %v1752 = vsub.s32 0, %v1751
        %v1753 = vrot.slane %v1748, %v1752
        %v1759 = vunpack.c.l.b16 %v1712
        %v1760 = vunpack.c.h.b16 %v1712
        %v1761 = vunpack.c.l.b16 %v1713
        %v1762 = vunpack.c.h.b16 %v1713
        %v1763 = vunpack.c.l.b16 %v1714
        %v1764 = vunpack.c.h.b16 %v1714
        %v1765 = vunpack.c.l.b16 %v1715
        %v1766 = vunpack.c.h.b16 %v1715
        %v1767 = vpack.c.b16 %v1761, %v1759
        %v1768 = vpack.c.b16 %v1762, %v1760
        %v1769 = vpack.c.b16 %v1765, %v1763
        %v1770 = vpack.c.b16 %v1766, %v1764
        %v1807 = vunpack.c.l.b16 %v1716
        %v1808 = vunpack.c.l.b16 %v1717
        %v1809 = vunpack.c.l.b16 %v1718
        %v1810 = vunpack.c.l.b16 %v1719
        %v1811 = vunpack.c.l.b16 %v1720
        %v1812 = vunpack.c.l.b16 %v1721
        %v1813 = vunpack.c.l.b16 %v1722
        %v1814 = vunpack.c.l.b16 %v1723
        %v1815 = vunpack.c.l.b16 %v1724
        %v1816 = vunpack.c.l.b16 %v1725
        %v1817 = vunpack.c.l.b16 %v1726
        %v1818 = vunpack.c.l.b16 %v1727
        %v1819 = vunpack.c.l.b16 %v1728
        %v1820 = vunpack.c.l.b16 %v1729
        %v1821 = vunpack.c.l.b16 %v1730
        %v1822 = vunpack.c.l.b16 %v1731
        %v1823 = vunpack.c.l.b16 %v1732
        %v1824 = vunpack.c.l.b16 %v1733
        %v1825 = vunpack.c.l.b16 %v1734
        %v1826 = vunpack.c.l.b16 %v1735
        %v1827 = vunpack.c.l.b16 %v1736
        %v1828 = vunpack.c.l.b16 %v1737
        %v1829 = vunpack.c.l.b16 %v1738
        %v1830 = vunpack.c.l.b16 %v1739
        %v1831 = vunpack.c.l.b16 %v1740
        %v1832 = vunpack.c.l.b16 %v1741
        %v1833 = vunpack.c.l.b16 %v1742
        %v1834 = vunpack.c.l.b16 %v1743
        %v1835 = vunpack.c.l.b16 %v1744
        %v1836 = vunpack.c.l.b16 %v1745
        %v1837 = vunpack.c.l.b16 %v1746
        %v1838 = vunpack.c.l.b16 %v1747
        %v1839 = vpack.c.b16 %v1808, %v1807
        %v1840 = vpack.c.b16 %v1810, %v1809
        %v1841 = vpack.c.b16 %v1812, %v1811
        %v1842 = vpack.c.b16 %v1814, %v1813
        %v1843 = vpack.c.b16 %v1816, %v1815
        %v1844 = vpack.c.b16 %v1818, %v1817
        %v1845 = vpack.c.b16 %v1820, %v1819
        %v1846 = vpack.c.b16 %v1822, %v1821
        %v1847 = vpack.c.b16 %v1824, %v1823
        %v1848 = vpack.c.b16 %v1826, %v1825
        %v1849 = vpack.c.b16 %v1828, %v1827
        %v1850 = vpack.c.b16 %v1830, %v1829
        %v1851 = vpack.c.b16 %v1832, %v1831
        %v1852 = vpack.c.b16 %v1834, %v1833
        %v1853 = vpack.c.b16 %v1836, %v1835
        %v1854 = vpack.c.b16 %v1838, %v1837
        %1871 = vmatprep.subr.bf16.mxu0 0
        %1872 = vmatpush1.bf16.msra.mxu0 %v1846
        %1873 = vmatprep.subr.bf16.mxu0 0
        %1874 = vmatpush1.bf16.msra.mxu0 %v1845
        %1875 = vmatprep.subr.bf16.mxu0 0
        %1876 = vmatpush1.bf16.msra.mxu0 %v1844
        %1877 = vmatprep.subr.bf16.mxu0 0
        %1878 = vmatpush1.bf16.msra.mxu0 %v1843
        %1879 = vmatprep.subr.bf16.mxu0 0
        %1880 = vmatpush1.bf16.msra.mxu0 %v1842
        %1881 = vmatprep.subr.bf16.mxu0 0
        %1882 = vmatpush1.bf16.msra.mxu0 %v1841
        %1883 = vmatprep.subr.bf16.mxu0 0
        %1884 = vmatpush1.bf16.msra.mxu0 %v1840
        %1885 = vmatprep.subr.bf16.mxu0 0
        %1886 = vmatpush1.bf16.msra.mxu0 %v1839
        %1887 = vmatprep.subr.bf16.mxu0 0
        %1888 = vmatpush2.bf16.msra.mxu0 %v1854
        %1889 = vmatprep.subr.bf16.mxu0 0
        %1890 = vmatpush2.bf16.msra.mxu0 %v1853
        %1891 = vmatprep.subr.bf16.mxu0 0
        %1892 = vmatpush2.bf16.msra.mxu0 %v1852
        %1893 = vmatprep.subr.bf16.mxu0 0
        %1894 = vmatpush2.bf16.msra.mxu0 %v1851
        %1895 = vmatprep.subr.bf16.mxu0 0
        %1896 = vmatpush2.bf16.msra.mxu0 %v1850
        %1897 = vmatprep.subr.bf16.mxu0 0
        %1898 = vmatpush2.bf16.msra.mxu0 %v1849
        %1899 = vmatprep.subr.bf16.mxu0 0
        %1900 = vmatpush2.bf16.msra.mxu0 %v1848
        %1901 = vmatprep.subr.bf16.mxu0 0
        %1902 = vmatpush2.bf16.msra.mxu0 %v1847
        %1903 = vmatprep.mubr.bf16.mxu0 %v1768
        %1904 = vmatmul.mubr.bf16.gmra.mxu0 %v1767
        %v1905 = vpop.f32.mrf.mxu0
        %v1906 = vadd.f32 %v1753, %v1905
        %v1907 = vpop.f32.mrf.mxu0
        %v1908 = vpop.f32.mrf.mxu0
        %v1909 = vadd.f32 %v1753, %v1908
        %v1910 = vpop.f32.mrf.mxu0
        %1911 = vmatprep.mubr.bf16.mxu0 %v1770
        %1912 = vmatmul.mubr.bf16.gmra.mxu0 %v1769
        %v1913 = vpop.f32.mrf.mxu0
        %v1914 = vadd.f32 %v1753, %v1913
        %v1915 = vpop.f32.mrf.mxu0
        %v1916 = vpop.f32.mrf.mxu0
        %v1917 = vadd.f32 %v1753, %v1916
        %v1918 = vpop.f32.mrf.mxu0
        %1919 = vdwg.mxu0
        %1920 = vadd.xlane.f32.xlu0 %v1906
        %v1921 = vpop.xlane.xlu0 %1920
        %1922 = vadd.xlane.f32.xlu0 %v1909
        %v1923 = vpop.xlane.xlu0 %1922
        %1924 = vadd.xlane.f32.xlu0 %v1914
        %v1925 = vpop.xlane.xlu0 %1924
        %1926 = vadd.xlane.f32.xlu0 %v1917
        %v1927 = vpop.xlane.xlu0 %1926
        %v1928 = vrcp.pop 128.0
        %v1929 = vmul.f32 %v1921, %v1928
        %v1930 = vmul.f32 %v1923, %v1928
        %v1931 = vmul.f32 %v1925, %v1928
        %v1932 = vmul.f32 %v1927, %v1928
        %v1933 = vsub.f32 %v1906, %v1929
        %v1934 = vsub.f32 %v1909, %v1930
        %v1935 = vsub.f32 %v1914, %v1931
        %v1936 = vsub.f32 %v1917, %v1932
        %v1937 = vmul.f32 %v1933, %v1933
        %v1938 = vmul.f32 %v1934, %v1934
        %v1939 = vmul.f32 %v1935, %v1935
        %v1940 = vmul.f32 %v1936, %v1936
        %1941 = vadd.xlane.f32.xlu0 %v1937
        %v1942 = vpop.xlane.xlu0 %1941
        %1943 = vadd.xlane.f32.xlu0 %v1938
        %v1944 = vpop.xlane.xlu0 %1943
        %1945 = vadd.xlane.f32.xlu0 %v1939
        %v1946 = vpop.xlane.xlu0 %1945
        %1947 = vadd.xlane.f32.xlu0 %v1940
        %v1948 = vpop.xlane.xlu0 %1947
        %v1949 = vmul.f32 %v1942, %v1928
        %v1950 = vmul.f32 %v1944, %v1928
        %v1951 = vmul.f32 %v1946, %v1928
        %v1952 = vmul.f32 %v1948, %v1928
        %v1953 = vadd.f32 %v1949, 1e-05
        %v1954 = vadd.f32 %v1950, 1e-05
        %v1955 = vadd.f32 %v1951, 1e-05
        %v1956 = vadd.f32 %v1952, 1e-05
        %v1957 = vrsqrt.pop %v1953
        %v1958 = vrsqrt.pop %v1954
        %v1959 = vrsqrt.pop %v1955
        %v1960 = vrsqrt.pop %v1956
        %v1961 = vmul.f32 %v1933, %v1957
        %v1962 = vmul.f32 %v1934, %v1958
        %v1963 = vmul.f32 %v1935, %v1959
        %v1964 = vmul.f32 %v1936, %v1960
        %v1965 = vld [vmem:[%s8] sm:$0x1]
        %v1967 = vlaneseq
        %v1968 = vshrl.u32 %v1967, 7
        %v1969 = vsub.s32 0, %v1968
        %v1970 = vrot.slane %v1965, %v1969
        %v1972 = vmul.f32 %v1961, %v1970
        %v1973 = vmul.f32 %v1962, %v1970
        %v1974 = vmul.f32 %v1963, %v1970
        %v1975 = vmul.f32 %v1964, %v1970
        %v1976 = vld [vmem:[%s9] sm:$0x1]
        %v1978 = vlaneseq
        %v1979 = vshrl.u32 %v1978, 7
        %v1980 = vsub.s32 0, %v1979
        %v1981 = vrot.slane %v1976, %v1980
        %v1983 = vadd.f32 %v1972, %v1981
        %v1984 = vadd.f32 %v1973, %v1981
        %v1985 = vadd.f32 %v1974, %v1981
        %v1986 = vadd.f32 %v1975, %v1981
        %1987 = vst [vmem:[%s461] sm:$0xff] %v1983
        %1988 = vst [vmem:[%s461 + $0x8] sm:$0xff] %v1984
        %1989 = vst [vmem:[%s461 + $0x10] sm:$0xff] %v1985
        %1990 = vst [vmem:[%s461 + $0x18] sm:$0xff] %v1986
        %s1991 = sand.u32 %s259, 1
        %s1992 = scalar_lea.sflag [#allocation5], %s1991
        %s1993 = sand.u32 %s259, 1
        %s1994 = smul.addr %s1993, 32
        %s1995 = scalar_lea.vmem [#allocation12], %s1994
        // Predicated region
        $region81: #{tpu_custom_call.1} parent=59 // pred_check
          %p1996 = pneg %p269
        $region82: #{tpu_custom_call.1} parent=59 // pred_check_branch
          %1998 = sbr.rel (%p1996) target = $region84
        $region83: #{tpu_custom_call.1} parent=59 // pred_region
          %s1999 = smul.u32 4, %s31
          %s2001 = ssub.s32 512, 512
          %2002 = vsyncadd %s1992, %s2001
          %s2003 = smul.addr %s1999, 128
          %s2004 = scalar_lea.hbm %s10, %s2003
          %s2005 = sshll.u32 %s1995, 4
          %s2006 = int_to_ptr.vmem [resolvable:$true] %s2005
          %2011 = dma.vmem_to_hbm [thread:$0]  %s2006, 512, %s2004, %s1992, 128, 128, 8
        $region84: #{tpu_custom_call.1} parent=59 // pred_fallthru
          _
      $region60: #{tpu_custom_call.1} parent=5 // pred_fallthru
        _
      %p2012 = scmp.le.s32.totalorder 2, %s26
      // Predicated region
      $region85: #{tpu_custom_call.1} parent=5 // pred_check
        %p2013 = pneg %p2012
      $region86: #{tpu_custom_call.1} parent=5 // pred_check_branch
        %2015 = sbr.rel (%p2013) target = $region88
      $region87: #{tpu_custom_call.1} parent=5 // pred_region
        %s2016 = ssub.s32 %s26, 2
        // Predicated region
        $region89: #{tpu_custom_call.1} parent=87 // pred_check
          %p2017 = pneg %p275
        $region90: #{tpu_custom_call.1} parent=87 // pred_check_branch
          %2019 = sbr.rel (%p2017) target = $region92
        $region91: #{tpu_custom_call.1} parent=87 // pred_region
          %s2020 = sand.u32 %s260, 1
          %s2021 = scalar_lea.sflag [#allocation5], %s2020
          %s2022 = sand.u32 %s260, 1
          %s2023 = smul.addr %s2022, 32
          %s2024 = scalar_lea.vmem [#allocation12], %s2023
          %2025 = dma.done %s2021, 512
        $region92: #{tpu_custom_call.1} parent=87 // pred_fallthru
          _
      $region88: #{tpu_custom_call.1} parent=5 // pred_fallthru
        _
    $region6: #{tpu_custom_call.1} parent=1 // loop_footer
      %s30 = sadd.s32 1, %s26
    $region7: #{tpu_custom_call.1} parent=1 // loop_footer_branch
      %25 = sbr.rel target = $region3
    $region8: #{tpu_custom_call.1} parent=1 // loop_exit
      _
    %2026 = vsyncpa [#allocation4], 1
    %s2027 = scalar_lea.sflag [#allocation4], 1
    %2028 = vsyncpa %s2027, 1
    %2029 = vsyncpa [#allocation7], 1
    %s2030 = scalar_lea.sflag [#allocation7], 1
    %2031 = vsyncpa %s2030, 1
    %2032 = vsyncpa [#allocation10], 1
    %2033 = vsyncpa [#allocation5], 1
    %s2034 = scalar_lea.sflag [#allocation5], 1
    %2035 = vsyncpa %s2034, 1

</llo_original>
